<compile_context>
chip_gen: v5e
topology: v5e:2x2
jax: 0.10.0
libtpu: 0.0.40
codegen_flags: <defaults>
</compile_context>

<pallas_src>
import functools

import jax
import jax.numpy as jnp
from jax.experimental import pallas as pl
from jax.experimental.pallas import tpu as pltpu


# ----------------------------------------------------------------------------
# helpers
# ----------------------------------------------------------------------------
def _round_up(x, m):
    return ((x + m - 1) // m) * m


def _pick_tile(dim, prefs):
    for p in prefs:
        if dim % p == 0:
            return p
    return dim


def _pad2d(a, rows, cols, dtype):
    r, c = a.shape
    a = a.astype(dtype)
    if (r, c) == (rows, cols):
        return a
    return jnp.zeros((rows, cols), dtype).at[:r, :c].set(a)


# ----------------------------------------------------------------------------
# Tiled matmul kernel with fused bias + activation epilogue.
#   C = act(A @ B + bias), bf16 MXU inputs, f32 accumulation.
# ----------------------------------------------------------------------------
def _matmul_bias_act_kernel(a_ref, b_ref, bias_ref, o_ref, acc_ref, *, act):
    @pl.when(pl.program_id(2) == 0)
    def _():
        acc_ref[...] = jnp.zeros_like(acc_ref)

    acc_ref[...] += jnp.dot(a_ref[...], b_ref[...],
                            preferred_element_type=jnp.float32)

    @pl.when(pl.program_id(2) == pl.num_programs(2) - 1)
    def _():
        r = acc_ref[...] + bias_ref[...]                 # [tm,tn] + [1,tn]
        if act == "relu":
            r = jnp.maximum(r, 0.0)
        o_ref[...] = r.astype(o_ref.dtype)


def fused_matmul(a, b, bias=None, act="none", out_dtype=jnp.bfloat16):
    """Inputs must already be padded to multiples of 128 (done once, outside)."""
    M, K = a.shape
    K2, N = b.shape
    assert K == K2 and M % 128 == 0 and K % 128 == 0 and N % 128 == 0
    tm = _pick_tile(M, (256, 128))
    tn = _pick_tile(N, (256, 128))
    tk = _pick_tile(K, (512, 256, 128))
    if bias is None:
        bias = jnp.zeros((1, N), jnp.float32)
    else:
        bias = bias.reshape(1, N).astype(jnp.float32)
    return pl.pallas_call(
        functools.partial(_matmul_bias_act_kernel, act=act),
        out_shape=jax.ShapeDtypeStruct((M, N), out_dtype),
        grid_spec=pltpu.PrefetchScalarGridSpec(
            num_scalar_prefetch=0,
            grid=(M // tm, N // tn, K // tk),
            in_specs=[pl.BlockSpec((tm, tk), lambda i, j, k: (i, k)),
                      pl.BlockSpec((tk, tn), lambda i, j, k: (k, j)),
                      pl.BlockSpec((1, tn), lambda i, j, k: (0, j))],
            out_specs=pl.BlockSpec((tm, tn), lambda i, j, k: (i, j)),
            scratch_shapes=[pltpu.VMEM((tm, tn), jnp.float32)]),
        compiler_params=pltpu.CompilerParams(
            dimension_semantics=("parallel", "parallel", "arbitrary")),
    )(a.astype(jnp.bfloat16), b.astype(jnp.bfloat16), bias)


# ----------------------------------------------------------------------------
# Tiled multi-head dense-GAT attention (flash-style online softmax).
#   e_ij   = LeakyReLU(src_i + dst_j)        (per head)
#   e_ij   = adj_ij > 0 ? e_ij : -9e15
#   attn   = softmax_j(e_ij)
#   out_i  = sum_j attn_ij * wh_j            (optionally ELU)
# Grid: (query tiles, key tiles); all heads handled per tile so the adjacency
# tile is read from HBM once per (qi, ki).
# ----------------------------------------------------------------------------
def _gat_attn_kernel(src_ref, dst_ref, adj_ref, whk_ref, o_ref,
                     m_sc, l_sc, acc_sc, *, alpha, apply_elu):
    ki = pl.program_id(1)

    @pl.when(ki == 0)
    def _():
        m_sc[...] = jnp.full_like(m_sc, -jnp.inf)
        l_sc[...] = jnp.zeros_like(l_sc)
        acc_sc[...] = jnp.zeros_like(acc_sc)

    e = src_ref[...] + dst_ref[...]                      # [H,tq,1]+[H,1,tk] -> [H,tq,tk]
    e = jnp.where(e > 0, e, alpha * e)                   # LeakyReLU(alpha)
    mask = adj_ref[...] > 0                              # [tq, tk]
    e = jnp.where(mask[None, :, :], e, jnp.float32(-9e15))

    m_new = jnp.maximum(m_sc[...], jnp.max(e, axis=-1, keepdims=True))  # [H,tq,1]
    corr = jnp.exp(m_sc[...] - m_new)
    p = jnp.exp(e - m_new)                               # [H,tq,tk]
    l_sc[...] = corr * l_sc[...] + jnp.sum(p, axis=-1, keepdims=True)
    acc_sc[...] = corr * acc_sc[...] + jnp.einsum(
        'hqk,hkf->hqf', p.astype(whk_ref.dtype), whk_ref[...],
        preferred_element_type=jnp.float32)
    m_sc[...] = m_new

    @pl.when(ki == pl.num_programs(1) - 1)
    def _():
        r = acc_sc[...] * pl.reciprocal(l_sc[...], approx=True)
        if apply_elu:
            r = jnp.where(r > 0, r, jnp.exp(jnp.minimum(r, 0.0)) - 1.0)
        o_ref[...] = r.astype(o_ref.dtype)


def gat_attention(whk, src, dst, adj_p, *, alpha, apply_elu, out_dtype):
    """whk: [H, Np, F] bf16; src: [H, Np, 1] f32; dst: [H, 1, Np] f32;
    adj_p: [Np, Np] (0/1, bf16)."""
    H, Np, F = whk.shape
    tq = _pick_tile(Np, (256, 128))
    tk = _pick_tile(Np, (512, 256, 128))
    return pl.pallas_call(
        functools.partial(_gat_attn_kernel, alpha=alpha, apply_elu=apply_elu),
        out_shape=jax.ShapeDtypeStruct((H, Np, F), out_dtype),
        grid_spec=pltpu.PrefetchScalarGridSpec(
            num_scalar_prefetch=0,
            grid=(Np // tq, Np // tk),
            in_specs=[
                pl.BlockSpec((H, tq, 1), lambda qi, ki: (0, qi, 0)),   # src
                pl.BlockSpec((H, 1, tk), lambda qi, ki: (0, 0, ki)),   # dst
                pl.BlockSpec((tq, tk), lambda qi, ki: (qi, ki)),       # adj
                pl.BlockSpec((H, tk, F), lambda qi, ki: (0, ki, 0)),   # wh (values)
            ],
            out_specs=pl.BlockSpec((H, tq, F), lambda qi, ki: (0, qi, 0)),
            scratch_shapes=[pltpu.VMEM((H, tq, 1), jnp.float32),
                            pltpu.VMEM((H, tq, 1), jnp.float32),
                            pltpu.VMEM((H, tq, F), jnp.float32)]),
        compiler_params=pltpu.CompilerParams(
            dimension_semantics=("parallel", "arbitrary")),
    )(src.astype(jnp.float32), dst.astype(jnp.float32), adj_p, whk)


# ----------------------------------------------------------------------------
# Model pieces (glue: parameter padding, head batching, concat)
# ----------------------------------------------------------------------------
def gat_layer(h_p, adj_p, W, a_src, a_dst, *, alpha, apply_elu, out_f32=False):
    """Dense multi-head GAT.  h_p: [Np, Fin_p] (padded);  W: [H, Fin, Fout]."""
    Np, Fin_p = h_p.shape
    H, Fin, Fout = W.shape
    HF = H * Fout

    # Fuse the attention-score projections into the batched head matmul by
    # appending 2*H extra columns: col[h]      = W[h] @ a_src[h]
    #                              col[H + h]  = W[h] @ a_dst[h]
    w_src = jnp.einsum('hif,hf->ih', W, a_src)                   # [Fin, H]
    w_dst = jnp.einsum('hif,hf->ih', W, a_dst)                   # [Fin, H]
    W_stacked = jnp.concatenate(
        [jnp.transpose(W, (1, 0, 2)).reshape(Fin, HF), w_src, w_dst], axis=1)
    ncols = HF + 2 * H
    ncols_p = _round_up(ncols, 128)
    W_p = _pad2d(W_stacked, Fin_p, ncols_p, jnp.bfloat16)

    wh_all = fused_matmul(h_p, W_p)                              # [Np, ncols_p] bf16
    wh3 = wh_all[:, :HF].reshape(Np, H, Fout)                    # [Np, H, Fout]
    src = jnp.transpose(wh_all[:, HF:HF + H]).astype(jnp.float32)[:, :, None]        # [H, Np, 1]
    dst = jnp.transpose(wh_all[:, HF + H:HF + 2 * H]).astype(jnp.float32)[:, None, :]  # [H, 1, Np]
    whk = jnp.transpose(wh3, (1, 0, 2))                          # [H, Np, Fout]

    out = gat_attention(whk, src, dst, adj_p, alpha=alpha, apply_elu=apply_elu,
                        out_dtype=jnp.float32 if out_f32 else jnp.bfloat16)
    # concat heads along the feature dim
    return jnp.transpose(out, (1, 0, 2)).reshape(Np, HF)


def model_forward(params, x, adj, adj_e, M_guanlian, adj_location, *,
                  leaky_alpha=0.2):
    del adj_location  # unused in the ifPubmed == True branch
    N, nfeat = x.shape
    nedge = params["W0"].shape[1]
    nhid = params["W1"].shape[1]

    # ---- one-time padding of the large operands (no re-padding in hot path) --
    Np = 128 if N <= 128 else _round_up(N, 256)
    Fp_feat = _round_up(nfeat, 128)
    Fp_edge = _round_up(nedge, 128)
    Fp_hid = _round_up(nhid, 128)

    x_p = _pad2d(x, Np, Fp_feat, jnp.bfloat16)
    M_p = _pad2d(M_guanlian, Np, Np, jnp.bfloat16)
    adje_p = _pad2d(adj_e, Np, Np, jnp.bfloat16)
    adj_p = _pad2d(adj, Np, Np, jnp.bfloat16)

    W0_p = _pad2d(params["W0"], Fp_feat, Fp_edge, jnp.bfloat16)
    b0_p = jnp.zeros((1, Fp_edge), jnp.float32).at[0, :nedge].set(params["b0"])
    W1_p = _pad2d(params["W1"], Fp_edge, Fp_hid, jnp.bfloat16)
    b1_p = jnp.zeros((1, Fp_hid), jnp.float32).at[0, :nhid].set(params["b1"])

    # egc0: z0 = M @ (x @ W0) + b0
    t0 = fused_matmul(x_p, W0_p)
    z0 = fused_matmul(M_p, t0, bias=b0_p)
    # egc1 + relu: z1 = relu(adj_e @ (z0 @ W1) + b1)   (bias+ReLU fused in epilogue)
    t1 = fused_matmul(z0, W1_p)
    z1 = fused_matmul(adje_p, t1, bias=b1_p, act="relu")
    # x1 = M @ z1
    x1 = fused_matmul(M_p, z1)                           # [Np, Fp_hid]

    # h0 = cat((x, x1), 1); dropout is identity in eval mode
    Fin1 = nfeat + nhid
    Fin1_p = _round_up(Fin1, 128)
    h0_p = jnp.zeros((Np, Fin1_p), jnp.bfloat16)
    h0_p = h0_p.at[:, :nfeat].set(x_p[:, :nfeat])
    h0_p = h0_p.at[:, nfeat:Fin1].set(x1[:, :nhid])

    # gat: multi-head, concat + ELU (ELU fused in kernel epilogue)
    h1 = gat_layer(h0_p, adj_p, params["gat_W"], params["gat_asrc"],
                   params["gat_adst"], alpha=leaky_alpha, apply_elu=True)
    H1F = h1.shape[1]
    h1_p = jnp.zeros((Np, _round_up(H1F, 128)), jnp.bfloat16).at[:, :H1F].set(h1)

    # gat2: single head, no activation
    h2 = gat_layer(h1_p, adj_p, params["gat2_W"], params["gat2_asrc"],
                   params["gat2_adst"], alpha=leaky_alpha, apply_elu=False,
                   out_f32=True)

    logits = h2[:N, :].astype(jnp.float32)
    # final log_softmax over nclass (tiny) is left to XLA.
    return jax.nn.log_softmax(logits, axis=1)


def init_params(key, nfeat, nhid, nclass, nheads, nedge):
    ks = jax.random.split(key, 8)
    s = 0.1
    return {
        "W0": s * jax.random.normal(ks[0], (nfeat, nedge), jnp.float32),
        "b0": jnp.zeros((nedge,), jnp.float32),
        "W1": s * jax.random.normal(ks[1], (nedge, nhid), jnp.float32),
        "b1": jnp.zeros((nhid,), jnp.float32),
        "gat_W": s * jax.random.normal(ks[2], (nheads, nfeat + nhid, nhid), jnp.float32),
        "gat_asrc": s * jax.random.normal(ks[3], (nheads, nhid), jnp.float32),
        "gat_adst": s * jax.random.normal(ks[4], (nheads, nhid), jnp.float32),
        "gat2_W": s * jax.random.normal(ks[5], (1, nhid * nheads, nclass), jnp.float32),
        "gat2_asrc": s * jax.random.normal(ks[6], (1, nclass), jnp.float32),
        "gat2_adst": s * jax.random.normal(ks[7], (1, nclass), jnp.float32),
    }


# ----------------------------------------------------------------------------
# Pure-JAX f32 reference of the same math (for correctness check)
# ----------------------------------------------------------------------------
def reference_forward(params, x, adj, adj_e, M, alpha=0.2):
    def gcn(h, A, W, b):
        return A @ (h @ W) + b[None, :]

    z0 = gcn(x, M, params["W0"], params["b0"])
    z1 = jax.nn.relu(gcn(z0, adj_e, params["W1"], params["b1"]))
    x1 = M @ z1
    h0 = jnp.concatenate([x, x1], axis=1)

    def gat(h, A, W, a_s, a_d, elu):
        outs = []
        for k in range(W.shape[0]):
            wh = h @ W[k]
            e = (wh @ a_s[k][:, None]) + (wh @ a_d[k][:, None]).T
            e = jnp.where(e > 0, e, alpha * e)
            e = jnp.where(A > 0, e, -9e15)
            attn = jax.nn.softmax(e, axis=1)
            outs.append(attn @ wh)
        o = jnp.concatenate(outs, axis=1)
        return jax.nn.elu(o) if elu else o

    h1 = gat(h0, adj, params["gat_W"], params["gat_asrc"], params["gat_adst"], True)
    h2 = gat(h1, adj, params["gat2_W"], params["gat2_asrc"], params["gat2_adst"], False)
    return jax.nn.log_softmax(h2, axis=1)


if __name__ == "__main__":
    # Small, forward-consistent shapes
    N, nfeat, nhid, nclass, nheads, nedge = 16, 16, 8, 4, 2, 8

    key = jax.random.PRNGKey(0)
    k_x, k_adj, k_adje, k_m, k_p = jax.random.split(key, 5)

    x = jax.random.normal(k_x, (N, nfeat), jnp.float32)
    # adjacency with self-loops so every row has at least one neighbor
    adj = (jax.random.uniform(k_adj, (N, N)) > 0.7).astype(jnp.float32) + jnp.eye(N)
    adj = jnp.clip(adj, 0.0, 1.0)
    adj_e = (jax.random.uniform(k_adje, (N, N)) > 0.7).astype(jnp.float32) + jnp.eye(N)
    adj_e = jnp.clip(adj_e, 0.0, 1.0)
    M_guanlian = jax.random.normal(k_m, (N, N), jnp.float32) * 0.1
    adj_location = jnp.zeros((N, N), jnp.float32)  # unused in executed branch

    params = init_params(k_p, nfeat, nhid, nclass, nheads, nedge)

    fwd = jax.jit(model_forward)
    out = fwd(params, x, adj, adj_e, M_guanlian, adj_location)
    out = jax.block_until_ready(out)

    assert out.shape == (N, nclass)
    assert bool(jnp.all(jnp.isfinite(out)))
    # rows of log_softmax must sum (in prob space) to 1
    assert bool(jnp.allclose(jnp.sum(jnp.exp(out), axis=1), 1.0, atol=1e-3))
    # compare against f32 pure-JAX reference (bf16 MXU inputs -> loose tolerance)
    ref = reference_forward(params, x, adj, adj_e, M_guanlian)
    max_err = float(jnp.max(jnp.abs(out - ref)))
    assert max_err < 0.2, f"max abs error vs f32 reference: {max_err}"
    print("KERNEL_OK")
</pallas_src>

<mosaic_0001>
module attributes {stable_mosaic.version = 11 : i64} {
  func.func @_matmul_bias_act_kernel(%arg0: i32, %arg1: i32, %arg2: i32, %arg3: memref<128x128xbf16, #tpu.memory_space<vmem>>, %arg4: memref<128x128xbf16, #tpu.memory_space<vmem>>, %arg5: memref<1x128xf32, #tpu.memory_space<vmem>>, %arg6: memref<128x128xbf16, #tpu.memory_space<vmem>>, %arg7: memref<128x128xf32, #tpu.memory_space<vmem>>) attributes {dimension_semantics = [#tpu.dimension_semantics<parallel>, #tpu.dimension_semantics<parallel>, #tpu.dimension_semantics<arbitrary>], iteration_bounds = array<i64: 1, 1, 1>, scalar_prefetch = 0 : i64, scratch_operands = 1 : i64, tpu.core_type = #tpu.core_type<tc>, window_params = [{transform_indices = @transform_0, window_bounds = array<i64: 128, 128>}, {transform_indices = @transform_1, window_bounds = array<i64: 128, 128>}, {transform_indices = @transform_2, window_bounds = array<i64: 1, 128>}, {transform_indices = @transform_3, window_bounds = array<i64: 128, 128>}]} {
    %c0_i32 = arith.constant 0 : i32
    %0 = arith.cmpi eq, %arg2, %c0_i32 : i32
    %1 = arith.extui %0 : i1 to i32
    %c0_i32_0 = arith.constant 0 : i32
    %2 = arith.cmpi ne, %1, %c0_i32_0 : i32
    scf.if %2 {
      %cst_10 = arith.constant 0.000000e+00 : f32
      %12 = vector.broadcast %cst_10 : f32 to vector<128x128xf32>
      %c0_11 = arith.constant 0 : index
      %c0_12 = arith.constant 0 : index
      %13 = vector.load %arg7[%c0_11, %c0_12] : memref<128x128xf32, #tpu.memory_space<vmem>>, vector<128x128xf32>
      tpu.vector_store %arg7[%c0_11, %c0_12], %12 {strides = array<i32>} : memref<128x128xf32, #tpu.memory_space<vmem>>, vector<128x128xf32>,
    } else {
    }
    %c0 = arith.constant 0 : index
    %c0_1 = arith.constant 0 : index
    %3 = vector.load %arg7[%c0, %c0_1] : memref<128x128xf32, #tpu.memory_space<vmem>>, vector<128x128xf32>
    %c0_2 = arith.constant 0 : index
    %c0_3 = arith.constant 0 : index
    %4 = vector.load %arg3[%c0_2, %c0_3] : memref<128x128xbf16, #tpu.memory_space<vmem>>, vector<128x128xbf16>
    %c0_4 = arith.constant 0 : index
    %c0_5 = arith.constant 0 : index
    %5 = vector.load %arg4[%c0_4, %c0_5] : memref<128x128xbf16, #tpu.memory_space<vmem>>, vector<128x128xbf16>
    %cst = arith.constant dense<0.000000e+00> : vector<128x128xf32>
    %6 = tpu.matmul %4, %5, %cst {dimension_numbers = #tpu.dot_dimension_numbers<[1], [0], [0], [1], [0, 0, 1, 1], [], []>} : vector<128x128xbf16>, vector<128x128xbf16>, vector<128x128xf32> -> vector<128x128xf32>
    %7 = arith.addf %3, %6 : vector<128x128xf32>
    %c0_6 = arith.constant 0 : index
    %c0_7 = arith.constant 0 : index
    %8 = vector.load %arg7[%c0_6, %c0_7] : memref<128x128xf32, #tpu.memory_space<vmem>>, vector<128x128xf32>
    tpu.vector_store %arg7[%c0_6, %c0_7], %7 {strides = array<i32>} : memref<128x128xf32, #tpu.memory_space<vmem>>, vector<128x128xf32>,
    %c0_i32_8 = arith.constant 0 : i32
    %9 = arith.cmpi eq, %arg2, %c0_i32_8 : i32
    %10 = arith.extui %9 : i1 to i32
    %c0_i32_9 = arith.constant 0 : i32
    %11 = arith.cmpi ne, %10, %c0_i32_9 : i32
    scf.if %11 {
      %c0_10 = arith.constant 0 : index
      %c0_11 = arith.constant 0 : index
      %12 = vector.load %arg7[%c0_10, %c0_11] : memref<128x128xf32, #tpu.memory_space<vmem>>, vector<128x128xf32>
      %c0_12 = arith.constant 0 : index
      %c0_13 = arith.constant 0 : index
      %13 = vector.load %arg5[%c0_12, %c0_13] : memref<1x128xf32, #tpu.memory_space<vmem>>, vector<1x128xf32>
      %14 = vector.broadcast %13 : vector<1x128xf32> to vector<128x128xf32>
      %15 = arith.addf %12, %14 : vector<128x128xf32>
      %16 = arith.truncf %15 : vector<128x128xf32> to vector<128x128xbf16>
      %c0_14 = arith.constant 0 : index
      %c0_15 = arith.constant 0 : index
      %17 = vector.load %arg6[%c0_14, %c0_15] : memref<128x128xbf16, #tpu.memory_space<vmem>>, vector<128x128xbf16>
      tpu.vector_store %arg6[%c0_14, %c0_15], %16 {strides = array<i32>} : memref<128x128xbf16, #tpu.memory_space<vmem>>, vector<128x128xbf16>,
    } else {
    }
    return
  }
  func.func @transform_0(%arg0: i32, %arg1: i32, %arg2: i32) -> (i32, i32) {
    %c0_i32 = arith.constant 0 : i32
    return %arg0, %arg2 : i32, i32
  }
  func.func @transform_1(%arg0: i32, %arg1: i32, %arg2: i32) -> (i32, i32) {
    %c0_i32 = arith.constant 0 : i32
    return %arg2, %arg1 : i32, i32
  }
  func.func @transform_2(%arg0: i32, %arg1: i32, %arg2: i32) -> (i32, i32) {
    %c0_i32 = arith.constant 0 : i32
    %c0_i32_0 = arith.constant 0 : i32
    return %c0_i32, %arg1 : i32, i32
  }
  func.func @transform_3(%arg0: i32, %arg1: i32, %arg2: i32) -> (i32, i32) {
    %c0_i32 = arith.constant 0 : i32
    return %arg0, %arg1 : i32, i32
  }
}

module attributes {stable_mosaic.version = 11 : i64} {
  func.func @_matmul_bias_act_kernel(%arg0: i32, %arg1: i32, %arg2: i32, %arg3: memref<128x128xbf16, #tpu.memory_space<vmem>>, %arg4: memref<128x128xbf16, #tpu.memory_space<vmem>>, %arg5: memref<1x128xf32, #tpu.memory_space<vmem>>, %arg6: memref<128x128xbf16, #tpu.memory_space<vmem>>, %arg7: memref<128x128xf32, #tpu.memory_space<vmem>>) attributes {dimension_semantics = [#tpu.dimension_semantics<parallel>, #tpu.dimension_semantics<parallel>, #tpu.dimension_semantics<arbitrary>], iteration_bounds = array<i64: 1, 1, 1>, scalar_prefetch = 0 : i64, scratch_operands = 1 : i64, tpu.core_type = #tpu.core_type<tc>, window_params = [{transform_indices = @transform_0, window_bounds = array<i64: 128, 128>}, {transform_indices = @transform_1, window_bounds = array<i64: 128, 128>}, {transform_indices = @transform_2, window_bounds = array<i64: 1, 128>}, {transform_indices = @transform_3, window_bounds = array<i64: 128, 128>}]} {
    %c0_i32 = arith.constant 0 : i32
    %0 = arith.cmpi eq, %arg2, %c0_i32 : i32
    %1 = arith.extui %0 : i1 to i32
    %c0_i32_0 = arith.constant 0 : i32
    %2 = arith.cmpi ne, %1, %c0_i32_0 : i32
    scf.if %2 {
      %cst_10 = arith.constant 0.000000e+00 : f32
      %12 = vector.broadcast %cst_10 : f32 to vector<128x128xf32>
      %c0_11 = arith.constant 0 : index
      %c0_12 = arith.constant 0 : index
      %13 = vector.load %arg7[%c0_11, %c0_12] : memref<128x128xf32, #tpu.memory_space<vmem>>, vector<128x128xf32>
      tpu.vector_store %arg7[%c0_11, %c0_12], %12 {strides = array<i32>} : memref<128x128xf32, #tpu.memory_space<vmem>>, vector<128x128xf32>,
    } else {
    }
    %c0 = arith.constant 0 : index
    %c0_1 = arith.constant 0 : index
    %3 = vector.load %arg7[%c0, %c0_1] : memref<128x128xf32, #tpu.memory_space<vmem>>, vector<128x128xf32>
    %c0_2 = arith.constant 0 : index
    %c0_3 = arith.constant 0 : index
    %4 = vector.load %arg3[%c0_2, %c0_3] : memref<128x128xbf16, #tpu.memory_space<vmem>>, vector<128x128xbf16>
    %c0_4 = arith.constant 0 : index
    %c0_5 = arith.constant 0 : index
    %5 = vector.load %arg4[%c0_4, %c0_5] : memref<128x128xbf16, #tpu.memory_space<vmem>>, vector<128x128xbf16>
    %cst = arith.constant dense<0.000000e+00> : vector<128x128xf32>
    %6 = tpu.matmul %4, %5, %cst {dimension_numbers = #tpu.dot_dimension_numbers<[1], [0], [0], [1], [0, 0, 1, 1], [], []>} : vector<128x128xbf16>, vector<128x128xbf16>, vector<128x128xf32> -> vector<128x128xf32>
    %7 = arith.addf %3, %6 : vector<128x128xf32>
    %c0_6 = arith.constant 0 : index
    %c0_7 = arith.constant 0 : index
    %8 = vector.load %arg7[%c0_6, %c0_7] : memref<128x128xf32, #tpu.memory_space<vmem>>, vector<128x128xf32>
    tpu.vector_store %arg7[%c0_6, %c0_7], %7 {strides = array<i32>} : memref<128x128xf32, #tpu.memory_space<vmem>>, vector<128x128xf32>,
    %c0_i32_8 = arith.constant 0 : i32
    %9 = arith.cmpi eq, %arg2, %c0_i32_8 : i32
    %10 = arith.extui %9 : i1 to i32
    %c0_i32_9 = arith.constant 0 : i32
    %11 = arith.cmpi ne, %10, %c0_i32_9 : i32
    scf.if %11 {
      %c0_10 = arith.constant 0 : index
      %c0_11 = arith.constant 0 : index
      %12 = vector.load %arg7[%c0_10, %c0_11] : memref<128x128xf32, #tpu.memory_space<vmem>>, vector<128x128xf32>
      %c0_12 = arith.constant 0 : index
      %c0_13 = arith.constant 0 : index
      %13 = vector.load %arg5[%c0_12, %c0_13] : memref<1x128xf32, #tpu.memory_space<vmem>>, vector<1x128xf32>
      %14 = vector.broadcast %13 : vector<1x128xf32> to vector<128x128xf32>
      %15 = arith.addf %12, %14 : vector<128x128xf32>
      %cst_14 = arith.constant 0.000000e+00 : f32
      %16 = vector.broadcast %cst_14 : f32 to vector<128x128xf32>
      %17 = arith.maximumf %15, %16 : vector<128x128xf32>
      %18 = arith.truncf %17 : vector<128x128xf32> to vector<128x128xbf16>
      %c0_15 = arith.constant 0 : index
      %c0_16 = arith.constant 0 : index
      %19 = vector.load %arg6[%c0_15, %c0_16] : memref<128x128xbf16, #tpu.memory_space<vmem>>, vector<128x128xbf16>
      tpu.vector_store %arg6[%c0_15, %c0_16], %18 {strides = array<i32>} : memref<128x128xbf16, #tpu.memory_space<vmem>>, vector<128x128xbf16>,
    } else {
    }
    return
  }
  func.func @transform_0(%arg0: i32, %arg1: i32, %arg2: i32) -> (i32, i32) {
    %c0_i32 = arith.constant 0 : i32
    return %arg0, %arg2 : i32, i32
  }
  func.func @transform_1(%arg0: i32, %arg1: i32, %arg2: i32) -> (i32, i32) {
    %c0_i32 = arith.constant 0 : i32
    return %arg2, %arg1 : i32, i32
  }
  func.func @transform_2(%arg0: i32, %arg1: i32, %arg2: i32) -> (i32, i32) {
    %c0_i32 = arith.constant 0 : i32
    %c0_i32_0 = arith.constant 0 : i32
    return %c0_i32, %arg1 : i32, i32
  }
  func.func @transform_3(%arg0: i32, %arg1: i32, %arg2: i32) -> (i32, i32) {
    %c0_i32 = arith.constant 0 : i32
    return %arg0, %arg1 : i32, i32
  }
}

module attributes {stable_mosaic.version = 11 : i64} {
  func.func @_gat_attn_kernel(%arg0: i32, %arg1: i32, %arg2: memref<2x128x1xf32, #tpu.memory_space<vmem>>, %arg3: memref<2x1x128xf32, #tpu.memory_space<vmem>>, %arg4: memref<128x128xbf16, #tpu.memory_space<vmem>>, %arg5: memref<2x128x8xbf16, #tpu.memory_space<vmem>>, %arg6: memref<2x128x8xbf16, #tpu.memory_space<vmem>>, %arg7: memref<2x128x1xf32, #tpu.memory_space<vmem>>, %arg8: memref<2x128x1xf32, #tpu.memory_space<vmem>>, %arg9: memref<2x128x8xf32, #tpu.memory_space<vmem>>) attributes {dimension_semantics = [#tpu.dimension_semantics<parallel>, #tpu.dimension_semantics<arbitrary>], iteration_bounds = array<i64: 1, 1>, scalar_prefetch = 0 : i64, scratch_operands = 3 : i64, tpu.core_type = #tpu.core_type<tc>, window_params = [{transform_indices = @transform_0, window_bounds = array<i64: 2, 128, 1>}, {transform_indices = @transform_1, window_bounds = array<i64: 2, 1, 128>}, {transform_indices = @transform_2, window_bounds = array<i64: 128, 128>}, {transform_indices = @transform_3, window_bounds = array<i64: 2, 128, 8>}, {transform_indices = @transform_4, window_bounds = array<i64: 2, 128, 8>}]} {
    %c0_i32 = arith.constant 0 : i32
    %0 = arith.cmpi eq, %arg1, %c0_i32 : i32
    %1 = arith.extui %0 : i1 to i32
    %c0_i32_0 = arith.constant 0 : i32
    %2 = arith.cmpi ne, %1, %c0_i32_0 : i32
    scf.if %2 {
      %cst_40 = arith.constant 0xFF800000 : f32
      %49 = vector.broadcast %cst_40 : f32 to vector<2x128x1xf32>
      %c0_41 = arith.constant 0 : index
      %c0_42 = arith.constant 0 : index
      %c0_43 = arith.constant 0 : index
      %50 = vector.load %arg7[%c0_41, %c0_42, %c0_43] : memref<2x128x1xf32, #tpu.memory_space<vmem>>, vector<2x128x1xf32>
      tpu.vector_store %arg7[%c0_41, %c0_42, %c0_43], %49 {strides = array<i32>} : memref<2x128x1xf32, #tpu.memory_space<vmem>>, vector<2x128x1xf32>,
      %cst_44 = arith.constant 0.000000e+00 : f32
      %51 = vector.broadcast %cst_44 : f32 to vector<2x128x1xf32>
      %c0_45 = arith.constant 0 : index
      %c0_46 = arith.constant 0 : index
      %c0_47 = arith.constant 0 : index
      %52 = vector.load %arg8[%c0_45, %c0_46, %c0_47] : memref<2x128x1xf32, #tpu.memory_space<vmem>>, vector<2x128x1xf32>
      tpu.vector_store %arg8[%c0_45, %c0_46, %c0_47], %51 {strides = array<i32>} : memref<2x128x1xf32, #tpu.memory_space<vmem>>, vector<2x128x1xf32>,
      %cst_48 = arith.constant 0.000000e+00 : f32
      %53 = vector.broadcast %cst_48 : f32 to vector<2x128x8xf32>
      %c0_49 = arith.constant 0 : index
      %c0_50 = arith.constant 0 : index
      %c0_51 = arith.constant 0 : index
      %54 = vector.load %arg9[%c0_49, %c0_50, %c0_51] : memref<2x128x8xf32, #tpu.memory_space<vmem>>, vector<2x128x8xf32>
      tpu.vector_store %arg9[%c0_49, %c0_50, %c0_51], %53 {strides = array<i32>} : memref<2x128x8xf32, #tpu.memory_space<vmem>>, vector<2x128x8xf32>,
    } else {
    }
    %c0 = arith.constant 0 : index
    %c0_1 = arith.constant 0 : index
    %c0_2 = arith.constant 0 : index
    %3 = vector.load %arg2[%c0, %c0_1, %c0_2] : memref<2x128x1xf32, #tpu.memory_space<vmem>>, vector<2x128x1xf32>
    %c0_3 = arith.constant 0 : index
    %c0_4 = arith.constant 0 : index
    %c0_5 = arith.constant 0 : index
    %4 = vector.load %arg3[%c0_3, %c0_4, %c0_5] : memref<2x1x128xf32, #tpu.memory_space<vmem>>, vector<2x1x128xf32>
    %5 = vector.broadcast %3 : vector<2x128x1xf32> to vector<2x128x128xf32>
    %6 = vector.broadcast %4 : vector<2x1x128xf32> to vector<2x128x128xf32>
    %7 = arith.addf %5, %6 : vector<2x128x128xf32>
    %cst = arith.constant 0.000000e+00 : f32
    %8 = vector.broadcast %cst : f32 to vector<2x128x128xf32>
    %9 = arith.cmpf ogt, %7, %8 : vector<2x128x128xf32>
    %cst_6 = arith.constant 2.000000e-01 : f32
    %10 = vector.broadcast %cst_6 : f32 to vector<2x128x128xf32>
    %11 = arith.mulf %10, %7 : vector<2x128x128xf32>
    %12 = arith.select %9, %7, %11 : vector<2x128x128xi1>, vector<2x128x128xf32>
    %c0_7 = arith.constant 0 : index
    %c0_8 = arith.constant 0 : index
    %13 = vector.load %arg4[%c0_7, %c0_8] : memref<128x128xbf16, #tpu.memory_space<vmem>>, vector<128x128xbf16>
    %cst_9 = arith.constant 0.000000e+00 : bf16
    %14 = vector.broadcast %cst_9 : bf16 to vector<128x128xbf16>
    %15 = arith.cmpf ogt, %13, %14 : vector<128x128xbf16>
    %16 = vector.shape_cast %15 : vector<128x128xi1> to vector<1x128x128xi1>
    %cst_10 = arith.constant -9.000000e+15 : f32
    %17 = vector.shape_cast %16 : vector<1x128x128xi1> to vector<1x128x128xi1>
    %18 = vector.broadcast %17 : vector<1x128x128xi1> to vector<2x128x128xi1>
    %19 = vector.broadcast %cst_10 : f32 to vector<2x128x128xf32>
    %20 = arith.select %18, %12, %19 : vector<2x128x128xi1>, vector<2x128x128xf32>
    %c0_11 = arith.constant 0 : index
    %c0_12 = arith.constant 0 : index
    %c0_13 = arith.constant 0 : index
    %21 = vector.load %arg7[%c0_11, %c0_12, %c0_13] : memref<2x128x1xf32, #tpu.memory_space<vmem>>, vector<2x128x1xf32>
    %cst_14 = arith.constant dense<0xFF800000> : vector<2x128xf32>
    %22 = vector.multi_reduction <maximumf>, %20, %cst_14 [2] : vector<2x128x128xf32> to vector<2x128xf32>
    %23 = vector.shape_cast %22 : vector<2x128xf32> to vector<2x128x1xf32>
    %24 = arith.maximumf %21, %23 : vector<2x128x1xf32>
    %c0_15 = arith.constant 0 : index
    %c0_16 = arith.constant 0 : index
    %c0_17 = arith.constant 0 : index
    %25 = vector.load %arg7[%c0_15, %c0_16, %c0_17] : memref<2x128x1xf32, #tpu.memory_space<vmem>>, vector<2x128x1xf32>
    %26 = arith.subf %25, %24 : vector<2x128x1xf32>
    %27 = math.exp %26 : vector<2x128x1xf32>
    %28 = vector.broadcast %24 : vector<2x128x1xf32> to vector<2x128x128xf32>
    %29 = arith.subf %20, %28 : vector<2x128x128xf32>
    %30 = math.exp %29 : vector<2x128x128xf32>
    %c0_18 = arith.constant 0 : index
    %c0_19 = arith.constant 0 : index
    %c0_20 = arith.constant 0 : index
    %31 = vector.load %arg8[%c0_18, %c0_19, %c0_20] : memref<2x128x1xf32, #tpu.memory_space<vmem>>, vector<2x128x1xf32>
    %32 = arith.mulf %27, %31 : vector<2x128x1xf32>
    %cst_21 = arith.constant dense<0.000000e+00> : vector<2x128xf32>
    %33 = vector.multi_reduction <add>, %30, %cst_21 [2] : vector<2x128x128xf32> to vector<2x128xf32>
    %34 = vector.shape_cast %33 : vector<2x128xf32> to vector<2x128x1xf32>
    %35 = arith.addf %32, %34 : vector<2x128x1xf32>
    %c0_22 = arith.constant 0 : index
    %c0_23 = arith.constant 0 : index
    %c0_24 = arith.constant 0 : index
    %36 = vector.load %arg8[%c0_22, %c0_23, %c0_24] : memref<2x128x1xf32, #tpu.memory_space<vmem>>, vector<2x128x1xf32>
    tpu.vector_store %arg8[%c0_22, %c0_23, %c0_24], %35 {strides = array<i32>} : memref<2x128x1xf32, #tpu.memory_space<vmem>>, vector<2x128x1xf32>,
    %c0_25 = arith.constant 0 : index
    %c0_26 = arith.constant 0 : index
    %c0_27 = arith.constant 0 : index
    %37 = vector.load %arg9[%c0_25, %c0_26, %c0_27] : memref<2x128x8xf32, #tpu.memory_space<vmem>>, vector<2x128x8xf32>
    %38 = vector.broadcast %27 : vector<2x128x1xf32> to vector<2x128x8xf32>
    %39 = arith.mulf %38, %37 : vector<2x128x8xf32>
    %40 = arith.truncf %30 : vector<2x128x128xf32> to vector<2x128x128xbf16>
    %c0_28 = arith.constant 0 : index
    %c0_29 = arith.constant 0 : index
    %c0_30 = arith.constant 0 : index
    %41 = vector.load %arg5[%c0_28, %c0_29, %c0_30] : memref<2x128x8xbf16, #tpu.memory_space<vmem>>, vector<2x128x8xbf16>
    "tpu.trace_start"() <{level = 10 : i32, message = "hqk,hkf->hqf"}> : () -> ()
    %cst_31 = arith.constant dense<0.000000e+00> : vector<2x128x8xf32>
    %42 = tpu.matmul %40, %41, %cst_31 {dimension_numbers = #tpu.dot_dimension_numbers<[2], [1], [1], [2], [0, 0, 0, 1, 1, 2], [0], [0]>} : vector<2x128x128xbf16>, vector<2x128x8xbf16>, vector<2x128x8xf32> -> vector<2x128x8xf32>
    "tpu.trace_stop"() : () -> ()
    %43 = arith.addf %39, %42 : vector<2x128x8xf32>
    %c0_32 = arith.constant 0 : index
    %c0_33 = arith.constant 0 : index
    %c0_34 = arith.constant 0 : index
    %44 = vector.load %arg9[%c0_32, %c0_33, %c0_34] : memref<2x128x8xf32, #tpu.memory_space<vmem>>, vector<2x128x8xf32>
    tpu.vector_store %arg9[%c0_32, %c0_33, %c0_34], %43 {strides = array<i32>} : memref<2x128x8xf32, #tpu.memory_space<vmem>>, vector<2x128x8xf32>,
    %c0_35 = arith.constant 0 : index
    %c0_36 = arith.constant 0 : index
    %c0_37 = arith.constant 0 : index
    %45 = vector.load %arg7[%c0_35, %c0_36, %c0_37] : memref<2x128x1xf32, #tpu.memory_space<vmem>>, vector<2x128x1xf32>
    tpu.vector_store %arg7[%c0_35, %c0_36, %c0_37], %24 {strides = array<i32>} : memref<2x128x1xf32, #tpu.memory_space<vmem>>, vector<2x128x1xf32>,
    %c0_i32_38 = arith.constant 0 : i32
    %46 = arith.cmpi eq, %arg1, %c0_i32_38 : i32
    %47 = arith.extui %46 : i1 to i32
    %c0_i32_39 = arith.constant 0 : i32
    %48 = arith.cmpi ne, %47, %c0_i32_39 : i32
    scf.if %48 {
      %c0_40 = arith.constant 0 : index
      %c0_41 = arith.constant 0 : index
      %c0_42 = arith.constant 0 : index
      %49 = vector.load %arg9[%c0_40, %c0_41, %c0_42] : memref<2x128x8xf32, #tpu.memory_space<vmem>>, vector<2x128x8xf32>
      %c0_43 = arith.constant 0 : index
      %c0_44 = arith.constant 0 : index
      %c0_45 = arith.constant 0 : index
      %50 = vector.load %arg8[%c0_43, %c0_44, %c0_45] : memref<2x128x1xf32, #tpu.memory_space<vmem>>, vector<2x128x1xf32>
      %51 = tpu.reciprocal %50 {approx = true} : vector<2x128x1xf32> -> vector<2x128x1xf32>
      %52 = vector.broadcast %51 : vector<2x128x1xf32> to vector<2x128x8xf32>
      %53 = arith.mulf %49, %52 : vector<2x128x8xf32>
      %cst_46 = arith.constant 0.000000e+00 : f32
      %54 = vector.broadcast %cst_46 : f32 to vector<2x128x8xf32>
      %55 = arith.cmpf ogt, %53, %54 : vector<2x128x8xf32>
      %cst_47 = arith.constant 0.000000e+00 : f32
      %56 = vector.broadcast %cst_47 : f32 to vector<2x128x8xf32>
      %57 = arith.minimumf %53, %56 : vector<2x128x8xf32>
      %58 = math.exp %57 : vector<2x128x8xf32>
      %cst_48 = arith.constant 1.000000e+00 : f32
      %59 = vector.broadcast %cst_48 : f32 to vector<2x128x8xf32>
      %60 = arith.subf %58, %59 : vector<2x128x8xf32>
      %61 = arith.select %55, %53, %60 : vector<2x128x8xi1>, vector<2x128x8xf32>
      %62 = arith.truncf %61 : vector<2x128x8xf32> to vector<2x128x8xbf16>
      %c0_49 = arith.constant 0 : index
      %c0_50 = arith.constant 0 : index
      %c0_51 = arith.constant 0 : index
      %63 = vector.load %arg6[%c0_49, %c0_50, %c0_51] : memref<2x128x8xbf16, #tpu.memory_space<vmem>>, vector<2x128x8xbf16>
      tpu.vector_store %arg6[%c0_49, %c0_50, %c0_51], %62 {strides = array<i32>} : memref<2x128x8xbf16, #tpu.memory_space<vmem>>, vector<2x128x8xbf16>,
    } else {
    }
    return
  }
  func.func @transform_0(%arg0: i32, %arg1: i32) -> (i32, i32, i32) {
    %c0_i32 = arith.constant 0 : i32
    %c0_i32_0 = arith.constant 0 : i32
    %c0_i32_1 = arith.constant 0 : i32
    return %c0_i32, %arg0, %c0_i32_0 : i32, i32, i32
  }
  func.func @transform_1(%arg0: i32, %arg1: i32) -> (i32, i32, i32) {
    %c0_i32 = arith.constant 0 : i32
    %c0_i32_0 = arith.constant 0 : i32
    %c0_i32_1 = arith.constant 0 : i32
    return %c0_i32, %c0_i32_0, %arg1 : i32, i32, i32
  }
  func.func @transform_2(%arg0: i32, %arg1: i32) -> (i32, i32) {
    %c0_i32 = arith.constant 0 : i32
    return %arg0, %arg1 : i32, i32
  }
  func.func @transform_3(%arg0: i32, %arg1: i32) -> (i32, i32, i32) {
    %c0_i32 = arith.constant 0 : i32
    %c0_i32_0 = arith.constant 0 : i32
    %c0_i32_1 = arith.constant 0 : i32
    return %c0_i32, %arg1, %c0_i32_0 : i32, i32, i32
  }
  func.func @transform_4(%arg0: i32, %arg1: i32) -> (i32, i32, i32) {
    %c0_i32 = arith.constant 0 : i32
    %c0_i32_0 = arith.constant 0 : i32
    %c0_i32_1 = arith.constant 0 : i32
    return %c0_i32, %arg0, %c0_i32_0 : i32, i32, i32
  }
}

module attributes {stable_mosaic.version = 11 : i64} {
  func.func @_gat_attn_kernel(%arg0: i32, %arg1: i32, %arg2: memref<1x128x1xf32, #tpu.memory_space<vmem>>, %arg3: memref<1x1x128xf32, #tpu.memory_space<vmem>>, %arg4: memref<128x128xbf16, #tpu.memory_space<vmem>>, %arg5: memref<1x128x4xbf16, #tpu.memory_space<vmem>>, %arg6: memref<1x128x4xf32, #tpu.memory_space<vmem>>, %arg7: memref<1x128x1xf32, #tpu.memory_space<vmem>>, %arg8: memref<1x128x1xf32, #tpu.memory_space<vmem>>, %arg9: memref<1x128x4xf32, #tpu.memory_space<vmem>>) attributes {dimension_semantics = [#tpu.dimension_semantics<parallel>, #tpu.dimension_semantics<arbitrary>], iteration_bounds = array<i64: 1, 1>, scalar_prefetch = 0 : i64, scratch_operands = 3 : i64, tpu.core_type = #tpu.core_type<tc>, window_params = [{transform_indices = @transform_0, window_bounds = array<i64: 1, 128, 1>}, {transform_indices = @transform_1, window_bounds = array<i64: 1, 1, 128>}, {transform_indices = @transform_2, window_bounds = array<i64: 128, 128>}, {transform_indices = @transform_3, window_bounds = array<i64: 1, 128, 4>}, {transform_indices = @transform_4, window_bounds = array<i64: 1, 128, 4>}]} {
    %c0_i32 = arith.constant 0 : i32
    %0 = arith.cmpi eq, %arg1, %c0_i32 : i32
    %1 = arith.extui %0 : i1 to i32
    %c0_i32_0 = arith.constant 0 : i32
    %2 = arith.cmpi ne, %1, %c0_i32_0 : i32
    scf.if %2 {
      %cst_40 = arith.constant 0xFF800000 : f32
      %47 = vector.broadcast %cst_40 : f32 to vector<1x128x1xf32>
      %c0_41 = arith.constant 0 : index
      %c0_42 = arith.constant 0 : index
      %c0_43 = arith.constant 0 : index
      %48 = vector.load %arg7[%c0_41, %c0_42, %c0_43] : memref<1x128x1xf32, #tpu.memory_space<vmem>>, vector<1x128x1xf32>
      tpu.vector_store %arg7[%c0_41, %c0_42, %c0_43], %47 {strides = array<i32>} : memref<1x128x1xf32, #tpu.memory_space<vmem>>, vector<1x128x1xf32>,
      %cst_44 = arith.constant 0.000000e+00 : f32
      %49 = vector.broadcast %cst_44 : f32 to vector<1x128x1xf32>
      %c0_45 = arith.constant 0 : index
      %c0_46 = arith.constant 0 : index
      %c0_47 = arith.constant 0 : index
      %50 = vector.load %arg8[%c0_45, %c0_46, %c0_47] : memref<1x128x1xf32, #tpu.memory_space<vmem>>, vector<1x128x1xf32>
      tpu.vector_store %arg8[%c0_45, %c0_46, %c0_47], %49 {strides = array<i32>} : memref<1x128x1xf32, #tpu.memory_space<vmem>>, vector<1x128x1xf32>,
      %cst_48 = arith.constant 0.000000e+00 : f32
      %51 = vector.broadcast %cst_48 : f32 to vector<1x128x4xf32>
      %c0_49 = arith.constant 0 : index
      %c0_50 = arith.constant 0 : index
      %c0_51 = arith.constant 0 : index
      %52 = vector.load %arg9[%c0_49, %c0_50, %c0_51] : memref<1x128x4xf32, #tpu.memory_space<vmem>>, vector<1x128x4xf32>
      tpu.vector_store %arg9[%c0_49, %c0_50, %c0_51], %51 {strides = array<i32>} : memref<1x128x4xf32, #tpu.memory_space<vmem>>, vector<1x128x4xf32>,
    } else {
    }
    %c0 = arith.constant 0 : index
    %c0_1 = arith.constant 0 : index
    %c0_2 = arith.constant 0 : index
    %3 = vector.load %arg2[%c0, %c0_1, %c0_2] : memref<1x128x1xf32, #tpu.memory_space<vmem>>, vector<1x128x1xf32>
    %c0_3 = arith.constant 0 : index
    %c0_4 = arith.constant 0 : index
    %c0_5 = arith.constant 0 : index
    %4 = vector.load %arg3[%c0_3, %c0_4, %c0_5] : memref<1x1x128xf32, #tpu.memory_space<vmem>>, vector<1x1x128xf32>
    %5 = vector.broadcast %3 : vector<1x128x1xf32> to vector<1x128x128xf32>
    %6 = vector.broadcast %4 : vector<1x1x128xf32> to vector<1x128x128xf32>
    %7 = arith.addf %5, %6 : vector<1x128x128xf32>
    %cst = arith.constant 0.000000e+00 : f32
    %8 = vector.broadcast %cst : f32 to vector<1x128x128xf32>
    %9 = arith.cmpf ogt, %7, %8 : vector<1x128x128xf32>
    %cst_6 = arith.constant 2.000000e-01 : f32
    %10 = vector.broadcast %cst_6 : f32 to vector<1x128x128xf32>
    %11 = arith.mulf %10, %7 : vector<1x128x128xf32>
    %12 = arith.select %9, %7, %11 : vector<1x128x128xi1>, vector<1x128x128xf32>
    %c0_7 = arith.constant 0 : index
    %c0_8 = arith.constant 0 : index
    %13 = vector.load %arg4[%c0_7, %c0_8] : memref<128x128xbf16, #tpu.memory_space<vmem>>, vector<128x128xbf16>
    %cst_9 = arith.constant 0.000000e+00 : bf16
    %14 = vector.broadcast %cst_9 : bf16 to vector<128x128xbf16>
    %15 = arith.cmpf ogt, %13, %14 : vector<128x128xbf16>
    %16 = vector.shape_cast %15 : vector<128x128xi1> to vector<1x128x128xi1>
    %cst_10 = arith.constant -9.000000e+15 : f32
    %17 = vector.broadcast %cst_10 : f32 to vector<1x128x128xf32>
    %18 = arith.select %16, %12, %17 : vector<1x128x128xi1>, vector<1x128x128xf32>
    %c0_11 = arith.constant 0 : index
    %c0_12 = arith.constant 0 : index
    %c0_13 = arith.constant 0 : index
    %19 = vector.load %arg7[%c0_11, %c0_12, %c0_13] : memref<1x128x1xf32, #tpu.memory_space<vmem>>, vector<1x128x1xf32>
    %cst_14 = arith.constant dense<0xFF800000> : vector<1x128xf32>
    %20 = vector.multi_reduction <maximumf>, %18, %cst_14 [2] : vector<1x128x128xf32> to vector<1x128xf32>
    %21 = vector.shape_cast %20 : vector<1x128xf32> to vector<1x128x1xf32>
    %22 = arith.maximumf %19, %21 : vector<1x128x1xf32>
    %c0_15 = arith.constant 0 : index
    %c0_16 = arith.constant 0 : index
    %c0_17 = arith.constant 0 : index
    %23 = vector.load %arg7[%c0_15, %c0_16, %c0_17] : memref<1x128x1xf32, #tpu.memory_space<vmem>>, vector<1x128x1xf32>
    %24 = arith.subf %23, %22 : vector<1x128x1xf32>
    %25 = math.exp %24 : vector<1x128x1xf32>
    %26 = vector.broadcast %22 : vector<1x128x1xf32> to vector<1x128x128xf32>
    %27 = arith.subf %18, %26 : vector<1x128x128xf32>
    %28 = math.exp %27 : vector<1x128x128xf32>
    %c0_18 = arith.constant 0 : index
    %c0_19 = arith.constant 0 : index
    %c0_20 = arith.constant 0 : index
    %29 = vector.load %arg8[%c0_18, %c0_19, %c0_20] : memref<1x128x1xf32, #tpu.memory_space<vmem>>, vector<1x128x1xf32>
    %30 = arith.mulf %25, %29 : vector<1x128x1xf32>
    %cst_21 = arith.constant dense<0.000000e+00> : vector<1x128xf32>
    %31 = vector.multi_reduction <add>, %28, %cst_21 [2] : vector<1x128x128xf32> to vector<1x128xf32>
    %32 = vector.shape_cast %31 : vector<1x128xf32> to vector<1x128x1xf32>
    %33 = arith.addf %30, %32 : vector<1x128x1xf32>
    %c0_22 = arith.constant 0 : index
    %c0_23 = arith.constant 0 : index
    %c0_24 = arith.constant 0 : index
    %34 = vector.load %arg8[%c0_22, %c0_23, %c0_24] : memref<1x128x1xf32, #tpu.memory_space<vmem>>, vector<1x128x1xf32>
    tpu.vector_store %arg8[%c0_22, %c0_23, %c0_24], %33 {strides = array<i32>} : memref<1x128x1xf32, #tpu.memory_space<vmem>>, vector<1x128x1xf32>,
    %c0_25 = arith.constant 0 : index
    %c0_26 = arith.constant 0 : index
    %c0_27 = arith.constant 0 : index
    %35 = vector.load %arg9[%c0_25, %c0_26, %c0_27] : memref<1x128x4xf32, #tpu.memory_space<vmem>>, vector<1x128x4xf32>
    %36 = vector.broadcast %25 : vector<1x128x1xf32> to vector<1x128x4xf32>
    %37 = arith.mulf %36, %35 : vector<1x128x4xf32>
    %38 = arith.truncf %28 : vector<1x128x128xf32> to vector<1x128x128xbf16>
    %c0_28 = arith.constant 0 : index
    %c0_29 = arith.constant 0 : index
    %c0_30 = arith.constant 0 : index
    %39 = vector.load %arg5[%c0_28, %c0_29, %c0_30] : memref<1x128x4xbf16, #tpu.memory_space<vmem>>, vector<1x128x4xbf16>
    "tpu.trace_start"() <{level = 10 : i32, message = "hqk,hkf->hqf"}> : () -> ()
    %cst_31 = arith.constant dense<0.000000e+00> : vector<1x128x4xf32>
    %40 = tpu.matmul %38, %39, %cst_31 {dimension_numbers = #tpu.dot_dimension_numbers<[2], [1], [1], [2], [0, 0, 0, 1, 1, 2], [0], [0]>} : vector<1x128x128xbf16>, vector<1x128x4xbf16>, vector<1x128x4xf32> -> vector<1x128x4xf32>
    "tpu.trace_stop"() : () -> ()
    %41 = arith.addf %37, %40 : vector<1x128x4xf32>
    %c0_32 = arith.constant 0 : index
    %c0_33 = arith.constant 0 : index
    %c0_34 = arith.constant 0 : index
    %42 = vector.load %arg9[%c0_32, %c0_33, %c0_34] : memref<1x128x4xf32, #tpu.memory_space<vmem>>, vector<1x128x4xf32>
    tpu.vector_store %arg9[%c0_32, %c0_33, %c0_34], %41 {strides = array<i32>} : memref<1x128x4xf32, #tpu.memory_space<vmem>>, vector<1x128x4xf32>,
    %c0_35 = arith.constant 0 : index
    %c0_36 = arith.constant 0 : index
    %c0_37 = arith.constant 0 : index
    %43 = vector.load %arg7[%c0_35, %c0_36, %c0_37] : memref<1x128x1xf32, #tpu.memory_space<vmem>>, vector<1x128x1xf32>
    tpu.vector_store %arg7[%c0_35, %c0_36, %c0_37], %22 {strides = array<i32>} : memref<1x128x1xf32, #tpu.memory_space<vmem>>, vector<1x128x1xf32>,
    %c0_i32_38 = arith.constant 0 : i32
    %44 = arith.cmpi eq, %arg1, %c0_i32_38 : i32
    %45 = arith.extui %44 : i1 to i32
    %c0_i32_39 = arith.constant 0 : i32
    %46 = arith.cmpi ne, %45, %c0_i32_39 : i32
    scf.if %46 {
      %c0_40 = arith.constant 0 : index
      %c0_41 = arith.constant 0 : index
      %c0_42 = arith.constant 0 : index
      %47 = vector.load %arg9[%c0_40, %c0_41, %c0_42] : memref<1x128x4xf32, #tpu.memory_space<vmem>>, vector<1x128x4xf32>
      %c0_43 = arith.constant 0 : index
      %c0_44 = arith.constant 0 : index
      %c0_45 = arith.constant 0 : index
      %48 = vector.load %arg8[%c0_43, %c0_44, %c0_45] : memref<1x128x1xf32, #tpu.memory_space<vmem>>, vector<1x128x1xf32>
      %49 = tpu.reciprocal %48 {approx = true} : vector<1x128x1xf32> -> vector<1x128x1xf32>
      %50 = vector.broadcast %49 : vector<1x128x1xf32> to vector<1x128x4xf32>
      %51 = arith.mulf %47, %50 : vector<1x128x4xf32>
      %c0_46 = arith.constant 0 : index
      %c0_47 = arith.constant 0 : index
      %c0_48 = arith.constant 0 : index
      %52 = vector.load %arg6[%c0_46, %c0_47, %c0_48] : memref<1x128x4xf32, #tpu.memory_space<vmem>>, vector<1x128x4xf32>
      tpu.vector_store %arg6[%c0_46, %c0_47, %c0_48], %51 {strides = array<i32>} : memref<1x128x4xf32, #tpu.memory_space<vmem>>, vector<1x128x4xf32>,
    } else {
    }
    return
  }
  func.func @transform_0(%arg0: i32, %arg1: i32) -> (i32, i32, i32) {
    %c0_i32 = arith.constant 0 : i32
    %c0_i32_0 = arith.constant 0 : i32
    %c0_i32_1 = arith.constant 0 : i32
    return %c0_i32, %arg0, %c0_i32_0 : i32, i32, i32
  }
  func.func @transform_1(%arg0: i32, %arg1: i32) -> (i32, i32, i32) {
    %c0_i32 = arith.constant 0 : i32
    %c0_i32_0 = arith.constant 0 : i32
    %c0_i32_1 = arith.constant 0 : i32
    return %c0_i32, %c0_i32_0, %arg1 : i32, i32, i32
  }
  func.func @transform_2(%arg0: i32, %arg1: i32) -> (i32, i32) {
    %c0_i32 = arith.constant 0 : i32
    return %arg0, %arg1 : i32, i32
  }
  func.func @transform_3(%arg0: i32, %arg1: i32) -> (i32, i32, i32) {
    %c0_i32 = arith.constant 0 : i32
    %c0_i32_0 = arith.constant 0 : i32
    %c0_i32_1 = arith.constant 0 : i32
    return %c0_i32, %arg1, %c0_i32_0 : i32, i32, i32
  }
  func.func @transform_4(%arg0: i32, %arg1: i32) -> (i32, i32, i32) {
    %c0_i32 = arith.constant 0 : i32
    %c0_i32_0 = arith.constant 0 : i32
    %c0_i32_1 = arith.constant 0 : i32
    return %c0_i32, %arg0, %c0_i32_0 : i32, i32, i32
  }
}

</mosaic_0001>

<llo_original>
// kernel: model_forward.9
$region0: #{model_forward.9}
  #allocation0 [shape = 'u32[]', space=smem, size = 0x4, offset = 0x4, fixed_abs, tag = 'smem constant byte address 0x4 - core index']
  #allocation1 [shape = 'u32[72,128]{1,0:T(1,128)}', space=vmem, size = 0x9000, scoped, tag = 'internal scratch']
  #allocation2 [shape = 'f32[128,128]{1,0:T(8,128)}', space=vmem, size = 0x10000, scoped, tag = 'scratch operand']
  %s0 = inlined_call_operand.vmem [shape: bf16[128,128], index: 0, kind: input, shape index: {}]
  %s1 = inlined_call_operand.vmem [shape: bf16[128,128], index: 1, kind: input, shape index: {}]
  %s2 = inlined_call_operand.vmem [shape: f32[1,128], index: 2, kind: input, shape index: {}]
  %s3 = inlined_call_operand.vmem [shape: bf16[128,128], index: 3, kind: output, shape index: {}]
  %s4 = sld [smem:[#allocation0]]
  $region30: #{model_forward.9} parent=0
    _
  %s6 = ssub.s32 1, %s4
  %s7 = scalar_select 0, %s6, %s4
  // Predicated region
  $region2: #{model_forward.9} parent=0 // pred_check
    _
  $region3: #{model_forward.9} parent=0 // pred_check_branch
    %9 = sbr.rel (0) target = $region5
  $region4: #{model_forward.9} parent=0 // pred_region
    _
  $region5: #{model_forward.9} parent=0 // pred_fallthru
    _
  // Predicated region
  $region6: #{model_forward.9} parent=0 // pred_check
    _
  $region7: #{model_forward.9} parent=0 // pred_check_branch
    %11 = sbr.rel (0) target = $region9
  $region8: #{model_forward.9} parent=0 // pred_region
    _
  $region9: #{model_forward.9} parent=0 // pred_fallthru
    _
  // Predicated region
  $region10: #{model_forward.9} parent=0 // pred_check
    _
  $region11: #{model_forward.9} parent=0 // pred_check_branch
    %13 = sbr.rel (0) target = $region13
  $region12: #{model_forward.9} parent=0 // pred_region
    _
  $region13: #{model_forward.9} parent=0 // pred_fallthru
    _
  %p14 = scmp.eq.s32.totalorder 0, 0
  // Predicated region
  $region14: #{model_forward.9} parent=0 // pred_check
    %p15 = pneg %p14
  $region15: #{model_forward.9} parent=0 // pred_check_branch
    %17 = sbr.rel (%p15) target = $region17
  $region16: #{model_forward.9} parent=0 // pred_region
    %18 = vst [vmem:[#allocation2] sm:$0xff] 0.0
    %19 = vst [vmem:[#allocation2 + $0x8] sm:$0xff] 0.0
    %20 = vst [vmem:[#allocation2 + $0x10] sm:$0xff] 0.0
    %21 = vst [vmem:[#allocation2 + $0x18] sm:$0xff] 0.0
    %22 = vst [vmem:[#allocation2 + $0x20] sm:$0xff] 0.0
    %23 = vst [vmem:[#allocation2 + $0x28] sm:$0xff] 0.0
    %24 = vst [vmem:[#allocation2 + $0x30] sm:$0xff] 0.0
    %25 = vst [vmem:[#allocation2 + $0x38] sm:$0xff] 0.0
    %26 = vst [vmem:[#allocation2 + $0x40] sm:$0xff] 0.0
    %27 = vst [vmem:[#allocation2 + $0x48] sm:$0xff] 0.0
    %28 = vst [vmem:[#allocation2 + $0x50] sm:$0xff] 0.0
    %29 = vst [vmem:[#allocation2 + $0x58] sm:$0xff] 0.0
    %30 = vst [vmem:[#allocation2 + $0x60] sm:$0xff] 0.0
    %31 = vst [vmem:[#allocation2 + $0x68] sm:$0xff] 0.0
    %32 = vst [vmem:[#allocation2 + $0x70] sm:$0xff] 0.0
    %33 = vst [vmem:[#allocation2 + $0x78] sm:$0xff] 0.0
  $region17: #{model_forward.9} parent=0 // pred_fallthru
    _
  %v34 = vld [vmem:[#allocation2] sm:$0xff]
  %v35 = vld [vmem:[#allocation2 + $0x8] sm:$0xff]
  %v36 = vld [vmem:[#allocation2 + $0x10] sm:$0xff]
  %v37 = vld [vmem:[#allocation2 + $0x18] sm:$0xff]
  %v38 = vld [vmem:[#allocation2 + $0x20] sm:$0xff]
  %v39 = vld [vmem:[#allocation2 + $0x28] sm:$0xff]
  %v40 = vld [vmem:[#allocation2 + $0x30] sm:$0xff]
  %v41 = vld [vmem:[#allocation2 + $0x38] sm:$0xff]
  %v42 = vld [vmem:[#allocation2 + $0x40] sm:$0xff]
  %v43 = vld [vmem:[#allocation2 + $0x48] sm:$0xff]
  %v44 = vld [vmem:[#allocation2 + $0x50] sm:$0xff]
  %v45 = vld [vmem:[#allocation2 + $0x58] sm:$0xff]
  %v46 = vld [vmem:[#allocation2 + $0x60] sm:$0xff]
  %v47 = vld [vmem:[#allocation2 + $0x68] sm:$0xff]
  %v48 = vld [vmem:[#allocation2 + $0x70] sm:$0xff]
  %v49 = vld [vmem:[#allocation2 + $0x78] sm:$0xff]
  %v50 = vld [vmem:[%s0] sm:$0xf]
  %v51 = vld [vmem:[%s0 + $0x4] sm:$0xf]
  %v52 = vld [vmem:[%s0 + $0x8] sm:$0xf]
  %v53 = vld [vmem:[%s0 + $0xc] sm:$0xf]
  %v54 = vld [vmem:[%s0 + $0x10] sm:$0xf]
  %v55 = vld [vmem:[%s0 + $0x14] sm:$0xf]
  %v56 = vld [vmem:[%s0 + $0x18] sm:$0xf]
  %v57 = vld [vmem:[%s0 + $0x1c] sm:$0xf]
  %v58 = vld [vmem:[%s0 + $0x20] sm:$0xf]
  %v59 = vld [vmem:[%s0 + $0x24] sm:$0xf]
  %v60 = vld [vmem:[%s0 + $0x28] sm:$0xf]
  %v61 = vld [vmem:[%s0 + $0x2c] sm:$0xf]
  %v62 = vld [vmem:[%s0 + $0x30] sm:$0xf]
  %v63 = vld [vmem:[%s0 + $0x34] sm:$0xf]
  %v64 = vld [vmem:[%s0 + $0x38] sm:$0xf]
  %v65 = vld [vmem:[%s0 + $0x3c] sm:$0xf]
  %v66 = vld [vmem:[%s1] sm:$0xf]
  %v67 = vld [vmem:[%s1 + $0x4] sm:$0xf]
  %v68 = vld [vmem:[%s1 + $0x8] sm:$0xf]
  %v69 = vld [vmem:[%s1 + $0xc] sm:$0xf]
  %v70 = vld [vmem:[%s1 + $0x10] sm:$0xf]
  %v71 = vld [vmem:[%s1 + $0x14] sm:$0xf]
  %v72 = vld [vmem:[%s1 + $0x18] sm:$0xf]
  %v73 = vld [vmem:[%s1 + $0x1c] sm:$0xf]
  %v74 = vld [vmem:[%s1 + $0x20] sm:$0xf]
  %v75 = vld [vmem:[%s1 + $0x24] sm:$0xf]
  %v76 = vld [vmem:[%s1 + $0x28] sm:$0xf]
  %v77 = vld [vmem:[%s1 + $0x2c] sm:$0xf]
  %v78 = vld [vmem:[%s1 + $0x30] sm:$0xf]
  %v79 = vld [vmem:[%s1 + $0x34] sm:$0xf]
  %v80 = vld [vmem:[%s1 + $0x38] sm:$0xf]
  %v81 = vld [vmem:[%s1 + $0x3c] sm:$0xf]
  %v98 = vunpack.c.l.b16 %v50
  %v99 = vunpack.c.l.b16 %v51
  %v100 = vunpack.c.l.b16 %v52
  %v101 = vunpack.c.l.b16 %v53
  %v102 = vunpack.c.l.b16 %v54
  %v103 = vunpack.c.l.b16 %v55
  %v104 = vunpack.c.l.b16 %v56
  %v105 = vunpack.c.l.b16 %v57
  %v106 = vunpack.c.l.b16 %v58
  %v107 = vunpack.c.l.b16 %v59
  %v108 = vunpack.c.l.b16 %v60
  %v109 = vunpack.c.l.b16 %v61
  %v110 = vunpack.c.l.b16 %v62
  %v111 = vunpack.c.l.b16 %v63
  %v112 = vunpack.c.l.b16 %v64
  %v113 = vunpack.c.l.b16 %v65
  %v114 = vpack.c.b16 %v99, %v98
  %v115 = vpack.c.b16 %v101, %v100
  %v116 = vpack.c.b16 %v103, %v102
  %v117 = vpack.c.b16 %v105, %v104
  %v118 = vpack.c.b16 %v107, %v106
  %v119 = vpack.c.b16 %v109, %v108
  %v120 = vpack.c.b16 %v111, %v110
  %v121 = vpack.c.b16 %v113, %v112
  %v146 = vunpack.c.l.b16 %v66
  %v147 = vunpack.c.l.b16 %v67
  %v148 = vunpack.c.l.b16 %v68
  %v149 = vunpack.c.l.b16 %v69
  %v150 = vunpack.c.l.b16 %v70
  %v151 = vunpack.c.l.b16 %v71
  %v152 = vunpack.c.l.b16 %v72
  %v153 = vunpack.c.l.b16 %v73
  %v154 = vunpack.c.l.b16 %v74
  %v155 = vunpack.c.l.b16 %v75
  %v156 = vunpack.c.l.b16 %v76
  %v157 = vunpack.c.l.b16 %v77
  %v158 = vunpack.c.l.b16 %v78
  %v159 = vunpack.c.l.b16 %v79
  %v160 = vunpack.c.l.b16 %v80
  %v161 = vunpack.c.l.b16 %v81
  %v162 = vpack.c.b16 %v147, %v146
  %v163 = vpack.c.b16 %v149, %v148
  %v164 = vpack.c.b16 %v151, %v150
  %v165 = vpack.c.b16 %v153, %v152
  %v166 = vpack.c.b16 %v155, %v154
  %v167 = vpack.c.b16 %v157, %v156
  %v168 = vpack.c.b16 %v159, %v158
  %v169 = vpack.c.b16 %v161, %v160
  %178 = vmatpush.bf16.msra.mxu0 %v169
  %179 = vmatpush.bf16.msra.mxu0 %v168
  %180 = vmatpush.bf16.msra.mxu0 %v167
  %181 = vmatpush.bf16.msra.mxu0 %v166
  %182 = vmatpush.bf16.msra.mxu0 %v165
  %183 = vmatpush.bf16.msra.mxu0 %v164
  %184 = vmatpush.bf16.msra.mxu0 %v163
  %185 = vmatpush.bf16.msra.mxu0 %v162
  %186 = vmatmul.bf16.gmra.mxu0 %v114
  %v187 = vpop.f32.mrf.mxu0
  %v188 = vadd.f32 0.0, %v187
  %v189 = vpop.f32.mrf.mxu0
  %v190 = vadd.f32 0.0, %v189
  %191 = vmatmul.bf16.gmra.mxu0 %v115
  %v192 = vpop.f32.mrf.mxu0
  %v193 = vadd.f32 0.0, %v192
  %v194 = vpop.f32.mrf.mxu0
  %v195 = vadd.f32 0.0, %v194
  %196 = vmatmul.bf16.gmra.mxu0 %v116
  %v197 = vpop.f32.mrf.mxu0
  %v198 = vadd.f32 0.0, %v197
  %v199 = vpop.f32.mrf.mxu0
  %v200 = vadd.f32 0.0, %v199
  %201 = vmatmul.bf16.gmra.mxu0 %v117
  %v202 = vpop.f32.mrf.mxu0
  %v203 = vadd.f32 0.0, %v202
  %v204 = vpop.f32.mrf.mxu0
  %v205 = vadd.f32 0.0, %v204
  %206 = vmatmul.bf16.gmra.mxu0 %v118
  %v207 = vpop.f32.mrf.mxu0
  %v208 = vadd.f32 0.0, %v207
  %v209 = vpop.f32.mrf.mxu0
  %v210 = vadd.f32 0.0, %v209
  %211 = vmatmul.bf16.gmra.mxu0 %v119
  %v212 = vpop.f32.mrf.mxu0
  %v213 = vadd.f32 0.0, %v212
  %v214 = vpop.f32.mrf.mxu0
  %v215 = vadd.f32 0.0, %v214
  %216 = vmatmul.bf16.gmra.mxu0 %v120
  %v217 = vpop.f32.mrf.mxu0
  %v218 = vadd.f32 0.0, %v217
  %v219 = vpop.f32.mrf.mxu0
  %v220 = vadd.f32 0.0, %v219
  %221 = vmatmul.bf16.gmra.mxu0 %v121
  %v222 = vpop.f32.mrf.mxu0
  %v223 = vadd.f32 0.0, %v222
  %v224 = vpop.f32.mrf.mxu0
  %v225 = vadd.f32 0.0, %v224
  %226 = vdwg.mxu0
  %v227 = vadd.f32 %v34, %v188
  %v228 = vadd.f32 %v35, %v190
  %v229 = vadd.f32 %v36, %v193
  %v230 = vadd.f32 %v37, %v195
  %v231 = vadd.f32 %v38, %v198
  %v232 = vadd.f32 %v39, %v200
  %v233 = vadd.f32 %v40, %v203
  %v234 = vadd.f32 %v41, %v205
  %v235 = vadd.f32 %v42, %v208
  %v236 = vadd.f32 %v43, %v210
  %v237 = vadd.f32 %v44, %v213
  %v238 = vadd.f32 %v45, %v215
  %v239 = vadd.f32 %v46, %v218
  %v240 = vadd.f32 %v47, %v220
  %v241 = vadd.f32 %v48, %v223
  %v242 = vadd.f32 %v49, %v225
  %243 = vst [vmem:[#allocation2] sm:$0xff] %v227
  %244 = vst [vmem:[#allocation2 + $0x8] sm:$0xff] %v228
  %245 = vst [vmem:[#allocation2 + $0x10] sm:$0xff] %v229
  %246 = vst [vmem:[#allocation2 + $0x18] sm:$0xff] %v230
  %247 = vst [vmem:[#allocation2 + $0x20] sm:$0xff] %v231
  %248 = vst [vmem:[#allocation2 + $0x28] sm:$0xff] %v232
  %249 = vst [vmem:[#allocation2 + $0x30] sm:$0xff] %v233
  %250 = vst [vmem:[#allocation2 + $0x38] sm:$0xff] %v234
  %251 = vst [vmem:[#allocation2 + $0x40] sm:$0xff] %v235
  %252 = vst [vmem:[#allocation2 + $0x48] sm:$0xff] %v236
  %253 = vst [vmem:[#allocation2 + $0x50] sm:$0xff] %v237
  %254 = vst [vmem:[#allocation2 + $0x58] sm:$0xff] %v238
  %255 = vst [vmem:[#allocation2 + $0x60] sm:$0xff] %v239
  %256 = vst [vmem:[#allocation2 + $0x68] sm:$0xff] %v240
  %257 = vst [vmem:[#allocation2 + $0x70] sm:$0xff] %v241
  %258 = vst [vmem:[#allocation2 + $0x78] sm:$0xff] %v242
  // Predicated region
  $region18: #{model_forward.9} parent=0 // pred_check
    %p259 = pneg %p14
  $region19: #{model_forward.9} parent=0 // pred_check_branch
    %261 = sbr.rel (%p259) target = $region21
  $region20: #{model_forward.9} parent=0 // pred_region
    %v262 = vld [vmem:[#allocation2] sm:$0xff]
    %v263 = vld [vmem:[#allocation2 + $0x8] sm:$0xff]
    %v264 = vld [vmem:[#allocation2 + $0x10] sm:$0xff]
    %v265 = vld [vmem:[#allocation2 + $0x18] sm:$0xff]
    %v266 = vld [vmem:[#allocation2 + $0x20] sm:$0xff]
    %v267 = vld [vmem:[#allocation2 + $0x28] sm:$0xff]
    %v268 = vld [vmem:[#allocation2 + $0x30] sm:$0xff]
    %v269 = vld [vmem:[#allocation2 + $0x38] sm:$0xff]
    %v270 = vld [vmem:[#allocation2 + $0x40] sm:$0xff]
    %v271 = vld [vmem:[#allocation2 + $0x48] sm:$0xff]
    %v272 = vld [vmem:[#allocation2 + $0x50] sm:$0xff]
    %v273 = vld [vmem:[#allocation2 + $0x58] sm:$0xff]
    %v274 = vld [vmem:[#allocation2 + $0x60] sm:$0xff]
    %v275 = vld [vmem:[#allocation2 + $0x68] sm:$0xff]
    %v276 = vld [vmem:[#allocation2 + $0x70] sm:$0xff]
    %v277 = vld [vmem:[#allocation2 + $0x78] sm:$0xff]
    %v278 = vld [vmem:[%s2] sm:$0x1]
    %v280 = vperm.slane %v278, 0
    %v282 = vadd.f32 %v262, %v280
    %v283 = vadd.f32 %v263, %v280
    %v284 = vadd.f32 %v264, %v280
    %v285 = vadd.f32 %v265, %v280
    %v286 = vadd.f32 %v266, %v280
    %v287 = vadd.f32 %v267, %v280
    %v288 = vadd.f32 %v268, %v280
    %v289 = vadd.f32 %v269, %v280
    %v290 = vadd.f32 %v270, %v280
    %v291 = vadd.f32 %v271, %v280
    %v292 = vadd.f32 %v272, %v280
    %v293 = vadd.f32 %v273, %v280
    %v294 = vadd.f32 %v274, %v280
    %v295 = vadd.f32 %v275, %v280
    %v296 = vadd.f32 %v276, %v280
    %v297 = vadd.f32 %v277, %v280
    %v298 = vpack.c.bf16 %v282, %v282
    %v299 = vpack.c.bf16 %v283, %v283
    %v300 = vpack.c.bf16 %v284, %v284
    %v301 = vpack.c.bf16 %v285, %v285
    %v302 = vpack.c.bf16 %v286, %v286
    %v303 = vpack.c.bf16 %v287, %v287
    %v304 = vpack.c.bf16 %v288, %v288
    %v305 = vpack.c.bf16 %v289, %v289
    %v306 = vpack.c.bf16 %v290, %v290
    %v307 = vpack.c.bf16 %v291, %v291
    %v308 = vpack.c.bf16 %v292, %v292
    %v309 = vpack.c.bf16 %v293, %v293
    %v310 = vpack.c.bf16 %v294, %v294
    %v311 = vpack.c.bf16 %v295, %v295
    %v312 = vpack.c.bf16 %v296, %v296
    %v313 = vpack.c.bf16 %v297, %v297
    %314 = vst [vmem:[%s3] sm:$0xf] %v298
    %315 = vst [vmem:[%s3 + $0x4] sm:$0xf] %v299
    %316 = vst [vmem:[%s3 + $0x8] sm:$0xf] %v300
    %317 = vst [vmem:[%s3 + $0xc] sm:$0xf] %v301
    %318 = vst [vmem:[%s3 + $0x10] sm:$0xf] %v302
    %319 = vst [vmem:[%s3 + $0x14] sm:$0xf] %v303
    %320 = vst [vmem:[%s3 + $0x18] sm:$0xf] %v304
    %321 = vst [vmem:[%s3 + $0x1c] sm:$0xf] %v305
    %322 = vst [vmem:[%s3 + $0x20] sm:$0xf] %v306
    %323 = vst [vmem:[%s3 + $0x24] sm:$0xf] %v307
    %324 = vst [vmem:[%s3 + $0x28] sm:$0xf] %v308
    %325 = vst [vmem:[%s3 + $0x2c] sm:$0xf] %v309
    %326 = vst [vmem:[%s3 + $0x30] sm:$0xf] %v310
    %327 = vst [vmem:[%s3 + $0x34] sm:$0xf] %v311
    %328 = vst [vmem:[%s3 + $0x38] sm:$0xf] %v312
    %329 = vst [vmem:[%s3 + $0x3c] sm:$0xf] %v313
  $region21: #{model_forward.9} parent=0 // pred_fallthru
    _
  // Predicated region
  $region22: #{model_forward.9} parent=0 // pred_check
    _
  $region23: #{model_forward.9} parent=0 // pred_check_branch
    %331 = sbr.rel (0) target = $region25
  $region24: #{model_forward.9} parent=0 // pred_region
    _
  $region25: #{model_forward.9} parent=0 // pred_fallthru
    _
  // Predicated region
  $region26: #{model_forward.9} parent=0 // pred_check
    _
  $region27: #{model_forward.9} parent=0 // pred_check_branch
    %333 = sbr.rel (0) target = $region29
  $region28: #{model_forward.9} parent=0 // pred_region
    _
  $region29: #{model_forward.9} parent=0 // pred_fallthru
    _

// kernel: model_forward.12
$region0: #{model_forward.12}
  #allocation0 [shape = 'u32[]', space=smem, size = 0x4, offset = 0x4, fixed_abs, tag = 'smem constant byte address 0x4 - core index']
  #allocation1 [shape = 'u32[72,128]{1,0:T(1,128)}', space=vmem, size = 0x9000, scoped, tag = 'internal scratch']
  #allocation2 [shape = 'f32[128,128]{1,0:T(8,128)}', space=vmem, size = 0x10000, scoped, tag = 'scratch operand']
  %s0 = inlined_call_operand.vmem [shape: bf16[128,128], index: 0, kind: input, shape index: {}]
  %s1 = inlined_call_operand.vmem [shape: bf16[128,128], index: 1, kind: input, shape index: {}]
  %s2 = inlined_call_operand.vmem [shape: f32[1,128], index: 2, kind: input, shape index: {}]
  %s3 = inlined_call_operand.vmem [shape: bf16[128,128], index: 3, kind: output, shape index: {}]
  %s4 = sld [smem:[#allocation0]]
  $region30: #{model_forward.12} parent=0
    _
  %s6 = ssub.s32 1, %s4
  %s7 = scalar_select 0, %s6, %s4
  // Predicated region
  $region2: #{model_forward.12} parent=0 // pred_check
    _
  $region3: #{model_forward.12} parent=0 // pred_check_branch
    %9 = sbr.rel (0) target = $region5
  $region4: #{model_forward.12} parent=0 // pred_region
    _
  $region5: #{model_forward.12} parent=0 // pred_fallthru
    _
  // Predicated region
  $region6: #{model_forward.12} parent=0 // pred_check
    _
  $region7: #{model_forward.12} parent=0 // pred_check_branch
    %11 = sbr.rel (0) target = $region9
  $region8: #{model_forward.12} parent=0 // pred_region
    _
  $region9: #{model_forward.12} parent=0 // pred_fallthru
    _
  // Predicated region
  $region10: #{model_forward.12} parent=0 // pred_check
    _
  $region11: #{model_forward.12} parent=0 // pred_check_branch
    %13 = sbr.rel (0) target = $region13
  $region12: #{model_forward.12} parent=0 // pred_region
    _
  $region13: #{model_forward.12} parent=0 // pred_fallthru
    _
  %p14 = scmp.eq.s32.totalorder 0, 0
  // Predicated region
  $region14: #{model_forward.12} parent=0 // pred_check
    %p15 = pneg %p14
  $region15: #{model_forward.12} parent=0 // pred_check_branch
    %17 = sbr.rel (%p15) target = $region17
  $region16: #{model_forward.12} parent=0 // pred_region
    %18 = vst [vmem:[#allocation2] sm:$0xff] 0.0
    %19 = vst [vmem:[#allocation2 + $0x8] sm:$0xff] 0.0
    %20 = vst [vmem:[#allocation2 + $0x10] sm:$0xff] 0.0
    %21 = vst [vmem:[#allocation2 + $0x18] sm:$0xff] 0.0
    %22 = vst [vmem:[#allocation2 + $0x20] sm:$0xff] 0.0
    %23 = vst [vmem:[#allocation2 + $0x28] sm:$0xff] 0.0
    %24 = vst [vmem:[#allocation2 + $0x30] sm:$0xff] 0.0
    %25 = vst [vmem:[#allocation2 + $0x38] sm:$0xff] 0.0
    %26 = vst [vmem:[#allocation2 + $0x40] sm:$0xff] 0.0
    %27 = vst [vmem:[#allocation2 + $0x48] sm:$0xff] 0.0
    %28 = vst [vmem:[#allocation2 + $0x50] sm:$0xff] 0.0
    %29 = vst [vmem:[#allocation2 + $0x58] sm:$0xff] 0.0
    %30 = vst [vmem:[#allocation2 + $0x60] sm:$0xff] 0.0
    %31 = vst [vmem:[#allocation2 + $0x68] sm:$0xff] 0.0
    %32 = vst [vmem:[#allocation2 + $0x70] sm:$0xff] 0.0
    %33 = vst [vmem:[#allocation2 + $0x78] sm:$0xff] 0.0
  $region17: #{model_forward.12} parent=0 // pred_fallthru
    _
  %v34 = vld [vmem:[#allocation2] sm:$0xff]
  %v35 = vld [vmem:[#allocation2 + $0x8] sm:$0xff]
  %v36 = vld [vmem:[#allocation2 + $0x10] sm:$0xff]
  %v37 = vld [vmem:[#allocation2 + $0x18] sm:$0xff]
  %v38 = vld [vmem:[#allocation2 + $0x20] sm:$0xff]
  %v39 = vld [vmem:[#allocation2 + $0x28] sm:$0xff]
  %v40 = vld [vmem:[#allocation2 + $0x30] sm:$0xff]
  %v41 = vld [vmem:[#allocation2 + $0x38] sm:$0xff]
  %v42 = vld [vmem:[#allocation2 + $0x40] sm:$0xff]
  %v43 = vld [vmem:[#allocation2 + $0x48] sm:$0xff]
  %v44 = vld [vmem:[#allocation2 + $0x50] sm:$0xff]
  %v45 = vld [vmem:[#allocation2 + $0x58] sm:$0xff]
  %v46 = vld [vmem:[#allocation2 + $0x60] sm:$0xff]
  %v47 = vld [vmem:[#allocation2 + $0x68] sm:$0xff]
  %v48 = vld [vmem:[#allocation2 + $0x70] sm:$0xff]
  %v49 = vld [vmem:[#allocation2 + $0x78] sm:$0xff]
  %v50 = vld [vmem:[%s0] sm:$0xf]
  %v51 = vld [vmem:[%s0 + $0x4] sm:$0xf]
  %v52 = vld [vmem:[%s0 + $0x8] sm:$0xf]
  %v53 = vld [vmem:[%s0 + $0xc] sm:$0xf]
  %v54 = vld [vmem:[%s0 + $0x10] sm:$0xf]
  %v55 = vld [vmem:[%s0 + $0x14] sm:$0xf]
  %v56 = vld [vmem:[%s0 + $0x18] sm:$0xf]
  %v57 = vld [vmem:[%s0 + $0x1c] sm:$0xf]
  %v58 = vld [vmem:[%s0 + $0x20] sm:$0xf]
  %v59 = vld [vmem:[%s0 + $0x24] sm:$0xf]
  %v60 = vld [vmem:[%s0 + $0x28] sm:$0xf]
  %v61 = vld [vmem:[%s0 + $0x2c] sm:$0xf]
  %v62 = vld [vmem:[%s0 + $0x30] sm:$0xf]
  %v63 = vld [vmem:[%s0 + $0x34] sm:$0xf]
  %v64 = vld [vmem:[%s0 + $0x38] sm:$0xf]
  %v65 = vld [vmem:[%s0 + $0x3c] sm:$0xf]
  %v66 = vld [vmem:[%s1] sm:$0xf]
  %v67 = vld [vmem:[%s1 + $0x4] sm:$0xf]
  %v68 = vld [vmem:[%s1 + $0x8] sm:$0xf]
  %v69 = vld [vmem:[%s1 + $0xc] sm:$0xf]
  %v70 = vld [vmem:[%s1 + $0x10] sm:$0xf]
  %v71 = vld [vmem:[%s1 + $0x14] sm:$0xf]
  %v72 = vld [vmem:[%s1 + $0x18] sm:$0xf]
  %v73 = vld [vmem:[%s1 + $0x1c] sm:$0xf]
  %v74 = vld [vmem:[%s1 + $0x20] sm:$0xf]
  %v75 = vld [vmem:[%s1 + $0x24] sm:$0xf]
  %v76 = vld [vmem:[%s1 + $0x28] sm:$0xf]
  %v77 = vld [vmem:[%s1 + $0x2c] sm:$0xf]
  %v78 = vld [vmem:[%s1 + $0x30] sm:$0xf]
  %v79 = vld [vmem:[%s1 + $0x34] sm:$0xf]
  %v80 = vld [vmem:[%s1 + $0x38] sm:$0xf]
  %v81 = vld [vmem:[%s1 + $0x3c] sm:$0xf]
  %v98 = vunpack.c.l.b16 %v50
  %v99 = vunpack.c.l.b16 %v51
  %v100 = vunpack.c.l.b16 %v52
  %v101 = vunpack.c.l.b16 %v53
  %v102 = vunpack.c.l.b16 %v54
  %v103 = vunpack.c.l.b16 %v55
  %v104 = vunpack.c.l.b16 %v56
  %v105 = vunpack.c.l.b16 %v57
  %v106 = vunpack.c.l.b16 %v58
  %v107 = vunpack.c.l.b16 %v59
  %v108 = vunpack.c.l.b16 %v60
  %v109 = vunpack.c.l.b16 %v61
  %v110 = vunpack.c.l.b16 %v62
  %v111 = vunpack.c.l.b16 %v63
  %v112 = vunpack.c.l.b16 %v64
  %v113 = vunpack.c.l.b16 %v65
  %v114 = vpack.c.b16 %v99, %v98
  %v115 = vpack.c.b16 %v101, %v100
  %v116 = vpack.c.b16 %v103, %v102
  %v117 = vpack.c.b16 %v105, %v104
  %v118 = vpack.c.b16 %v107, %v106
  %v119 = vpack.c.b16 %v109, %v108
  %v120 = vpack.c.b16 %v111, %v110
  %v121 = vpack.c.b16 %v113, %v112
  %v146 = vunpack.c.l.b16 %v66
  %v147 = vunpack.c.l.b16 %v67
  %v148 = vunpack.c.l.b16 %v68
  %v149 = vunpack.c.l.b16 %v69
  %v150 = vunpack.c.l.b16 %v70
  %v151 = vunpack.c.l.b16 %v71
  %v152 = vunpack.c.l.b16 %v72
  %v153 = vunpack.c.l.b16 %v73
  %v154 = vunpack.c.l.b16 %v74
  %v155 = vunpack.c.l.b16 %v75
  %v156 = vunpack.c.l.b16 %v76
  %v157 = vunpack.c.l.b16 %v77
  %v158 = vunpack.c.l.b16 %v78
  %v159 = vunpack.c.l.b16 %v79
  %v160 = vunpack.c.l.b16 %v80
  %v161 = vunpack.c.l.b16 %v81
  %v162 = vpack.c.b16 %v147, %v146
  %v163 = vpack.c.b16 %v149, %v148
  %v164 = vpack.c.b16 %v151, %v150
  %v165 = vpack.c.b16 %v153, %v152
  %v166 = vpack.c.b16 %v155, %v154
  %v167 = vpack.c.b16 %v157, %v156
  %v168 = vpack.c.b16 %v159, %v158
  %v169 = vpack.c.b16 %v161, %v160
  %178 = vmatpush.bf16.msra.mxu0 %v169
  %179 = vmatpush.bf16.msra.mxu0 %v168
  %180 = vmatpush.bf16.msra.mxu0 %v167
  %181 = vmatpush.bf16.msra.mxu0 %v166
  %182 = vmatpush.bf16.msra.mxu0 %v165
  %183 = vmatpush.bf16.msra.mxu0 %v164
  %184 = vmatpush.bf16.msra.mxu0 %v163
  %185 = vmatpush.bf16.msra.mxu0 %v162
  %186 = vmatmul.bf16.gmra.mxu0 %v114
  %v187 = vpop.f32.mrf.mxu0
  %v188 = vadd.f32 0.0, %v187
  %v189 = vpop.f32.mrf.mxu0
  %v190 = vadd.f32 0.0, %v189
  %191 = vmatmul.bf16.gmra.mxu0 %v115
  %v192 = vpop.f32.mrf.mxu0
  %v193 = vadd.f32 0.0, %v192
  %v194 = vpop.f32.mrf.mxu0
  %v195 = vadd.f32 0.0, %v194
  %196 = vmatmul.bf16.gmra.mxu0 %v116
  %v197 = vpop.f32.mrf.mxu0
  %v198 = vadd.f32 0.0, %v197
  %v199 = vpop.f32.mrf.mxu0
  %v200 = vadd.f32 0.0, %v199
  %201 = vmatmul.bf16.gmra.mxu0 %v117
  %v202 = vpop.f32.mrf.mxu0
  %v203 = vadd.f32 0.0, %v202
  %v204 = vpop.f32.mrf.mxu0
  %v205 = vadd.f32 0.0, %v204
  %206 = vmatmul.bf16.gmra.mxu0 %v118
  %v207 = vpop.f32.mrf.mxu0
  %v208 = vadd.f32 0.0, %v207
  %v209 = vpop.f32.mrf.mxu0
  %v210 = vadd.f32 0.0, %v209
  %211 = vmatmul.bf16.gmra.mxu0 %v119
  %v212 = vpop.f32.mrf.mxu0
  %v213 = vadd.f32 0.0, %v212
  %v214 = vpop.f32.mrf.mxu0
  %v215 = vadd.f32 0.0, %v214
  %216 = vmatmul.bf16.gmra.mxu0 %v120
  %v217 = vpop.f32.mrf.mxu0
  %v218 = vadd.f32 0.0, %v217
  %v219 = vpop.f32.mrf.mxu0
  %v220 = vadd.f32 0.0, %v219
  %221 = vmatmul.bf16.gmra.mxu0 %v121
  %v222 = vpop.f32.mrf.mxu0
  %v223 = vadd.f32 0.0, %v222
  %v224 = vpop.f32.mrf.mxu0
  %v225 = vadd.f32 0.0, %v224
  %226 = vdwg.mxu0
  %v227 = vadd.f32 %v34, %v188
  %v228 = vadd.f32 %v35, %v190
  %v229 = vadd.f32 %v36, %v193
  %v230 = vadd.f32 %v37, %v195
  %v231 = vadd.f32 %v38, %v198
  %v232 = vadd.f32 %v39, %v200
  %v233 = vadd.f32 %v40, %v203
  %v234 = vadd.f32 %v41, %v205
  %v235 = vadd.f32 %v42, %v208
  %v236 = vadd.f32 %v43, %v210
  %v237 = vadd.f32 %v44, %v213
  %v238 = vadd.f32 %v45, %v215
  %v239 = vadd.f32 %v46, %v218
  %v240 = vadd.f32 %v47, %v220
  %v241 = vadd.f32 %v48, %v223
  %v242 = vadd.f32 %v49, %v225
  %243 = vst [vmem:[#allocation2] sm:$0xff] %v227
  %244 = vst [vmem:[#allocation2 + $0x8] sm:$0xff] %v228
  %245 = vst [vmem:[#allocation2 + $0x10] sm:$0xff] %v229
  %246 = vst [vmem:[#allocation2 + $0x18] sm:$0xff] %v230
  %247 = vst [vmem:[#allocation2 + $0x20] sm:$0xff] %v231
  %248 = vst [vmem:[#allocation2 + $0x28] sm:$0xff] %v232
  %249 = vst [vmem:[#allocation2 + $0x30] sm:$0xff] %v233
  %250 = vst [vmem:[#allocation2 + $0x38] sm:$0xff] %v234
  %251 = vst [vmem:[#allocation2 + $0x40] sm:$0xff] %v235
  %252 = vst [vmem:[#allocation2 + $0x48] sm:$0xff] %v236
  %253 = vst [vmem:[#allocation2 + $0x50] sm:$0xff] %v237
  %254 = vst [vmem:[#allocation2 + $0x58] sm:$0xff] %v238
  %255 = vst [vmem:[#allocation2 + $0x60] sm:$0xff] %v239
  %256 = vst [vmem:[#allocation2 + $0x68] sm:$0xff] %v240
  %257 = vst [vmem:[#allocation2 + $0x70] sm:$0xff] %v241
  %258 = vst [vmem:[#allocation2 + $0x78] sm:$0xff] %v242
  // Predicated region
  $region18: #{model_forward.12} parent=0 // pred_check
    %p259 = pneg %p14
  $region19: #{model_forward.12} parent=0 // pred_check_branch
    %261 = sbr.rel (%p259) target = $region21
  $region20: #{model_forward.12} parent=0 // pred_region
    %v262 = vld [vmem:[#allocation2] sm:$0xff]
    %v263 = vld [vmem:[#allocation2 + $0x8] sm:$0xff]
    %v264 = vld [vmem:[#allocation2 + $0x10] sm:$0xff]
    %v265 = vld [vmem:[#allocation2 + $0x18] sm:$0xff]
    %v266 = vld [vmem:[#allocation2 + $0x20] sm:$0xff]
    %v267 = vld [vmem:[#allocation2 + $0x28] sm:$0xff]
    %v268 = vld [vmem:[#allocation2 + $0x30] sm:$0xff]
    %v269 = vld [vmem:[#allocation2 + $0x38] sm:$0xff]
    %v270 = vld [vmem:[#allocation2 + $0x40] sm:$0xff]
    %v271 = vld [vmem:[#allocation2 + $0x48] sm:$0xff]
    %v272 = vld [vmem:[#allocation2 + $0x50] sm:$0xff]
    %v273 = vld [vmem:[#allocation2 + $0x58] sm:$0xff]
    %v274 = vld [vmem:[#allocation2 + $0x60] sm:$0xff]
    %v275 = vld [vmem:[#allocation2 + $0x68] sm:$0xff]
    %v276 = vld [vmem:[#allocation2 + $0x70] sm:$0xff]
    %v277 = vld [vmem:[#allocation2 + $0x78] sm:$0xff]
    %v278 = vld [vmem:[%s2] sm:$0x1]
    %v280 = vperm.slane %v278, 0
    %v282 = vadd.f32 %v262, %v280
    %v283 = vadd.f32 %v263, %v280
    %v284 = vadd.f32 %v264, %v280
    %v285 = vadd.f32 %v265, %v280
    %v286 = vadd.f32 %v266, %v280
    %v287 = vadd.f32 %v267, %v280
    %v288 = vadd.f32 %v268, %v280
    %v289 = vadd.f32 %v269, %v280
    %v290 = vadd.f32 %v270, %v280
    %v291 = vadd.f32 %v271, %v280
    %v292 = vadd.f32 %v272, %v280
    %v293 = vadd.f32 %v273, %v280
    %v294 = vadd.f32 %v274, %v280
    %v295 = vadd.f32 %v275, %v280
    %v296 = vadd.f32 %v276, %v280
    %v297 = vadd.f32 %v277, %v280
    %v298 = vmax.f32 %v282, 0.0
    %v299 = vmax.f32 %v283, 0.0
    %v300 = vmax.f32 %v284, 0.0
    %v301 = vmax.f32 %v285, 0.0
    %v302 = vmax.f32 %v286, 0.0
    %v303 = vmax.f32 %v287, 0.0
    %v304 = vmax.f32 %v288, 0.0
    %v305 = vmax.f32 %v289, 0.0
    %v306 = vmax.f32 %v290, 0.0
    %v307 = vmax.f32 %v291, 0.0
    %v308 = vmax.f32 %v292, 0.0
    %v309 = vmax.f32 %v293, 0.0
    %v310 = vmax.f32 %v294, 0.0
    %v311 = vmax.f32 %v295, 0.0
    %v312 = vmax.f32 %v296, 0.0
    %v313 = vmax.f32 %v297, 0.0
    %v314 = vpack.c.bf16 %v298, %v298
    %v315 = vpack.c.bf16 %v299, %v299
    %v316 = vpack.c.bf16 %v300, %v300
    %v317 = vpack.c.bf16 %v301, %v301
    %v318 = vpack.c.bf16 %v302, %v302
    %v319 = vpack.c.bf16 %v303, %v303
    %v320 = vpack.c.bf16 %v304, %v304
    %v321 = vpack.c.bf16 %v305, %v305
    %v322 = vpack.c.bf16 %v306, %v306
    %v323 = vpack.c.bf16 %v307, %v307
    %v324 = vpack.c.bf16 %v308, %v308
    %v325 = vpack.c.bf16 %v309, %v309
    %v326 = vpack.c.bf16 %v310, %v310
    %v327 = vpack.c.bf16 %v311, %v311
    %v328 = vpack.c.bf16 %v312, %v312
    %v329 = vpack.c.bf16 %v313, %v313
    %330 = vst [vmem:[%s3] sm:$0xf] %v314
    %331 = vst [vmem:[%s3 + $0x4] sm:$0xf] %v315
    %332 = vst [vmem:[%s3 + $0x8] sm:$0xf] %v316
    %333 = vst [vmem:[%s3 + $0xc] sm:$0xf] %v317
    %334 = vst [vmem:[%s3 + $0x10] sm:$0xf] %v318
    %335 = vst [vmem:[%s3 + $0x14] sm:$0xf] %v319
    %336 = vst [vmem:[%s3 + $0x18] sm:$0xf] %v320
    %337 = vst [vmem:[%s3 + $0x1c] sm:$0xf] %v321
    %338 = vst [vmem:[%s3 + $0x20] sm:$0xf] %v322
    %339 = vst [vmem:[%s3 + $0x24] sm:$0xf] %v323
    %340 = vst [vmem:[%s3 + $0x28] sm:$0xf] %v324
    %341 = vst [vmem:[%s3 + $0x2c] sm:$0xf] %v325
    %342 = vst [vmem:[%s3 + $0x30] sm:$0xf] %v326
    %343 = vst [vmem:[%s3 + $0x34] sm:$0xf] %v327
    %344 = vst [vmem:[%s3 + $0x38] sm:$0xf] %v328
    %345 = vst [vmem:[%s3 + $0x3c] sm:$0xf] %v329
  $region21: #{model_forward.12} parent=0 // pred_fallthru
    _
  // Predicated region
  $region22: #{model_forward.12} parent=0 // pred_check
    _
  $region23: #{model_forward.12} parent=0 // pred_check_branch
    %347 = sbr.rel (0) target = $region25
  $region24: #{model_forward.12} parent=0 // pred_region
    _
  $region25: #{model_forward.12} parent=0 // pred_fallthru
    _
  // Predicated region
  $region26: #{model_forward.12} parent=0 // pred_check
    _
  $region27: #{model_forward.12} parent=0 // pred_check_branch
    %349 = sbr.rel (0) target = $region29
  $region28: #{model_forward.12} parent=0 // pred_region
    _
  $region29: #{model_forward.12} parent=0 // pred_fallthru
    _

// kernel: model_forward.15
$region0: #{model_forward.15}
  #allocation0 [shape = 'u32[]', space=smem, size = 0x4, offset = 0x4, fixed_abs, tag = 'smem constant byte address 0x4 - core index']
  #allocation1 [shape = 'u32[72,128]{1,0:T(1,128)}', space=vmem, size = 0x9000, scoped, tag = 'internal scratch']
  #allocation2 [shape = 'f32[2,128,1]{2,1,0:T(8,128)}', space=vmem, size = 0x20000, scoped, tag = 'scratch operand']
  #allocation3 [shape = 'f32[2,128,1]{2,1,0:T(8,128)}', space=vmem, size = 0x20000, scoped, tag = 'scratch operand']
  #allocation4 [shape = 'f32[2,128,8]{2,1,0:T(8,128)}', space=vmem, size = 0x20000, scoped, tag = 'scratch operand']
  %s0 = inlined_call_operand.vmem [shape: f32[2,128,1], index: 0, kind: input, shape index: {}]
  %s1 = inlined_call_operand.vmem [shape: f32[2,1,128], index: 1, kind: input, shape index: {}]
  %s2 = inlined_call_operand.vmem [shape: bf16[128,128], index: 2, kind: input, shape index: {}]
  %s3 = inlined_call_operand.vmem [shape: bf16[2,128,8], index: 3, kind: input, shape index: {}]
  %s4 = inlined_call_operand.vmem [shape: bf16[2,128,8], index: 4, kind: output, shape index: {}]
  %s5 = sld [smem:[#allocation0]]
  $region34: #{model_forward.15} parent=0
    _
  %s7 = ssub.s32 1, %s5
  %s8 = scalar_select 0, %s7, %s5
  // Predicated region
  $region2: #{model_forward.15} parent=0 // pred_check
    _
  $region3: #{model_forward.15} parent=0 // pred_check_branch
    %10 = sbr.rel (0) target = $region5
  $region4: #{model_forward.15} parent=0 // pred_region
    _
  $region5: #{model_forward.15} parent=0 // pred_fallthru
    _
  // Predicated region
  $region6: #{model_forward.15} parent=0 // pred_check
    _
  $region7: #{model_forward.15} parent=0 // pred_check_branch
    %12 = sbr.rel (0) target = $region9
  $region8: #{model_forward.15} parent=0 // pred_region
    _
  $region9: #{model_forward.15} parent=0 // pred_fallthru
    _
  // Predicated region
  $region10: #{model_forward.15} parent=0 // pred_check
    _
  $region11: #{model_forward.15} parent=0 // pred_check_branch
    %14 = sbr.rel (0) target = $region13
  $region12: #{model_forward.15} parent=0 // pred_region
    _
  $region13: #{model_forward.15} parent=0 // pred_fallthru
    _
  // Predicated region
  $region14: #{model_forward.15} parent=0 // pred_check
    _
  $region15: #{model_forward.15} parent=0 // pred_check_branch
    %16 = sbr.rel (0) target = $region17
  $region16: #{model_forward.15} parent=0 // pred_region
    _
  $region17: #{model_forward.15} parent=0 // pred_fallthru
    _
  %p17 = scmp.eq.s32.totalorder 0, 0
  // Predicated region
  $region18: #{model_forward.15} parent=0 // pred_check
    %p18 = pneg %p17
  $region19: #{model_forward.15} parent=0 // pred_check_branch
    %20 = sbr.rel (%p18) target = $region21
  $region20: #{model_forward.15} parent=0 // pred_region
    %vm21 = vcmask 7168
    %22 = vst.msk [vmem:[#allocation2] sm:$0xff] %vm21, -inf
    %23 = vst.msk [vmem:[#allocation2 + $0x8] sm:$0xff] %vm21, -inf
    %24 = vst.msk [vmem:[#allocation2 + $0x10] sm:$0xff] %vm21, -inf
    %25 = vst.msk [vmem:[#allocation2 + $0x18] sm:$0xff] %vm21, -inf
    %26 = vst.msk [vmem:[#allocation2 + $0x20] sm:$0xff] %vm21, -inf
    %27 = vst.msk [vmem:[#allocation2 + $0x28] sm:$0xff] %vm21, -inf
    %28 = vst.msk [vmem:[#allocation2 + $0x30] sm:$0xff] %vm21, -inf
    %29 = vst.msk [vmem:[#allocation2 + $0x38] sm:$0xff] %vm21, -inf
    %30 = vst.msk [vmem:[#allocation2 + $0x40] sm:$0xff] %vm21, -inf
    %31 = vst.msk [vmem:[#allocation2 + $0x48] sm:$0xff] %vm21, -inf
    %32 = vst.msk [vmem:[#allocation2 + $0x50] sm:$0xff] %vm21, -inf
    %33 = vst.msk [vmem:[#allocation2 + $0x58] sm:$0xff] %vm21, -inf
    %34 = vst.msk [vmem:[#allocation2 + $0x60] sm:$0xff] %vm21, -inf
    %35 = vst.msk [vmem:[#allocation2 + $0x68] sm:$0xff] %vm21, -inf
    %36 = vst.msk [vmem:[#allocation2 + $0x70] sm:$0xff] %vm21, -inf
    %37 = vst.msk [vmem:[#allocation2 + $0x78] sm:$0xff] %vm21, -inf
    %38 = vst.msk [vmem:[#allocation2 + $0x80] sm:$0xff] %vm21, -inf
    %39 = vst.msk [vmem:[#allocation2 + $0x88] sm:$0xff] %vm21, -inf
    %40 = vst.msk [vmem:[#allocation2 + $0x90] sm:$0xff] %vm21, -inf
    %41 = vst.msk [vmem:[#allocation2 + $0x98] sm:$0xff] %vm21, -inf
    %42 = vst.msk [vmem:[#allocation2 + $0xa0] sm:$0xff] %vm21, -inf
    %43 = vst.msk [vmem:[#allocation2 + $0xa8] sm:$0xff] %vm21, -inf
    %44 = vst.msk [vmem:[#allocation2 + $0xb0] sm:$0xff] %vm21, -inf
    %45 = vst.msk [vmem:[#allocation2 + $0xb8] sm:$0xff] %vm21, -inf
    %46 = vst.msk [vmem:[#allocation2 + $0xc0] sm:$0xff] %vm21, -inf
    %47 = vst.msk [vmem:[#allocation2 + $0xc8] sm:$0xff] %vm21, -inf
    %48 = vst.msk [vmem:[#allocation2 + $0xd0] sm:$0xff] %vm21, -inf
    %49 = vst.msk [vmem:[#allocation2 + $0xd8] sm:$0xff] %vm21, -inf
    %50 = vst.msk [vmem:[#allocation2 + $0xe0] sm:$0xff] %vm21, -inf
    %51 = vst.msk [vmem:[#allocation2 + $0xe8] sm:$0xff] %vm21, -inf
    %52 = vst.msk [vmem:[#allocation2 + $0xf0] sm:$0xff] %vm21, -inf
    %53 = vst.msk [vmem:[#allocation2 + $0xf8] sm:$0xff] %vm21, -inf
    %54 = vst.msk [vmem:[#allocation3] sm:$0xff] %vm21, 0.0
    %55 = vst.msk [vmem:[#allocation3 + $0x8] sm:$0xff] %vm21, 0.0
    %56 = vst.msk [vmem:[#allocation3 + $0x10] sm:$0xff] %vm21, 0.0
    %57 = vst.msk [vmem:[#allocation3 + $0x18] sm:$0xff] %vm21, 0.0
    %58 = vst.msk [vmem:[#allocation3 + $0x20] sm:$0xff] %vm21, 0.0
    %59 = vst.msk [vmem:[#allocation3 + $0x28] sm:$0xff] %vm21, 0.0
    %60 = vst.msk [vmem:[#allocation3 + $0x30] sm:$0xff] %vm21, 0.0
    %61 = vst.msk [vmem:[#allocation3 + $0x38] sm:$0xff] %vm21, 0.0
    %62 = vst.msk [vmem:[#allocation3 + $0x40] sm:$0xff] %vm21, 0.0
    %63 = vst.msk [vmem:[#allocation3 + $0x48] sm:$0xff] %vm21, 0.0
    %64 = vst.msk [vmem:[#allocation3 + $0x50] sm:$0xff] %vm21, 0.0
    %65 = vst.msk [vmem:[#allocation3 + $0x58] sm:$0xff] %vm21, 0.0
    %66 = vst.msk [vmem:[#allocation3 + $0x60] sm:$0xff] %vm21, 0.0
    %67 = vst.msk [vmem:[#allocation3 + $0x68] sm:$0xff] %vm21, 0.0
    %68 = vst.msk [vmem:[#allocation3 + $0x70] sm:$0xff] %vm21, 0.0
    %69 = vst.msk [vmem:[#allocation3 + $0x78] sm:$0xff] %vm21, 0.0
    %70 = vst.msk [vmem:[#allocation3 + $0x80] sm:$0xff] %vm21, 0.0
    %71 = vst.msk [vmem:[#allocation3 + $0x88] sm:$0xff] %vm21, 0.0
    %72 = vst.msk [vmem:[#allocation3 + $0x90] sm:$0xff] %vm21, 0.0
    %73 = vst.msk [vmem:[#allocation3 + $0x98] sm:$0xff] %vm21, 0.0
    %74 = vst.msk [vmem:[#allocation3 + $0xa0] sm:$0xff] %vm21, 0.0
    %75 = vst.msk [vmem:[#allocation3 + $0xa8] sm:$0xff] %vm21, 0.0
    %76 = vst.msk [vmem:[#allocation3 + $0xb0] sm:$0xff] %vm21, 0.0
    %77 = vst.msk [vmem:[#allocation3 + $0xb8] sm:$0xff] %vm21, 0.0
    %78 = vst.msk [vmem:[#allocation3 + $0xc0] sm:$0xff] %vm21, 0.0
    %79 = vst.msk [vmem:[#allocation3 + $0xc8] sm:$0xff] %vm21, 0.0
    %80 = vst.msk [vmem:[#allocation3 + $0xd0] sm:$0xff] %vm21, 0.0
    %81 = vst.msk [vmem:[#allocation3 + $0xd8] sm:$0xff] %vm21, 0.0
    %82 = vst.msk [vmem:[#allocation3 + $0xe0] sm:$0xff] %vm21, 0.0
    %83 = vst.msk [vmem:[#allocation3 + $0xe8] sm:$0xff] %vm21, 0.0
    %84 = vst.msk [vmem:[#allocation3 + $0xf0] sm:$0xff] %vm21, 0.0
    %85 = vst.msk [vmem:[#allocation3 + $0xf8] sm:$0xff] %vm21, 0.0
    %vm86 = vcmask 64512
    %87 = vst.msk [vmem:[#allocation4] sm:$0xff] %vm86, 0.0
    %88 = vst.msk [vmem:[#allocation4 + $0x8] sm:$0xff] %vm86, 0.0
    %89 = vst.msk [vmem:[#allocation4 + $0x10] sm:$0xff] %vm86, 0.0
    %90 = vst.msk [vmem:[#allocation4 + $0x18] sm:$0xff] %vm86, 0.0
    %91 = vst.msk [vmem:[#allocation4 + $0x20] sm:$0xff] %vm86, 0.0
    %92 = vst.msk [vmem:[#allocation4 + $0x28] sm:$0xff] %vm86, 0.0
    %93 = vst.msk [vmem:[#allocation4 + $0x30] sm:$0xff] %vm86, 0.0
    %94 = vst.msk [vmem:[#allocation4 + $0x38] sm:$0xff] %vm86, 0.0
    %95 = vst.msk [vmem:[#allocation4 + $0x40] sm:$0xff] %vm86, 0.0
    %96 = vst.msk [vmem:[#allocation4 + $0x48] sm:$0xff] %vm86, 0.0
    %97 = vst.msk [vmem:[#allocation4 + $0x50] sm:$0xff] %vm86, 0.0
    %98 = vst.msk [vmem:[#allocation4 + $0x58] sm:$0xff] %vm86, 0.0
    %99 = vst.msk [vmem:[#allocation4 + $0x60] sm:$0xff] %vm86, 0.0
    %100 = vst.msk [vmem:[#allocation4 + $0x68] sm:$0xff] %vm86, 0.0
    %101 = vst.msk [vmem:[#allocation4 + $0x70] sm:$0xff] %vm86, 0.0
    %102 = vst.msk [vmem:[#allocation4 + $0x78] sm:$0xff] %vm86, 0.0
    %103 = vst.msk [vmem:[#allocation4 + $0x80] sm:$0xff] %vm86, 0.0
    %104 = vst.msk [vmem:[#allocation4 + $0x88] sm:$0xff] %vm86, 0.0
    %105 = vst.msk [vmem:[#allocation4 + $0x90] sm:$0xff] %vm86, 0.0
    %106 = vst.msk [vmem:[#allocation4 + $0x98] sm:$0xff] %vm86, 0.0
    %107 = vst.msk [vmem:[#allocation4 + $0xa0] sm:$0xff] %vm86, 0.0
    %108 = vst.msk [vmem:[#allocation4 + $0xa8] sm:$0xff] %vm86, 0.0
    %109 = vst.msk [vmem:[#allocation4 + $0xb0] sm:$0xff] %vm86, 0.0
    %110 = vst.msk [vmem:[#allocation4 + $0xb8] sm:$0xff] %vm86, 0.0
    %111 = vst.msk [vmem:[#allocation4 + $0xc0] sm:$0xff] %vm86, 0.0
    %112 = vst.msk [vmem:[#allocation4 + $0xc8] sm:$0xff] %vm86, 0.0
    %113 = vst.msk [vmem:[#allocation4 + $0xd0] sm:$0xff] %vm86, 0.0
    %114 = vst.msk [vmem:[#allocation4 + $0xd8] sm:$0xff] %vm86, 0.0
    %115 = vst.msk [vmem:[#allocation4 + $0xe0] sm:$0xff] %vm86, 0.0
    %116 = vst.msk [vmem:[#allocation4 + $0xe8] sm:$0xff] %vm86, 0.0
    %117 = vst.msk [vmem:[#allocation4 + $0xf0] sm:$0xff] %vm86, 0.0
    %118 = vst.msk [vmem:[#allocation4 + $0xf8] sm:$0xff] %vm86, 0.0
  $region21: #{model_forward.15} parent=0 // pred_fallthru
    _
  %v119 = vld [vmem:[%s0] sm:$0xff]
  %v120 = vld [vmem:[%s0 + $0x8] sm:$0xff]
  %v121 = vld [vmem:[%s0 + $0x10] sm:$0xff]
  %v122 = vld [vmem:[%s0 + $0x18] sm:$0xff]
  %v123 = vld [vmem:[%s0 + $0x20] sm:$0xff]
  %v124 = vld [vmem:[%s0 + $0x28] sm:$0xff]
  %v125 = vld [vmem:[%s0 + $0x30] sm:$0xff]
  %v126 = vld [vmem:[%s0 + $0x38] sm:$0xff]
  %v127 = vld [vmem:[%s0 + $0x40] sm:$0xff]
  %v128 = vld [vmem:[%s0 + $0x48] sm:$0xff]
  %v129 = vld [vmem:[%s0 + $0x50] sm:$0xff]
  %v130 = vld [vmem:[%s0 + $0x58] sm:$0xff]
  %v131 = vld [vmem:[%s0 + $0x60] sm:$0xff]
  %v132 = vld [vmem:[%s0 + $0x68] sm:$0xff]
  %v133 = vld [vmem:[%s0 + $0x70] sm:$0xff]
  %v134 = vld [vmem:[%s0 + $0x78] sm:$0xff]
  %v135 = vld [vmem:[%s0 + $0x80] sm:$0xff]
  %v136 = vld [vmem:[%s0 + $0x88] sm:$0xff]
  %v137 = vld [vmem:[%s0 + $0x90] sm:$0xff]
  %v138 = vld [vmem:[%s0 + $0x98] sm:$0xff]
  %v139 = vld [vmem:[%s0 + $0xa0] sm:$0xff]
  %v140 = vld [vmem:[%s0 + $0xa8] sm:$0xff]
  %v141 = vld [vmem:[%s0 + $0xb0] sm:$0xff]
  %v142 = vld [vmem:[%s0 + $0xb8] sm:$0xff]
  %v143 = vld [vmem:[%s0 + $0xc0] sm:$0xff]
  %v144 = vld [vmem:[%s0 + $0xc8] sm:$0xff]
  %v145 = vld [vmem:[%s0 + $0xd0] sm:$0xff]
  %v146 = vld [vmem:[%s0 + $0xd8] sm:$0xff]
  %v147 = vld [vmem:[%s0 + $0xe0] sm:$0xff]
  %v148 = vld [vmem:[%s0 + $0xe8] sm:$0xff]
  %v149 = vld [vmem:[%s0 + $0xf0] sm:$0xff]
  %v150 = vld [vmem:[%s0 + $0xf8] sm:$0xff]
  %v151 = vld [vmem:[%s1] sm:$0x1]
  %v152 = vld [vmem:[%s1 + $0x1] sm:$0x1]
  %154 = vset.pattern.permute.xlu0 0
  %155 = vperm.xlu0 %154, %v119
  %v156 = vpop.permute.xlu0 %155
  %159 = vset.pattern.permute.xlu0 0
  %160 = vperm.xlu0 %159, %v120
  %v161 = vpop.permute.xlu0 %160
  %164 = vset.pattern.permute.xlu0 0
  %165 = vperm.xlu0 %164, %v121
  %v166 = vpop.permute.xlu0 %165
  %169 = vset.pattern.permute.xlu0 0
  %170 = vperm.xlu0 %169, %v122
  %v171 = vpop.permute.xlu0 %170
  %174 = vset.pattern.permute.xlu0 0
  %175 = vperm.xlu0 %174, %v123
  %v176 = vpop.permute.xlu0 %175
  %179 = vset.pattern.permute.xlu0 0
  %180 = vperm.xlu0 %179, %v124
  %v181 = vpop.permute.xlu0 %180
  %184 = vset.pattern.permute.xlu0 0
  %185 = vperm.xlu0 %184, %v125
  %v186 = vpop.permute.xlu0 %185
  %189 = vset.pattern.permute.xlu0 0
  %190 = vperm.xlu0 %189, %v126
  %v191 = vpop.permute.xlu0 %190
  %194 = vset.pattern.permute.xlu0 0
  %195 = vperm.xlu0 %194, %v127
  %v196 = vpop.permute.xlu0 %195
  %199 = vset.pattern.permute.xlu0 0
  %200 = vperm.xlu0 %199, %v128
  %v201 = vpop.permute.xlu0 %200
  %204 = vset.pattern.permute.xlu0 0
  %205 = vperm.xlu0 %204, %v129
  %v206 = vpop.permute.xlu0 %205
  %209 = vset.pattern.permute.xlu0 0
  %210 = vperm.xlu0 %209, %v130
  %v211 = vpop.permute.xlu0 %210
  %214 = vset.pattern.permute.xlu0 0
  %215 = vperm.xlu0 %214, %v131
  %v216 = vpop.permute.xlu0 %215
  %219 = vset.pattern.permute.xlu0 0
  %220 = vperm.xlu0 %219, %v132
  %v221 = vpop.permute.xlu0 %220
  %224 = vset.pattern.permute.xlu0 0
  %225 = vperm.xlu0 %224, %v133
  %v226 = vpop.permute.xlu0 %225
  %229 = vset.pattern.permute.xlu0 0
  %230 = vperm.xlu0 %229, %v134
  %v231 = vpop.permute.xlu0 %230
  %234 = vset.pattern.permute.xlu0 0
  %235 = vperm.xlu0 %234, %v135
  %v236 = vpop.permute.xlu0 %235
  %239 = vset.pattern.permute.xlu0 0
  %240 = vperm.xlu0 %239, %v136
  %v241 = vpop.permute.xlu0 %240
  %244 = vset.pattern.permute.xlu0 0
  %245 = vperm.xlu0 %244, %v137
  %v246 = vpop.permute.xlu0 %245
  %249 = vset.pattern.permute.xlu0 0
  %250 = vperm.xlu0 %249, %v138
  %v251 = vpop.permute.xlu0 %250
  %254 = vset.pattern.permute.xlu0 0
  %255 = vperm.xlu0 %254, %v139
  %v256 = vpop.permute.xlu0 %255
  %259 = vset.pattern.permute.xlu0 0
  %260 = vperm.xlu0 %259, %v140
  %v261 = vpop.permute.xlu0 %260
  %264 = vset.pattern.permute.xlu0 0
  %265 = vperm.xlu0 %264, %v141
  %v266 = vpop.permute.xlu0 %265
  %269 = vset.pattern.permute.xlu0 0
  %270 = vperm.xlu0 %269, %v142
  %v271 = vpop.permute.xlu0 %270
  %274 = vset.pattern.permute.xlu0 0
  %275 = vperm.xlu0 %274, %v143
  %v276 = vpop.permute.xlu0 %275
  %279 = vset.pattern.permute.xlu0 0
  %280 = vperm.xlu0 %279, %v144
  %v281 = vpop.permute.xlu0 %280
  %284 = vset.pattern.permute.xlu0 0
  %285 = vperm.xlu0 %284, %v145
  %v286 = vpop.permute.xlu0 %285
  %289 = vset.pattern.permute.xlu0 0
  %290 = vperm.xlu0 %289, %v146
  %v291 = vpop.permute.xlu0 %290
  %294 = vset.pattern.permute.xlu0 0
  %295 = vperm.xlu0 %294, %v147
  %v296 = vpop.permute.xlu0 %295
  %299 = vset.pattern.permute.xlu0 0
  %300 = vperm.xlu0 %299, %v148
  %v301 = vpop.permute.xlu0 %300
  %304 = vset.pattern.permute.xlu0 0
  %305 = vperm.xlu0 %304, %v149
  %v306 = vpop.permute.xlu0 %305
  %309 = vset.pattern.permute.xlu0 0
  %310 = vperm.xlu0 %309, %v150
  %v311 = vpop.permute.xlu0 %310
  %v315 = vperm.slane %v151, 0
  %v316 = vperm.slane %v152, 0
  %v319 = vadd.f32 %v156, %v315
  %v320 = vadd.f32 %v161, %v315
  %v321 = vadd.f32 %v166, %v315
  %v322 = vadd.f32 %v171, %v315
  %v323 = vadd.f32 %v176, %v315
  %v324 = vadd.f32 %v181, %v315
  %v325 = vadd.f32 %v186, %v315
  %v326 = vadd.f32 %v191, %v315
  %v327 = vadd.f32 %v196, %v315
  %v328 = vadd.f32 %v201, %v315
  %v329 = vadd.f32 %v206, %v315
  %v330 = vadd.f32 %v211, %v315
  %v331 = vadd.f32 %v216, %v315
  %v332 = vadd.f32 %v221, %v315
  %v333 = vadd.f32 %v226, %v315
  %v334 = vadd.f32 %v231, %v315
  %v335 = vadd.f32 %v236, %v316
  %v336 = vadd.f32 %v241, %v316
  %v337 = vadd.f32 %v246, %v316
  %v338 = vadd.f32 %v251, %v316
  %v339 = vadd.f32 %v256, %v316
  %v340 = vadd.f32 %v261, %v316
  %v341 = vadd.f32 %v266, %v316
  %v342 = vadd.f32 %v271, %v316
  %v343 = vadd.f32 %v276, %v316
  %v344 = vadd.f32 %v281, %v316
  %v345 = vadd.f32 %v286, %v316
  %v346 = vadd.f32 %v291, %v316
  %v347 = vadd.f32 %v296, %v316
  %v348 = vadd.f32 %v301, %v316
  %v349 = vadd.f32 %v306, %v316
  %v350 = vadd.f32 %v311, %v316
  %vm351 = vcmp.gt.f32.partialorder %v319, 0.0
  %vm352 = vcmp.gt.f32.partialorder %v320, 0.0
  %vm353 = vcmp.gt.f32.partialorder %v321, 0.0
  %vm354 = vcmp.gt.f32.partialorder %v322, 0.0
  %vm355 = vcmp.gt.f32.partialorder %v323, 0.0
  %vm356 = vcmp.gt.f32.partialorder %v324, 0.0
  %vm357 = vcmp.gt.f32.partialorder %v325, 0.0
  %vm358 = vcmp.gt.f32.partialorder %v326, 0.0
  %vm359 = vcmp.gt.f32.partialorder %v327, 0.0
  %vm360 = vcmp.gt.f32.partialorder %v328, 0.0
  %vm361 = vcmp.gt.f32.partialorder %v329, 0.0
  %vm362 = vcmp.gt.f32.partialorder %v330, 0.0
  %vm363 = vcmp.gt.f32.partialorder %v331, 0.0
  %vm364 = vcmp.gt.f32.partialorder %v332, 0.0
  %vm365 = vcmp.gt.f32.partialorder %v333, 0.0
  %vm366 = vcmp.gt.f32.partialorder %v334, 0.0
  %vm367 = vcmp.gt.f32.partialorder %v335, 0.0
  %vm368 = vcmp.gt.f32.partialorder %v336, 0.0
  %vm369 = vcmp.gt.f32.partialorder %v337, 0.0
  %vm370 = vcmp.gt.f32.partialorder %v338, 0.0
  %vm371 = vcmp.gt.f32.partialorder %v339, 0.0
  %vm372 = vcmp.gt.f32.partialorder %v340, 0.0
  %vm373 = vcmp.gt.f32.partialorder %v341, 0.0
  %vm374 = vcmp.gt.f32.partialorder %v342, 0.0
  %vm375 = vcmp.gt.f32.partialorder %v343, 0.0
  %vm376 = vcmp.gt.f32.partialorder %v344, 0.0
  %vm377 = vcmp.gt.f32.partialorder %v345, 0.0
  %vm378 = vcmp.gt.f32.partialorder %v346, 0.0
  %vm379 = vcmp.gt.f32.partialorder %v347, 0.0
  %vm380 = vcmp.gt.f32.partialorder %v348, 0.0
  %vm381 = vcmp.gt.f32.partialorder %v349, 0.0
  %vm382 = vcmp.gt.f32.partialorder %v350, 0.0
  %v383 = vmul.f32 %v319, 0.2
  %v384 = vmul.f32 %v320, 0.2
  %v385 = vmul.f32 %v321, 0.2
  %v386 = vmul.f32 %v322, 0.2
  %v387 = vmul.f32 %v323, 0.2
  %v388 = vmul.f32 %v324, 0.2
  %v389 = vmul.f32 %v325, 0.2
  %v390 = vmul.f32 %v326, 0.2
  %v391 = vmul.f32 %v327, 0.2
  %v392 = vmul.f32 %v328, 0.2
  %v393 = vmul.f32 %v329, 0.2
  %v394 = vmul.f32 %v330, 0.2
  %v395 = vmul.f32 %v331, 0.2
  %v396 = vmul.f32 %v332, 0.2
  %v397 = vmul.f32 %v333, 0.2
  %v398 = vmul.f32 %v334, 0.2
  %v399 = vmul.f32 %v335, 0.2
  %v400 = vmul.f32 %v336, 0.2
  %v401 = vmul.f32 %v337, 0.2
  %v402 = vmul.f32 %v338, 0.2
  %v403 = vmul.f32 %v339, 0.2
  %v404 = vmul.f32 %v340, 0.2
  %v405 = vmul.f32 %v341, 0.2
  %v406 = vmul.f32 %v342, 0.2
  %v407 = vmul.f32 %v343, 0.2
  %v408 = vmul.f32 %v344, 0.2
  %v409 = vmul.f32 %v345, 0.2
  %v410 = vmul.f32 %v346, 0.2
  %v411 = vmul.f32 %v347, 0.2
  %v412 = vmul.f32 %v348, 0.2
  %v413 = vmul.f32 %v349, 0.2
  %v414 = vmul.f32 %v350, 0.2
  %v415 = vsel %vm351, %v319, %v383
  %v416 = vsel %vm352, %v320, %v384
  %v417 = vsel %vm353, %v321, %v385
  %v418 = vsel %vm354, %v322, %v386
  %v419 = vsel %vm355, %v323, %v387
  %v420 = vsel %vm356, %v324, %v388
  %v421 = vsel %vm357, %v325, %v389
  %v422 = vsel %vm358, %v326, %v390
  %v423 = vsel %vm359, %v327, %v391
  %v424 = vsel %vm360, %v328, %v392
  %v425 = vsel %vm361, %v329, %v393
  %v426 = vsel %vm362, %v330, %v394
  %v427 = vsel %vm363, %v331, %v395
  %v428 = vsel %vm364, %v332, %v396
  %v429 = vsel %vm365, %v333, %v397
  %v430 = vsel %vm366, %v334, %v398
  %v431 = vsel %vm367, %v335, %v399
  %v432 = vsel %vm368, %v336, %v400
  %v433 = vsel %vm369, %v337, %v401
  %v434 = vsel %vm370, %v338, %v402
  %v435 = vsel %vm371, %v339, %v403
  %v436 = vsel %vm372, %v340, %v404
  %v437 = vsel %vm373, %v341, %v405
  %v438 = vsel %vm374, %v342, %v406
  %v439 = vsel %vm375, %v343, %v407
  %v440 = vsel %vm376, %v344, %v408
  %v441 = vsel %vm377, %v345, %v409
  %v442 = vsel %vm378, %v346, %v410
  %v443 = vsel %vm379, %v347, %v411
  %v444 = vsel %vm380, %v348, %v412
  %v445 = vsel %vm381, %v349, %v413
  %v446 = vsel %vm382, %v350, %v414
  %v447 = vld [vmem:[%s2] sm:$0xf]
  %v448 = vld [vmem:[%s2 + $0x4] sm:$0xf]
  %v449 = vld [vmem:[%s2 + $0x8] sm:$0xf]
  %v450 = vld [vmem:[%s2 + $0xc] sm:$0xf]
  %v451 = vld [vmem:[%s2 + $0x10] sm:$0xf]
  %v452 = vld [vmem:[%s2 + $0x14] sm:$0xf]
  %v453 = vld [vmem:[%s2 + $0x18] sm:$0xf]
  %v454 = vld [vmem:[%s2 + $0x1c] sm:$0xf]
  %v455 = vld [vmem:[%s2 + $0x20] sm:$0xf]
  %v456 = vld [vmem:[%s2 + $0x24] sm:$0xf]
  %v457 = vld [vmem:[%s2 + $0x28] sm:$0xf]
  %v458 = vld [vmem:[%s2 + $0x2c] sm:$0xf]
  %v459 = vld [vmem:[%s2 + $0x30] sm:$0xf]
  %v460 = vld [vmem:[%s2 + $0x34] sm:$0xf]
  %v461 = vld [vmem:[%s2 + $0x38] sm:$0xf]
  %v462 = vld [vmem:[%s2 + $0x3c] sm:$0xf]
  %v463 = vunpack.c.l.bf16 %v447
  %v464 = vunpack.c.l.bf16 %v448
  %v465 = vunpack.c.l.bf16 %v449
  %v466 = vunpack.c.l.bf16 %v450
  %v467 = vunpack.c.l.bf16 %v451
  %v468 = vunpack.c.l.bf16 %v452
  %v469 = vunpack.c.l.bf16 %v453
  %v470 = vunpack.c.l.bf16 %v454
  %v471 = vunpack.c.l.bf16 %v455
  %v472 = vunpack.c.l.bf16 %v456
  %v473 = vunpack.c.l.bf16 %v457
  %v474 = vunpack.c.l.bf16 %v458
  %v475 = vunpack.c.l.bf16 %v459
  %v476 = vunpack.c.l.bf16 %v460
  %v477 = vunpack.c.l.bf16 %v461
  %v478 = vunpack.c.l.bf16 %v462
  %vm479 = vcmp.gt.f32.partialorder %v463, 0.0
  %vm480 = vcmp.gt.f32.partialorder %v464, 0.0
  %vm481 = vcmp.gt.f32.partialorder %v465, 0.0
  %vm482 = vcmp.gt.f32.partialorder %v466, 0.0
  %vm483 = vcmp.gt.f32.partialorder %v467, 0.0
  %vm484 = vcmp.gt.f32.partialorder %v468, 0.0
  %vm485 = vcmp.gt.f32.partialorder %v469, 0.0
  %vm486 = vcmp.gt.f32.partialorder %v470, 0.0
  %vm487 = vcmp.gt.f32.partialorder %v471, 0.0
  %vm488 = vcmp.gt.f32.partialorder %v472, 0.0
  %vm489 = vcmp.gt.f32.partialorder %v473, 0.0
  %vm490 = vcmp.gt.f32.partialorder %v474, 0.0
  %vm491 = vcmp.gt.f32.partialorder %v475, 0.0
  %vm492 = vcmp.gt.f32.partialorder %v476, 0.0
  %vm493 = vcmp.gt.f32.partialorder %v477, 0.0
  %vm494 = vcmp.gt.f32.partialorder %v478, 0.0
  %v495 = vsel %vm479, 1, 0
  %v496 = vsel %vm480, 1, 0
  %v497 = vsel %vm481, 1, 0
  %v498 = vsel %vm482, 1, 0
  %v499 = vsel %vm483, 1, 0
  %v500 = vsel %vm484, 1, 0
  %v501 = vsel %vm485, 1, 0
  %v502 = vsel %vm486, 1, 0
  %v503 = vsel %vm487, 1, 0
  %v504 = vsel %vm488, 1, 0
  %v505 = vsel %vm489, 1, 0
  %v506 = vsel %vm490, 1, 0
  %v507 = vsel %vm491, 1, 0
  %v508 = vsel %vm492, 1, 0
  %v509 = vsel %vm493, 1, 0
  %v510 = vsel %vm494, 1, 0
  %vm511 = vcmp.eq.s32.totalorder %v495, 1
  %vm512 = vcmp.eq.s32.totalorder %v496, 1
  %vm513 = vcmp.eq.s32.totalorder %v497, 1
  %vm514 = vcmp.eq.s32.totalorder %v498, 1
  %vm515 = vcmp.eq.s32.totalorder %v499, 1
  %vm516 = vcmp.eq.s32.totalorder %v500, 1
  %vm517 = vcmp.eq.s32.totalorder %v501, 1
  %vm518 = vcmp.eq.s32.totalorder %v502, 1
  %vm519 = vcmp.eq.s32.totalorder %v503, 1
  %vm520 = vcmp.eq.s32.totalorder %v504, 1
  %vm521 = vcmp.eq.s32.totalorder %v505, 1
  %vm522 = vcmp.eq.s32.totalorder %v506, 1
  %vm523 = vcmp.eq.s32.totalorder %v507, 1
  %vm524 = vcmp.eq.s32.totalorder %v508, 1
  %vm525 = vcmp.eq.s32.totalorder %v509, 1
  %vm526 = vcmp.eq.s32.totalorder %v510, 1
  %v527 = vsel %vm511, %v415, -9e+15
  %v528 = vsel %vm512, %v416, -9e+15
  %v529 = vsel %vm513, %v417, -9e+15
  %v530 = vsel %vm514, %v418, -9e+15
  %v531 = vsel %vm515, %v419, -9e+15
  %v532 = vsel %vm516, %v420, -9e+15
  %v533 = vsel %vm517, %v421, -9e+15
  %v534 = vsel %vm518, %v422, -9e+15
  %v535 = vsel %vm519, %v423, -9e+15
  %v536 = vsel %vm520, %v424, -9e+15
  %v537 = vsel %vm521, %v425, -9e+15
  %v538 = vsel %vm522, %v426, -9e+15
  %v539 = vsel %vm523, %v427, -9e+15
  %v540 = vsel %vm524, %v428, -9e+15
  %v541 = vsel %vm525, %v429, -9e+15
  %v542 = vsel %vm526, %v430, -9e+15
  %v543 = vsel %vm511, %v431, -9e+15
  %v544 = vsel %vm512, %v432, -9e+15
  %v545 = vsel %vm513, %v433, -9e+15
  %v546 = vsel %vm514, %v434, -9e+15
  %v547 = vsel %vm515, %v435, -9e+15
  %v548 = vsel %vm516, %v436, -9e+15
  %v549 = vsel %vm517, %v437, -9e+15
  %v550 = vsel %vm518, %v438, -9e+15
  %v551 = vsel %vm519, %v439, -9e+15
  %v552 = vsel %vm520, %v440, -9e+15
  %v553 = vsel %vm521, %v441, -9e+15
  %v554 = vsel %vm522, %v442, -9e+15
  %v555 = vsel %vm523, %v443, -9e+15
  %v556 = vsel %vm524, %v444, -9e+15
  %v557 = vsel %vm525, %v445, -9e+15
  %v558 = vsel %vm526, %v446, -9e+15
  %v559 = vld [vmem:[#allocation2] sm:$0xff]
  %v560 = vld [vmem:[#allocation2 + $0x8] sm:$0xff]
  %v561 = vld [vmem:[#allocation2 + $0x10] sm:$0xff]
  %v562 = vld [vmem:[#allocation2 + $0x18] sm:$0xff]
  %v563 = vld [vmem:[#allocation2 + $0x20] sm:$0xff]
  %v564 = vld [vmem:[#allocation2 + $0x28] sm:$0xff]
  %v565 = vld [vmem:[#allocation2 + $0x30] sm:$0xff]
  %v566 = vld [vmem:[#allocation2 + $0x38] sm:$0xff]
  %v567 = vld [vmem:[#allocation2 + $0x40] sm:$0xff]
  %v568 = vld [vmem:[#allocation2 + $0x48] sm:$0xff]
  %v569 = vld [vmem:[#allocation2 + $0x50] sm:$0xff]
  %v570 = vld [vmem:[#allocation2 + $0x58] sm:$0xff]
  %v571 = vld [vmem:[#allocation2 + $0x60] sm:$0xff]
  %v572 = vld [vmem:[#allocation2 + $0x68] sm:$0xff]
  %v573 = vld [vmem:[#allocation2 + $0x70] sm:$0xff]
  %v574 = vld [vmem:[#allocation2 + $0x78] sm:$0xff]
  %v575 = vld [vmem:[#allocation2 + $0x80] sm:$0xff]
  %v576 = vld [vmem:[#allocation2 + $0x88] sm:$0xff]
  %v577 = vld [vmem:[#allocation2 + $0x90] sm:$0xff]
  %v578 = vld [vmem:[#allocation2 + $0x98] sm:$0xff]
  %v579 = vld [vmem:[#allocation2 + $0xa0] sm:$0xff]
  %v580 = vld [vmem:[#allocation2 + $0xa8] sm:$0xff]
  %v581 = vld [vmem:[#allocation2 + $0xb0] sm:$0xff]
  %v582 = vld [vmem:[#allocation2 + $0xb8] sm:$0xff]
  %v583 = vld [vmem:[#allocation2 + $0xc0] sm:$0xff]
  %v584 = vld [vmem:[#allocation2 + $0xc8] sm:$0xff]
  %v585 = vld [vmem:[#allocation2 + $0xd0] sm:$0xff]
  %v586 = vld [vmem:[#allocation2 + $0xd8] sm:$0xff]
  %v587 = vld [vmem:[#allocation2 + $0xe0] sm:$0xff]
  %v588 = vld [vmem:[#allocation2 + $0xe8] sm:$0xff]
  %v589 = vld [vmem:[#allocation2 + $0xf0] sm:$0xff]
  %v590 = vld [vmem:[#allocation2 + $0xf8] sm:$0xff]
  %591 = vmax.xlane.f32.xlu0 %v527
  %v592 = vpop.xlane.xlu0 %591
  %593 = vmax.xlane.f32.xlu0 %v528
  %v594 = vpop.xlane.xlu0 %593
  %595 = vmax.xlane.f32.xlu0 %v529
  %v596 = vpop.xlane.xlu0 %595
  %597 = vmax.xlane.f32.xlu0 %v530
  %v598 = vpop.xlane.xlu0 %597
  %599 = vmax.xlane.f32.xlu0 %v531
  %v600 = vpop.xlane.xlu0 %599
  %601 = vmax.xlane.f32.xlu0 %v532
  %v602 = vpop.xlane.xlu0 %601
  %603 = vmax.xlane.f32.xlu0 %v533
  %v604 = vpop.xlane.xlu0 %603
  %605 = vmax.xlane.f32.xlu0 %v534
  %v606 = vpop.xlane.xlu0 %605
  %607 = vmax.xlane.f32.xlu0 %v535
  %v608 = vpop.xlane.xlu0 %607
  %609 = vmax.xlane.f32.xlu0 %v536
  %v610 = vpop.xlane.xlu0 %609
  %611 = vmax.xlane.f32.xlu0 %v537
  %v612 = vpop.xlane.xlu0 %611
  %613 = vmax.xlane.f32.xlu0 %v538
  %v614 = vpop.xlane.xlu0 %613
  %615 = vmax.xlane.f32.xlu0 %v539
  %v616 = vpop.xlane.xlu0 %615
  %617 = vmax.xlane.f32.xlu0 %v540
  %v618 = vpop.xlane.xlu0 %617
  %619 = vmax.xlane.f32.xlu0 %v541
  %v620 = vpop.xlane.xlu0 %619
  %621 = vmax.xlane.f32.xlu0 %v542
  %v622 = vpop.xlane.xlu0 %621
  %623 = vmax.xlane.f32.xlu0 %v543
  %v624 = vpop.xlane.xlu0 %623
  %625 = vmax.xlane.f32.xlu0 %v544
  %v626 = vpop.xlane.xlu0 %625
  %627 = vmax.xlane.f32.xlu0 %v545
  %v628 = vpop.xlane.xlu0 %627
  %629 = vmax.xlane.f32.xlu0 %v546
  %v630 = vpop.xlane.xlu0 %629
  %631 = vmax.xlane.f32.xlu0 %v547
  %v632 = vpop.xlane.xlu0 %631
  %633 = vmax.xlane.f32.xlu0 %v548
  %v634 = vpop.xlane.xlu0 %633
  %635 = vmax.xlane.f32.xlu0 %v549
  %v636 = vpop.xlane.xlu0 %635
  %637 = vmax.xlane.f32.xlu0 %v550
  %v638 = vpop.xlane.xlu0 %637
  %639 = vmax.xlane.f32.xlu0 %v551
  %v640 = vpop.xlane.xlu0 %639
  %641 = vmax.xlane.f32.xlu0 %v552
  %v642 = vpop.xlane.xlu0 %641
  %643 = vmax.xlane.f32.xlu0 %v553
  %v644 = vpop.xlane.xlu0 %643
  %645 = vmax.xlane.f32.xlu0 %v554
  %v646 = vpop.xlane.xlu0 %645
  %647 = vmax.xlane.f32.xlu0 %v555
  %v648 = vpop.xlane.xlu0 %647
  %649 = vmax.xlane.f32.xlu0 %v556
  %v650 = vpop.xlane.xlu0 %649
  %651 = vmax.xlane.f32.xlu0 %v557
  %v652 = vpop.xlane.xlu0 %651
  %653 = vmax.xlane.f32.xlu0 %v558
  %v654 = vpop.xlane.xlu0 %653
  %v655 = vmax.f32 %v559, %v592
  %v656 = vmax.f32 %v560, %v594
  %v657 = vmax.f32 %v561, %v596
  %v658 = vmax.f32 %v562, %v598
  %v659 = vmax.f32 %v563, %v600
  %v660 = vmax.f32 %v564, %v602
  %v661 = vmax.f32 %v565, %v604
  %v662 = vmax.f32 %v566, %v606
  %v663 = vmax.f32 %v567, %v608
  %v664 = vmax.f32 %v568, %v610
  %v665 = vmax.f32 %v569, %v612
  %v666 = vmax.f32 %v570, %v614
  %v667 = vmax.f32 %v571, %v616
  %v668 = vmax.f32 %v572, %v618
  %v669 = vmax.f32 %v573, %v620
  %v670 = vmax.f32 %v574, %v622
  %v671 = vmax.f32 %v575, %v624
  %v672 = vmax.f32 %v576, %v626
  %v673 = vmax.f32 %v577, %v628
  %v674 = vmax.f32 %v578, %v630
  %v675 = vmax.f32 %v579, %v632
  %v676 = vmax.f32 %v580, %v634
  %v677 = vmax.f32 %v581, %v636
  %v678 = vmax.f32 %v582, %v638
  %v679 = vmax.f32 %v583, %v640
  %v680 = vmax.f32 %v584, %v642
  %v681 = vmax.f32 %v585, %v644
  %v682 = vmax.f32 %v586, %v646
  %v683 = vmax.f32 %v587, %v648
  %v684 = vmax.f32 %v588, %v650
  %v685 = vmax.f32 %v589, %v652
  %v686 = vmax.f32 %v590, %v654
  %v687 = vsub.f32 %v559, %v655
  %v688 = vsub.f32 %v560, %v656
  %v689 = vsub.f32 %v561, %v657
  %v690 = vsub.f32 %v562, %v658
  %v691 = vsub.f32 %v563, %v659
  %v692 = vsub.f32 %v564, %v660
  %v693 = vsub.f32 %v565, %v661
  %v694 = vsub.f32 %v566, %v662
  %v695 = vsub.f32 %v567, %v663
  %v696 = vsub.f32 %v568, %v664
  %v697 = vsub.f32 %v569, %v665
  %v698 = vsub.f32 %v570, %v666
  %v699 = vsub.f32 %v571, %v667
  %v700 = vsub.f32 %v572, %v668
  %v701 = vsub.f32 %v573, %v669
  %v702 = vsub.f32 %v574, %v670
  %v703 = vsub.f32 %v575, %v671
  %v704 = vsub.f32 %v576, %v672
  %v705 = vsub.f32 %v577, %v673
  %v706 = vsub.f32 %v578, %v674
  %v707 = vsub.f32 %v579, %v675
  %v708 = vsub.f32 %v580, %v676
  %v709 = vsub.f32 %v581, %v677
  %v710 = vsub.f32 %v582, %v678
  %v711 = vsub.f32 %v583, %v679
  %v712 = vsub.f32 %v584, %v680
  %v713 = vsub.f32 %v585, %v681
  %v714 = vsub.f32 %v586, %v682
  %v715 = vsub.f32 %v587, %v683
  %v716 = vsub.f32 %v588, %v684
  %v717 = vsub.f32 %v589, %v685
  %v718 = vsub.f32 %v590, %v686
  %v719 = vmul.f32 %v687, 1.442695
  %v720 = vpow.pop %v719
  %v721 = vmul.f32 %v688, 1.442695
  %v722 = vpow.pop %v721
  %v723 = vmul.f32 %v689, 1.442695
  %v724 = vpow.pop %v723
  %v725 = vmul.f32 %v690, 1.442695
  %v726 = vpow.pop %v725
  %v727 = vmul.f32 %v691, 1.442695
  %v728 = vpow.pop %v727
  %v729 = vmul.f32 %v692, 1.442695
  %v730 = vpow.pop %v729
  %v731 = vmul.f32 %v693, 1.442695
  %v732 = vpow.pop %v731
  %v733 = vmul.f32 %v694, 1.442695
  %v734 = vpow.pop %v733
  %v735 = vmul.f32 %v695, 1.442695
  %v736 = vpow.pop %v735
  %v737 = vmul.f32 %v696, 1.442695
  %v738 = vpow.pop %v737
  %v739 = vmul.f32 %v697, 1.442695
  %v740 = vpow.pop %v739
  %v741 = vmul.f32 %v698, 1.442695
  %v742 = vpow.pop %v741
  %v743 = vmul.f32 %v699, 1.442695
  %v744 = vpow.pop %v743
  %v745 = vmul.f32 %v700, 1.442695
  %v746 = vpow.pop %v745
  %v747 = vmul.f32 %v701, 1.442695
  %v748 = vpow.pop %v747
  %v749 = vmul.f32 %v702, 1.442695
  %v750 = vpow.pop %v749
  %v751 = vmul.f32 %v703, 1.442695
  %v752 = vpow.pop %v751
  %v753 = vmul.f32 %v704, 1.442695
  %v754 = vpow.pop %v753
  %v755 = vmul.f32 %v705, 1.442695
  %v756 = vpow.pop %v755
  %v757 = vmul.f32 %v706, 1.442695
  %v758 = vpow.pop %v757
  %v759 = vmul.f32 %v707, 1.442695
  %v760 = vpow.pop %v759
  %v761 = vmul.f32 %v708, 1.442695
  %v762 = vpow.pop %v761
  %v763 = vmul.f32 %v709, 1.442695
  %v764 = vpow.pop %v763
  %v765 = vmul.f32 %v710, 1.442695
  %v766 = vpow.pop %v765
  %v767 = vmul.f32 %v711, 1.442695
  %v768 = vpow.pop %v767
  %v769 = vmul.f32 %v712, 1.442695
  %v770 = vpow.pop %v769
  %v771 = vmul.f32 %v713, 1.442695
  %v772 = vpow.pop %v771
  %v773 = vmul.f32 %v714, 1.442695
  %v774 = vpow.pop %v773
  %v775 = vmul.f32 %v715, 1.442695
  %v776 = vpow.pop %v775
  %v777 = vmul.f32 %v716, 1.442695
  %v778 = vpow.pop %v777
  %v779 = vmul.f32 %v717, 1.442695
  %v780 = vpow.pop %v779
  %v781 = vmul.f32 %v718, 1.442695
  %v782 = vpow.pop %v781
  %784 = vset.pattern.permute.xlu0 0
  %785 = vperm.xlu0 %784, %v655
  %v786 = vpop.permute.xlu0 %785
  %789 = vset.pattern.permute.xlu0 0
  %790 = vperm.xlu0 %789, %v656
  %v791 = vpop.permute.xlu0 %790
  %794 = vset.pattern.permute.xlu0 0
  %795 = vperm.xlu0 %794, %v657
  %v796 = vpop.permute.xlu0 %795
  %799 = vset.pattern.permute.xlu0 0
  %800 = vperm.xlu0 %799, %v658
  %v801 = vpop.permute.xlu0 %800
  %804 = vset.pattern.permute.xlu0 0
  %805 = vperm.xlu0 %804, %v659
  %v806 = vpop.permute.xlu0 %805
  %809 = vset.pattern.permute.xlu0 0
  %810 = vperm.xlu0 %809, %v660
  %v811 = vpop.permute.xlu0 %810
  %814 = vset.pattern.permute.xlu0 0
  %815 = vperm.xlu0 %814, %v661
  %v816 = vpop.permute.xlu0 %815
  %819 = vset.pattern.permute.xlu0 0
  %820 = vperm.xlu0 %819, %v662
  %v821 = vpop.permute.xlu0 %820
  %824 = vset.pattern.permute.xlu0 0
  %825 = vperm.xlu0 %824, %v663
  %v826 = vpop.permute.xlu0 %825
  %829 = vset.pattern.permute.xlu0 0
  %830 = vperm.xlu0 %829, %v664
  %v831 = vpop.permute.xlu0 %830
  %834 = vset.pattern.permute.xlu0 0
  %835 = vperm.xlu0 %834, %v665
  %v836 = vpop.permute.xlu0 %835
  %839 = vset.pattern.permute.xlu0 0
  %840 = vperm.xlu0 %839, %v666
  %v841 = vpop.permute.xlu0 %840
  %844 = vset.pattern.permute.xlu0 0
  %845 = vperm.xlu0 %844, %v667
  %v846 = vpop.permute.xlu0 %845
  %849 = vset.pattern.permute.xlu0 0
  %850 = vperm.xlu0 %849, %v668
  %v851 = vpop.permute.xlu0 %850
  %854 = vset.pattern.permute.xlu0 0
  %855 = vperm.xlu0 %854, %v669
  %v856 = vpop.permute.xlu0 %855
  %859 = vset.pattern.permute.xlu0 0
  %860 = vperm.xlu0 %859, %v670
  %v861 = vpop.permute.xlu0 %860
  %864 = vset.pattern.permute.xlu0 0
  %865 = vperm.xlu0 %864, %v671
  %v866 = vpop.permute.xlu0 %865
  %869 = vset.pattern.permute.xlu0 0
  %870 = vperm.xlu0 %869, %v672
  %v871 = vpop.permute.xlu0 %870
  %874 = vset.pattern.permute.xlu0 0
  %875 = vperm.xlu0 %874, %v673
  %v876 = vpop.permute.xlu0 %875
  %879 = vset.pattern.permute.xlu0 0
  %880 = vperm.xlu0 %879, %v674
  %v881 = vpop.permute.xlu0 %880
  %884 = vset.pattern.permute.xlu0 0
  %885 = vperm.xlu0 %884, %v675
  %v886 = vpop.permute.xlu0 %885
  %889 = vset.pattern.permute.xlu0 0
  %890 = vperm.xlu0 %889, %v676
  %v891 = vpop.permute.xlu0 %890
  %894 = vset.pattern.permute.xlu0 0
  %895 = vperm.xlu0 %894, %v677
  %v896 = vpop.permute.xlu0 %895
  %899 = vset.pattern.permute.xlu0 0
  %900 = vperm.xlu0 %899, %v678
  %v901 = vpop.permute.xlu0 %900
  %904 = vset.pattern.permute.xlu0 0
  %905 = vperm.xlu0 %904, %v679
  %v906 = vpop.permute.xlu0 %905
  %909 = vset.pattern.permute.xlu0 0
  %910 = vperm.xlu0 %909, %v680
  %v911 = vpop.permute.xlu0 %910
  %914 = vset.pattern.permute.xlu0 0
  %915 = vperm.xlu0 %914, %v681
  %v916 = vpop.permute.xlu0 %915
  %919 = vset.pattern.permute.xlu0 0
  %920 = vperm.xlu0 %919, %v682
  %v921 = vpop.permute.xlu0 %920
  %924 = vset.pattern.permute.xlu0 0
  %925 = vperm.xlu0 %924, %v683
  %v926 = vpop.permute.xlu0 %925
  %929 = vset.pattern.permute.xlu0 0
  %930 = vperm.xlu0 %929, %v684
  %v931 = vpop.permute.xlu0 %930
  %934 = vset.pattern.permute.xlu0 0
  %935 = vperm.xlu0 %934, %v685
  %v936 = vpop.permute.xlu0 %935
  %939 = vset.pattern.permute.xlu0 0
  %940 = vperm.xlu0 %939, %v686
  %v941 = vpop.permute.xlu0 %940
  %v943 = vsub.f32 %v527, %v786
  %v944 = vsub.f32 %v528, %v791
  %v945 = vsub.f32 %v529, %v796
  %v946 = vsub.f32 %v530, %v801
  %v947 = vsub.f32 %v531, %v806
  %v948 = vsub.f32 %v532, %v811
  %v949 = vsub.f32 %v533, %v816
  %v950 = vsub.f32 %v534, %v821
  %v951 = vsub.f32 %v535, %v826
  %v952 = vsub.f32 %v536, %v831
  %v953 = vsub.f32 %v537, %v836
  %v954 = vsub.f32 %v538, %v841
  %v955 = vsub.f32 %v539, %v846
  %v956 = vsub.f32 %v540, %v851
  %v957 = vsub.f32 %v541, %v856
  %v958 = vsub.f32 %v542, %v861
  %v959 = vsub.f32 %v543, %v866
  %v960 = vsub.f32 %v544, %v871
  %v961 = vsub.f32 %v545, %v876
  %v962 = vsub.f32 %v546, %v881
  %v963 = vsub.f32 %v547, %v886
  %v964 = vsub.f32 %v548, %v891
  %v965 = vsub.f32 %v549, %v896
  %v966 = vsub.f32 %v550, %v901
  %v967 = vsub.f32 %v551, %v906
  %v968 = vsub.f32 %v552, %v911
  %v969 = vsub.f32 %v553, %v916
  %v970 = vsub.f32 %v554, %v921
  %v971 = vsub.f32 %v555, %v926
  %v972 = vsub.f32 %v556, %v931
  %v973 = vsub.f32 %v557, %v936
  %v974 = vsub.f32 %v558, %v941
  %v975 = vmul.f32 %v943, 1.442695
  %v976 = vpow.pop %v975
  %v977 = vmul.f32 %v944, 1.442695
  %v978 = vpow.pop %v977
  %v979 = vmul.f32 %v945, 1.442695
  %v980 = vpow.pop %v979
  %v981 = vmul.f32 %v946, 1.442695
  %v982 = vpow.pop %v981
  %v983 = vmul.f32 %v947, 1.442695
  %v984 = vpow.pop %v983
  %v985 = vmul.f32 %v948, 1.442695
  %v986 = vpow.pop %v985
  %v987 = vmul.f32 %v949, 1.442695
  %v988 = vpow.pop %v987
  %v989 = vmul.f32 %v950, 1.442695
  %v990 = vpow.pop %v989
  %v991 = vmul.f32 %v951, 1.442695
  %v992 = vpow.pop %v991
  %v993 = vmul.f32 %v952, 1.442695
  %v994 = vpow.pop %v993
  %v995 = vmul.f32 %v953, 1.442695
  %v996 = vpow.pop %v995
  %v997 = vmul.f32 %v954, 1.442695
  %v998 = vpow.pop %v997
  %v999 = vmul.f32 %v955, 1.442695
  %v1000 = vpow.pop %v999
  %v1001 = vmul.f32 %v956, 1.442695
  %v1002 = vpow.pop %v1001
  %v1003 = vmul.f32 %v957, 1.442695
  %v1004 = vpow.pop %v1003
  %v1005 = vmul.f32 %v958, 1.442695
  %v1006 = vpow.pop %v1005
  %v1007 = vmul.f32 %v959, 1.442695
  %v1008 = vpow.pop %v1007
  %v1009 = vmul.f32 %v960, 1.442695
  %v1010 = vpow.pop %v1009
  %v1011 = vmul.f32 %v961, 1.442695
  %v1012 = vpow.pop %v1011
  %v1013 = vmul.f32 %v962, 1.442695
  %v1014 = vpow.pop %v1013
  %v1015 = vmul.f32 %v963, 1.442695
  %v1016 = vpow.pop %v1015
  %v1017 = vmul.f32 %v964, 1.442695
  %v1018 = vpow.pop %v1017
  %v1019 = vmul.f32 %v965, 1.442695
  %v1020 = vpow.pop %v1019
  %v1021 = vmul.f32 %v966, 1.442695
  %v1022 = vpow.pop %v1021
  %v1023 = vmul.f32 %v967, 1.442695
  %v1024 = vpow.pop %v1023
  %v1025 = vmul.f32 %v968, 1.442695
  %v1026 = vpow.pop %v1025
  %v1027 = vmul.f32 %v969, 1.442695
  %v1028 = vpow.pop %v1027
  %v1029 = vmul.f32 %v970, 1.442695
  %v1030 = vpow.pop %v1029
  %v1031 = vmul.f32 %v971, 1.442695
  %v1032 = vpow.pop %v1031
  %v1033 = vmul.f32 %v972, 1.442695
  %v1034 = vpow.pop %v1033
  %v1035 = vmul.f32 %v973, 1.442695
  %v1036 = vpow.pop %v1035
  %v1037 = vmul.f32 %v974, 1.442695
  %v1038 = vpow.pop %v1037
  %v1039 = vld [vmem:[#allocation3] sm:$0xff]
  %v1040 = vld [vmem:[#allocation3 + $0x8] sm:$0xff]
  %v1041 = vld [vmem:[#allocation3 + $0x10] sm:$0xff]
  %v1042 = vld [vmem:[#allocation3 + $0x18] sm:$0xff]
  %v1043 = vld [vmem:[#allocation3 + $0x20] sm:$0xff]
  %v1044 = vld [vmem:[#allocation3 + $0x28] sm:$0xff]
  %v1045 = vld [vmem:[#allocation3 + $0x30] sm:$0xff]
  %v1046 = vld [vmem:[#allocation3 + $0x38] sm:$0xff]
  %v1047 = vld [vmem:[#allocation3 + $0x40] sm:$0xff]
  %v1048 = vld [vmem:[#allocation3 + $0x48] sm:$0xff]
  %v1049 = vld [vmem:[#allocation3 + $0x50] sm:$0xff]
  %v1050 = vld [vmem:[#allocation3 + $0x58] sm:$0xff]
  %v1051 = vld [vmem:[#allocation3 + $0x60] sm:$0xff]
  %v1052 = vld [vmem:[#allocation3 + $0x68] sm:$0xff]
  %v1053 = vld [vmem:[#allocation3 + $0x70] sm:$0xff]
  %v1054 = vld [vmem:[#allocation3 + $0x78] sm:$0xff]
  %v1055 = vld [vmem:[#allocation3 + $0x80] sm:$0xff]
  %v1056 = vld [vmem:[#allocation3 + $0x88] sm:$0xff]
  %v1057 = vld [vmem:[#allocation3 + $0x90] sm:$0xff]
  %v1058 = vld [vmem:[#allocation3 + $0x98] sm:$0xff]
  %v1059 = vld [vmem:[#allocation3 + $0xa0] sm:$0xff]
  %v1060 = vld [vmem:[#allocation3 + $0xa8] sm:$0xff]
  %v1061 = vld [vmem:[#allocation3 + $0xb0] sm:$0xff]
  %v1062 = vld [vmem:[#allocation3 + $0xb8] sm:$0xff]
  %v1063 = vld [vmem:[#allocation3 + $0xc0] sm:$0xff]
  %v1064 = vld [vmem:[#allocation3 + $0xc8] sm:$0xff]
  %v1065 = vld [vmem:[#allocation3 + $0xd0] sm:$0xff]
  %v1066 = vld [vmem:[#allocation3 + $0xd8] sm:$0xff]
  %v1067 = vld [vmem:[#allocation3 + $0xe0] sm:$0xff]
  %v1068 = vld [vmem:[#allocation3 + $0xe8] sm:$0xff]
  %v1069 = vld [vmem:[#allocation3 + $0xf0] sm:$0xff]
  %v1070 = vld [vmem:[#allocation3 + $0xf8] sm:$0xff]
  %v1071 = vmul.f32 %v720, %v1039
  %v1072 = vmul.f32 %v722, %v1040
  %v1073 = vmul.f32 %v724, %v1041
  %v1074 = vmul.f32 %v726, %v1042
  %v1075 = vmul.f32 %v728, %v1043
  %v1076 = vmul.f32 %v730, %v1044
  %v1077 = vmul.f32 %v732, %v1045
  %v1078 = vmul.f32 %v734, %v1046
  %v1079 = vmul.f32 %v736, %v1047
  %v1080 = vmul.f32 %v738, %v1048
  %v1081 = vmul.f32 %v740, %v1049
  %v1082 = vmul.f32 %v742, %v1050
  %v1083 = vmul.f32 %v744, %v1051
  %v1084 = vmul.f32 %v746, %v1052
  %v1085 = vmul.f32 %v748, %v1053
  %v1086 = vmul.f32 %v750, %v1054
  %v1087 = vmul.f32 %v752, %v1055
  %v1088 = vmul.f32 %v754, %v1056
  %v1089 = vmul.f32 %v756, %v1057
  %v1090 = vmul.f32 %v758, %v1058
  %v1091 = vmul.f32 %v760, %v1059
  %v1092 = vmul.f32 %v762, %v1060
  %v1093 = vmul.f32 %v764, %v1061
  %v1094 = vmul.f32 %v766, %v1062
  %v1095 = vmul.f32 %v768, %v1063
  %v1096 = vmul.f32 %v770, %v1064
  %v1097 = vmul.f32 %v772, %v1065
  %v1098 = vmul.f32 %v774, %v1066
  %v1099 = vmul.f32 %v776, %v1067
  %v1100 = vmul.f32 %v778, %v1068
  %v1101 = vmul.f32 %v780, %v1069
  %v1102 = vmul.f32 %v782, %v1070
  %1103 = vadd.xlane.f32.xlu0 %v976
  %v1104 = vpop.xlane.xlu0 %1103
  %1105 = vadd.xlane.f32.xlu0 %v978
  %v1106 = vpop.xlane.xlu0 %1105
  %1107 = vadd.xlane.f32.xlu0 %v980
  %v1108 = vpop.xlane.xlu0 %1107
  %1109 = vadd.xlane.f32.xlu0 %v982
  %v1110 = vpop.xlane.xlu0 %1109
  %1111 = vadd.xlane.f32.xlu0 %v984
  %v1112 = vpop.xlane.xlu0 %1111
  %1113 = vadd.xlane.f32.xlu0 %v986
  %v1114 = vpop.xlane.xlu0 %1113
  %1115 = vadd.xlane.f32.xlu0 %v988
  %v1116 = vpop.xlane.xlu0 %1115
  %1117 = vadd.xlane.f32.xlu0 %v990
  %v1118 = vpop.xlane.xlu0 %1117
  %1119 = vadd.xlane.f32.xlu0 %v992
  %v1120 = vpop.xlane.xlu0 %1119
  %1121 = vadd.xlane.f32.xlu0 %v994
  %v1122 = vpop.xlane.xlu0 %1121
  %1123 = vadd.xlane.f32.xlu0 %v996
  %v1124 = vpop.xlane.xlu0 %1123
  %1125 = vadd.xlane.f32.xlu0 %v998
  %v1126 = vpop.xlane.xlu0 %1125
  %1127 = vadd.xlane.f32.xlu0 %v1000
  %v1128 = vpop.xlane.xlu0 %1127
  %1129 = vadd.xlane.f32.xlu0 %v1002
  %v1130 = vpop.xlane.xlu0 %1129
  %1131 = vadd.xlane.f32.xlu0 %v1004
  %v1132 = vpop.xlane.xlu0 %1131
  %1133 = vadd.xlane.f32.xlu0 %v1006
  %v1134 = vpop.xlane.xlu0 %1133
  %1135 = vadd.xlane.f32.xlu0 %v1008
  %v1136 = vpop.xlane.xlu0 %1135
  %1137 = vadd.xlane.f32.xlu0 %v1010
  %v1138 = vpop.xlane.xlu0 %1137
  %1139 = vadd.xlane.f32.xlu0 %v1012
  %v1140 = vpop.xlane.xlu0 %1139
  %1141 = vadd.xlane.f32.xlu0 %v1014
  %v1142 = vpop.xlane.xlu0 %1141
  %1143 = vadd.xlane.f32.xlu0 %v1016
  %v1144 = vpop.xlane.xlu0 %1143
  %1145 = vadd.xlane.f32.xlu0 %v1018
  %v1146 = vpop.xlane.xlu0 %1145
  %1147 = vadd.xlane.f32.xlu0 %v1020
  %v1148 = vpop.xlane.xlu0 %1147
  %1149 = vadd.xlane.f32.xlu0 %v1022
  %v1150 = vpop.xlane.xlu0 %1149
  %1151 = vadd.xlane.f32.xlu0 %v1024
  %v1152 = vpop.xlane.xlu0 %1151
  %1153 = vadd.xlane.f32.xlu0 %v1026
  %v1154 = vpop.xlane.xlu0 %1153
  %1155 = vadd.xlane.f32.xlu0 %v1028
  %v1156 = vpop.xlane.xlu0 %1155
  %1157 = vadd.xlane.f32.xlu0 %v1030
  %v1158 = vpop.xlane.xlu0 %1157
  %1159 = vadd.xlane.f32.xlu0 %v1032
  %v1160 = vpop.xlane.xlu0 %1159
  %1161 = vadd.xlane.f32.xlu0 %v1034
  %v1162 = vpop.xlane.xlu0 %1161
  %1163 = vadd.xlane.f32.xlu0 %v1036
  %v1164 = vpop.xlane.xlu0 %1163
  %1165 = vadd.xlane.f32.xlu0 %v1038
  %v1166 = vpop.xlane.xlu0 %1165
  %v1167 = vadd.f32 %v1071, %v1104
  %v1168 = vadd.f32 %v1072, %v1106
  %v1169 = vadd.f32 %v1073, %v1108
  %v1170 = vadd.f32 %v1074, %v1110
  %v1171 = vadd.f32 %v1075, %v1112
  %v1172 = vadd.f32 %v1076, %v1114
  %v1173 = vadd.f32 %v1077, %v1116
  %v1174 = vadd.f32 %v1078, %v1118
  %v1175 = vadd.f32 %v1079, %v1120
  %v1176 = vadd.f32 %v1080, %v1122
  %v1177 = vadd.f32 %v1081, %v1124
  %v1178 = vadd.f32 %v1082, %v1126
  %v1179 = vadd.f32 %v1083, %v1128
  %v1180 = vadd.f32 %v1084, %v1130
  %v1181 = vadd.f32 %v1085, %v1132
  %v1182 = vadd.f32 %v1086, %v1134
  %v1183 = vadd.f32 %v1087, %v1136
  %v1184 = vadd.f32 %v1088, %v1138
  %v1185 = vadd.f32 %v1089, %v1140
  %v1186 = vadd.f32 %v1090, %v1142
  %v1187 = vadd.f32 %v1091, %v1144
  %v1188 = vadd.f32 %v1092, %v1146
  %v1189 = vadd.f32 %v1093, %v1148
  %v1190 = vadd.f32 %v1094, %v1150
  %v1191 = vadd.f32 %v1095, %v1152
  %v1192 = vadd.f32 %v1096, %v1154
  %v1193 = vadd.f32 %v1097, %v1156
  %v1194 = vadd.f32 %v1098, %v1158
  %v1195 = vadd.f32 %v1099, %v1160
  %v1196 = vadd.f32 %v1100, %v1162
  %v1197 = vadd.f32 %v1101, %v1164
  %v1198 = vadd.f32 %v1102, %v1166
  %vm1199 = vcmask 7168
  %1200 = vst.msk [vmem:[#allocation3] sm:$0xff] %vm1199, %v1167
  %1201 = vst.msk [vmem:[#allocation3 + $0x8] sm:$0xff] %vm1199, %v1168
  %1202 = vst.msk [vmem:[#allocation3 + $0x10] sm:$0xff] %vm1199, %v1169
  %1203 = vst.msk [vmem:[#allocation3 + $0x18] sm:$0xff] %vm1199, %v1170
  %1204 = vst.msk [vmem:[#allocation3 + $0x20] sm:$0xff] %vm1199, %v1171
  %1205 = vst.msk [vmem:[#allocation3 + $0x28] sm:$0xff] %vm1199, %v1172
  %1206 = vst.msk [vmem:[#allocation3 + $0x30] sm:$0xff] %vm1199, %v1173
  %1207 = vst.msk [vmem:[#allocation3 + $0x38] sm:$0xff] %vm1199, %v1174
  %1208 = vst.msk [vmem:[#allocation3 + $0x40] sm:$0xff] %vm1199, %v1175
  %1209 = vst.msk [vmem:[#allocation3 + $0x48] sm:$0xff] %vm1199, %v1176
  %1210 = vst.msk [vmem:[#allocation3 + $0x50] sm:$0xff] %vm1199, %v1177
  %1211 = vst.msk [vmem:[#allocation3 + $0x58] sm:$0xff] %vm1199, %v1178
  %1212 = vst.msk [vmem:[#allocation3 + $0x60] sm:$0xff] %vm1199, %v1179
  %1213 = vst.msk [vmem:[#allocation3 + $0x68] sm:$0xff] %vm1199, %v1180
  %1214 = vst.msk [vmem:[#allocation3 + $0x70] sm:$0xff] %vm1199, %v1181
  %1215 = vst.msk [vmem:[#allocation3 + $0x78] sm:$0xff] %vm1199, %v1182
  %1216 = vst.msk [vmem:[#allocation3 + $0x80] sm:$0xff] %vm1199, %v1183
  %1217 = vst.msk [vmem:[#allocation3 + $0x88] sm:$0xff] %vm1199, %v1184
  %1218 = vst.msk [vmem:[#allocation3 + $0x90] sm:$0xff] %vm1199, %v1185
  %1219 = vst.msk [vmem:[#allocation3 + $0x98] sm:$0xff] %vm1199, %v1186
  %1220 = vst.msk [vmem:[#allocation3 + $0xa0] sm:$0xff] %vm1199, %v1187
  %1221 = vst.msk [vmem:[#allocation3 + $0xa8] sm:$0xff] %vm1199, %v1188
  %1222 = vst.msk [vmem:[#allocation3 + $0xb0] sm:$0xff] %vm1199, %v1189
  %1223 = vst.msk [vmem:[#allocation3 + $0xb8] sm:$0xff] %vm1199, %v1190
  %1224 = vst.msk [vmem:[#allocation3 + $0xc0] sm:$0xff] %vm1199, %v1191
  %1225 = vst.msk [vmem:[#allocation3 + $0xc8] sm:$0xff] %vm1199, %v1192
  %1226 = vst.msk [vmem:[#allocation3 + $0xd0] sm:$0xff] %vm1199, %v1193
  %1227 = vst.msk [vmem:[#allocation3 + $0xd8] sm:$0xff] %vm1199, %v1194
  %1228 = vst.msk [vmem:[#allocation3 + $0xe0] sm:$0xff] %vm1199, %v1195
  %1229 = vst.msk [vmem:[#allocation3 + $0xe8] sm:$0xff] %vm1199, %v1196
  %1230 = vst.msk [vmem:[#allocation3 + $0xf0] sm:$0xff] %vm1199, %v1197
  %1231 = vst.msk [vmem:[#allocation3 + $0xf8] sm:$0xff] %vm1199, %v1198
  %v1232 = vld [vmem:[#allocation4] sm:$0xff]
  %v1233 = vld [vmem:[#allocation4 + $0x8] sm:$0xff]
  %v1234 = vld [vmem:[#allocation4 + $0x10] sm:$0xff]
  %v1235 = vld [vmem:[#allocation4 + $0x18] sm:$0xff]
  %v1236 = vld [vmem:[#allocation4 + $0x20] sm:$0xff]
  %v1237 = vld [vmem:[#allocation4 + $0x28] sm:$0xff]
  %v1238 = vld [vmem:[#allocation4 + $0x30] sm:$0xff]
  %v1239 = vld [vmem:[#allocation4 + $0x38] sm:$0xff]
  %v1240 = vld [vmem:[#allocation4 + $0x40] sm:$0xff]
  %v1241 = vld [vmem:[#allocation4 + $0x48] sm:$0xff]
  %v1242 = vld [vmem:[#allocation4 + $0x50] sm:$0xff]
  %v1243 = vld [vmem:[#allocation4 + $0x58] sm:$0xff]
  %v1244 = vld [vmem:[#allocation4 + $0x60] sm:$0xff]
  %v1245 = vld [vmem:[#allocation4 + $0x68] sm:$0xff]
  %v1246 = vld [vmem:[#allocation4 + $0x70] sm:$0xff]
  %v1247 = vld [vmem:[#allocation4 + $0x78] sm:$0xff]
  %v1248 = vld [vmem:[#allocation4 + $0x80] sm:$0xff]
  %v1249 = vld [vmem:[#allocation4 + $0x88] sm:$0xff]
  %v1250 = vld [vmem:[#allocation4 + $0x90] sm:$0xff]
  %v1251 = vld [vmem:[#allocation4 + $0x98] sm:$0xff]
  %v1252 = vld [vmem:[#allocation4 + $0xa0] sm:$0xff]
  %v1253 = vld [vmem:[#allocation4 + $0xa8] sm:$0xff]
  %v1254 = vld [vmem:[#allocation4 + $0xb0] sm:$0xff]
  %v1255 = vld [vmem:[#allocation4 + $0xb8] sm:$0xff]
  %v1256 = vld [vmem:[#allocation4 + $0xc0] sm:$0xff]
  %v1257 = vld [vmem:[#allocation4 + $0xc8] sm:$0xff]
  %v1258 = vld [vmem:[#allocation4 + $0xd0] sm:$0xff]
  %v1259 = vld [vmem:[#allocation4 + $0xd8] sm:$0xff]
  %v1260 = vld [vmem:[#allocation4 + $0xe0] sm:$0xff]
  %v1261 = vld [vmem:[#allocation4 + $0xe8] sm:$0xff]
  %v1262 = vld [vmem:[#allocation4 + $0xf0] sm:$0xff]
  %v1263 = vld [vmem:[#allocation4 + $0xf8] sm:$0xff]
  %1265 = vset.pattern.permute.xlu0 0
  %1266 = vperm.xlu0 %1265, %v720
  %v1267 = vpop.permute.xlu0 %1266
  %1270 = vset.pattern.permute.xlu0 0
  %1271 = vperm.xlu0 %1270, %v722
  %v1272 = vpop.permute.xlu0 %1271
  %1275 = vset.pattern.permute.xlu0 0
  %1276 = vperm.xlu0 %1275, %v724
  %v1277 = vpop.permute.xlu0 %1276
  %1280 = vset.pattern.permute.xlu0 0
  %1281 = vperm.xlu0 %1280, %v726
  %v1282 = vpop.permute.xlu0 %1281
  %1285 = vset.pattern.permute.xlu0 0
  %1286 = vperm.xlu0 %1285, %v728
  %v1287 = vpop.permute.xlu0 %1286
  %1290 = vset.pattern.permute.xlu0 0
  %1291 = vperm.xlu0 %1290, %v730
  %v1292 = vpop.permute.xlu0 %1291
  %1295 = vset.pattern.permute.xlu0 0
  %1296 = vperm.xlu0 %1295, %v732
  %v1297 = vpop.permute.xlu0 %1296
  %1300 = vset.pattern.permute.xlu0 0
  %1301 = vperm.xlu0 %1300, %v734
  %v1302 = vpop.permute.xlu0 %1301
  %1305 = vset.pattern.permute.xlu0 0
  %1306 = vperm.xlu0 %1305, %v736
  %v1307 = vpop.permute.xlu0 %1306
  %1310 = vset.pattern.permute.xlu0 0
  %1311 = vperm.xlu0 %1310, %v738
  %v1312 = vpop.permute.xlu0 %1311
  %1315 = vset.pattern.permute.xlu0 0
  %1316 = vperm.xlu0 %1315, %v740
  %v1317 = vpop.permute.xlu0 %1316
  %1320 = vset.pattern.permute.xlu0 0
  %1321 = vperm.xlu0 %1320, %v742
  %v1322 = vpop.permute.xlu0 %1321
  %1325 = vset.pattern.permute.xlu0 0
  %1326 = vperm.xlu0 %1325, %v744
  %v1327 = vpop.permute.xlu0 %1326
  %1330 = vset.pattern.permute.xlu0 0
  %1331 = vperm.xlu0 %1330, %v746
  %v1332 = vpop.permute.xlu0 %1331
  %1335 = vset.pattern.permute.xlu0 0
  %1336 = vperm.xlu0 %1335, %v748
  %v1337 = vpop.permute.xlu0 %1336
  %1340 = vset.pattern.permute.xlu0 0
  %1341 = vperm.xlu0 %1340, %v750
  %v1342 = vpop.permute.xlu0 %1341
  %1345 = vset.pattern.permute.xlu0 0
  %1346 = vperm.xlu0 %1345, %v752
  %v1347 = vpop.permute.xlu0 %1346
  %1350 = vset.pattern.permute.xlu0 0
  %1351 = vperm.xlu0 %1350, %v754
  %v1352 = vpop.permute.xlu0 %1351
  %1355 = vset.pattern.permute.xlu0 0
  %1356 = vperm.xlu0 %1355, %v756
  %v1357 = vpop.permute.xlu0 %1356
  %1360 = vset.pattern.permute.xlu0 0
  %1361 = vperm.xlu0 %1360, %v758
  %v1362 = vpop.permute.xlu0 %1361
  %1365 = vset.pattern.permute.xlu0 0
  %1366 = vperm.xlu0 %1365, %v760
  %v1367 = vpop.permute.xlu0 %1366
  %1370 = vset.pattern.permute.xlu0 0
  %1371 = vperm.xlu0 %1370, %v762
  %v1372 = vpop.permute.xlu0 %1371
  %1375 = vset.pattern.permute.xlu0 0
  %1376 = vperm.xlu0 %1375, %v764
  %v1377 = vpop.permute.xlu0 %1376
  %1380 = vset.pattern.permute.xlu0 0
  %1381 = vperm.xlu0 %1380, %v766
  %v1382 = vpop.permute.xlu0 %1381
  %1385 = vset.pattern.permute.xlu0 0
  %1386 = vperm.xlu0 %1385, %v768
  %v1387 = vpop.permute.xlu0 %1386
  %1390 = vset.pattern.permute.xlu0 0
  %1391 = vperm.xlu0 %1390, %v770
  %v1392 = vpop.permute.xlu0 %1391
  %1395 = vset.pattern.permute.xlu0 0
  %1396 = vperm.xlu0 %1395, %v772
  %v1397 = vpop.permute.xlu0 %1396
  %1400 = vset.pattern.permute.xlu0 0
  %1401 = vperm.xlu0 %1400, %v774
  %v1402 = vpop.permute.xlu0 %1401
  %1405 = vset.pattern.permute.xlu0 0
  %1406 = vperm.xlu0 %1405, %v776
  %v1407 = vpop.permute.xlu0 %1406
  %1410 = vset.pattern.permute.xlu0 0
  %1411 = vperm.xlu0 %1410, %v778
  %v1412 = vpop.permute.xlu0 %1411
  %1415 = vset.pattern.permute.xlu0 0
  %1416 = vperm.xlu0 %1415, %v780
  %v1417 = vpop.permute.xlu0 %1416
  %1420 = vset.pattern.permute.xlu0 0
  %1421 = vperm.xlu0 %1420, %v782
  %v1422 = vpop.permute.xlu0 %1421
  %v1424 = vmul.f32 %v1267, %v1232
  %v1425 = vmul.f32 %v1272, %v1233
  %v1426 = vmul.f32 %v1277, %v1234
  %v1427 = vmul.f32 %v1282, %v1235
  %v1428 = vmul.f32 %v1287, %v1236
  %v1429 = vmul.f32 %v1292, %v1237
  %v1430 = vmul.f32 %v1297, %v1238
  %v1431 = vmul.f32 %v1302, %v1239
  %v1432 = vmul.f32 %v1307, %v1240
  %v1433 = vmul.f32 %v1312, %v1241
  %v1434 = vmul.f32 %v1317, %v1242
  %v1435 = vmul.f32 %v1322, %v1243
  %v1436 = vmul.f32 %v1327, %v1244
  %v1437 = vmul.f32 %v1332, %v1245
  %v1438 = vmul.f32 %v1337, %v1246
  %v1439 = vmul.f32 %v1342, %v1247
  %v1440 = vmul.f32 %v1347, %v1248
  %v1441 = vmul.f32 %v1352, %v1249
  %v1442 = vmul.f32 %v1357, %v1250
  %v1443 = vmul.f32 %v1362, %v1251
  %v1444 = vmul.f32 %v1367, %v1252
  %v1445 = vmul.f32 %v1372, %v1253
  %v1446 = vmul.f32 %v1377, %v1254
  %v1447 = vmul.f32 %v1382, %v1255
  %v1448 = vmul.f32 %v1387, %v1256
  %v1449 = vmul.f32 %v1392, %v1257
  %v1450 = vmul.f32 %v1397, %v1258
  %v1451 = vmul.f32 %v1402, %v1259
  %v1452 = vmul.f32 %v1407, %v1260
  %v1453 = vmul.f32 %v1412, %v1261
  %v1454 = vmul.f32 %v1417, %v1262
  %v1455 = vmul.f32 %v1422, %v1263
  %v1456 = vpack.c.bf16 %v976, %v976
  %v1457 = vpack.c.bf16 %v978, %v978
  %v1458 = vpack.c.bf16 %v980, %v980
  %v1459 = vpack.c.bf16 %v982, %v982
  %v1460 = vpack.c.bf16 %v984, %v984
  %v1461 = vpack.c.bf16 %v986, %v986
  %v1462 = vpack.c.bf16 %v988, %v988
  %v1463 = vpack.c.bf16 %v990, %v990
  %v1464 = vpack.c.bf16 %v992, %v992
  %v1465 = vpack.c.bf16 %v994, %v994
  %v1466 = vpack.c.bf16 %v996, %v996
  %v1467 = vpack.c.bf16 %v998, %v998
  %v1468 = vpack.c.bf16 %v1000, %v1000
  %v1469 = vpack.c.bf16 %v1002, %v1002
  %v1470 = vpack.c.bf16 %v1004, %v1004
  %v1471 = vpack.c.bf16 %v1006, %v1006
  %v1472 = vpack.c.bf16 %v1008, %v1008
  %v1473 = vpack.c.bf16 %v1010, %v1010
  %v1474 = vpack.c.bf16 %v1012, %v1012
  %v1475 = vpack.c.bf16 %v1014, %v1014
  %v1476 = vpack.c.bf16 %v1016, %v1016
  %v1477 = vpack.c.bf16 %v1018, %v1018
  %v1478 = vpack.c.bf16 %v1020, %v1020
  %v1479 = vpack.c.bf16 %v1022, %v1022
  %v1480 = vpack.c.bf16 %v1024, %v1024
  %v1481 = vpack.c.bf16 %v1026, %v1026
  %v1482 = vpack.c.bf16 %v1028, %v1028
  %v1483 = vpack.c.bf16 %v1030, %v1030
  %v1484 = vpack.c.bf16 %v1032, %v1032
  %v1485 = vpack.c.bf16 %v1034, %v1034
  %v1486 = vpack.c.bf16 %v1036, %v1036
  %v1487 = vpack.c.bf16 %v1038, %v1038
  %v1488 = vld [vmem:[%s3] sm:$0xf]
  %v1489 = vld [vmem:[%s3 + $0x4] sm:$0xf]
  %v1490 = vld [vmem:[%s3 + $0x8] sm:$0xf]
  %v1491 = vld [vmem:[%s3 + $0xc] sm:$0xf]
  %v1492 = vld [vmem:[%s3 + $0x10] sm:$0xf]
  %v1493 = vld [vmem:[%s3 + $0x14] sm:$0xf]
  %v1494 = vld [vmem:[%s3 + $0x18] sm:$0xf]
  %v1495 = vld [vmem:[%s3 + $0x1c] sm:$0xf]
  %v1496 = vld [vmem:[%s3 + $0x20] sm:$0xf]
  %v1497 = vld [vmem:[%s3 + $0x24] sm:$0xf]
  %v1498 = vld [vmem:[%s3 + $0x28] sm:$0xf]
  %v1499 = vld [vmem:[%s3 + $0x2c] sm:$0xf]
  %v1500 = vld [vmem:[%s3 + $0x30] sm:$0xf]
  %v1501 = vld [vmem:[%s3 + $0x34] sm:$0xf]
  %v1502 = vld [vmem:[%s3 + $0x38] sm:$0xf]
  %v1503 = vld [vmem:[%s3 + $0x3c] sm:$0xf]
  %v1504 = vld [vmem:[%s3 + $0x40] sm:$0xf]
  %v1505 = vld [vmem:[%s3 + $0x44] sm:$0xf]
  %v1506 = vld [vmem:[%s3 + $0x48] sm:$0xf]
  %v1507 = vld [vmem:[%s3 + $0x4c] sm:$0xf]
  %v1508 = vld [vmem:[%s3 + $0x50] sm:$0xf]
  %v1509 = vld [vmem:[%s3 + $0x54] sm:$0xf]
  %v1510 = vld [vmem:[%s3 + $0x58] sm:$0xf]
  %v1511 = vld [vmem:[%s3 + $0x5c] sm:$0xf]
  %v1512 = vld [vmem:[%s3 + $0x60] sm:$0xf]
  %v1513 = vld [vmem:[%s3 + $0x64] sm:$0xf]
  %v1514 = vld [vmem:[%s3 + $0x68] sm:$0xf]
  %v1515 = vld [vmem:[%s3 + $0x6c] sm:$0xf]
  %v1516 = vld [vmem:[%s3 + $0x70] sm:$0xf]
  %v1517 = vld [vmem:[%s3 + $0x74] sm:$0xf]
  %v1518 = vld [vmem:[%s3 + $0x78] sm:$0xf]
  %v1519 = vld [vmem:[%s3 + $0x7c] sm:$0xf]
  %v1536 = vunpack.c.l.b16 %v1456
  %v1537 = vunpack.c.l.b16 %v1457
  %v1538 = vunpack.c.l.b16 %v1458
  %v1539 = vunpack.c.l.b16 %v1459
  %v1540 = vunpack.c.l.b16 %v1460
  %v1541 = vunpack.c.l.b16 %v1461
  %v1542 = vunpack.c.l.b16 %v1462
  %v1543 = vunpack.c.l.b16 %v1463
  %v1544 = vunpack.c.l.b16 %v1464
  %v1545 = vunpack.c.l.b16 %v1465
  %v1546 = vunpack.c.l.b16 %v1466
  %v1547 = vunpack.c.l.b16 %v1467
  %v1548 = vunpack.c.l.b16 %v1468
  %v1549 = vunpack.c.l.b16 %v1469
  %v1550 = vunpack.c.l.b16 %v1470
  %v1551 = vunpack.c.l.b16 %v1471
  %v1552 = vpack.c.b16 %v1537, %v1536
  %v1553 = vpack.c.b16 %v1539, %v1538
  %v1554 = vpack.c.b16 %v1541, %v1540
  %v1555 = vpack.c.b16 %v1543, %v1542
  %v1556 = vpack.c.b16 %v1545, %v1544
  %v1557 = vpack.c.b16 %v1547, %v1546
  %v1558 = vpack.c.b16 %v1549, %v1548
  %v1559 = vpack.c.b16 %v1551, %v1550
  %v1584 = vunpack.c.l.b16 %v1488
  %v1585 = vunpack.c.l.b16 %v1489
  %v1586 = vunpack.c.l.b16 %v1490
  %v1587 = vunpack.c.l.b16 %v1491
  %v1588 = vunpack.c.l.b16 %v1492
  %v1589 = vunpack.c.l.b16 %v1493
  %v1590 = vunpack.c.l.b16 %v1494
  %v1591 = vunpack.c.l.b16 %v1495
  %v1592 = vunpack.c.l.b16 %v1496
  %v1593 = vunpack.c.l.b16 %v1497
  %v1594 = vunpack.c.l.b16 %v1498
  %v1595 = vunpack.c.l.b16 %v1499
  %v1596 = vunpack.c.l.b16 %v1500
  %v1597 = vunpack.c.l.b16 %v1501
  %v1598 = vunpack.c.l.b16 %v1502
  %v1599 = vunpack.c.l.b16 %v1503
  %v1600 = vpack.c.b16 %v1585, %v1584
  %v1601 = vpack.c.b16 %v1587, %v1586
  %v1602 = vpack.c.b16 %v1589, %v1588
  %v1603 = vpack.c.b16 %v1591, %v1590
  %v1604 = vpack.c.b16 %v1593, %v1592
  %v1605 = vpack.c.b16 %v1595, %v1594
  %v1606 = vpack.c.b16 %v1597, %v1596
  %v1607 = vpack.c.b16 %v1599, %v1598
  %1616 = vmatpush.bf16.msra.mxu0 %v1607
  %1617 = vmatpush.bf16.msra.mxu0 %v1606
  %1618 = vmatpush.bf16.msra.mxu0 %v1605
  %1619 = vmatpush.bf16.msra.mxu0 %v1604
  %1620 = vmatpush.bf16.msra.mxu0 %v1603
  %1621 = vmatpush.bf16.msra.mxu0 %v1602
  %1622 = vmatpush.bf16.msra.mxu0 %v1601
  %1623 = vmatpush.bf16.msra.mxu0 %v1600
  %1624 = vmatmul.bf16.gmra.mxu0 %v1552
  %v1625 = vpop.f32.mrf.mxu0
  %v1626 = vadd.f32 0.0, %v1625
  %v1627 = vpop.f32.mrf.mxu0
  %v1628 = vadd.f32 0.0, %v1627
  %1629 = vmatmul.bf16.gmra.mxu0 %v1553
  %v1630 = vpop.f32.mrf.mxu0
  %v1631 = vadd.f32 0.0, %v1630
  %v1632 = vpop.f32.mrf.mxu0
  %v1633 = vadd.f32 0.0, %v1632
  %1634 = vmatmul.bf16.gmra.mxu0 %v1554
  %v1635 = vpop.f32.mrf.mxu0
  %v1636 = vadd.f32 0.0, %v1635
  %v1637 = vpop.f32.mrf.mxu0
  %v1638 = vadd.f32 0.0, %v1637
  %1639 = vmatmul.bf16.gmra.mxu0 %v1555
  %v1640 = vpop.f32.mrf.mxu0
  %v1641 = vadd.f32 0.0, %v1640
  %v1642 = vpop.f32.mrf.mxu0
  %v1643 = vadd.f32 0.0, %v1642
  %1644 = vmatmul.bf16.gmra.mxu0 %v1556
  %v1645 = vpop.f32.mrf.mxu0
  %v1646 = vadd.f32 0.0, %v1645
  %v1647 = vpop.f32.mrf.mxu0
  %v1648 = vadd.f32 0.0, %v1647
  %1649 = vmatmul.bf16.gmra.mxu0 %v1557
  %v1650 = vpop.f32.mrf.mxu0
  %v1651 = vadd.f32 0.0, %v1650
  %v1652 = vpop.f32.mrf.mxu0
  %v1653 = vadd.f32 0.0, %v1652
  %1654 = vmatmul.bf16.gmra.mxu0 %v1558
  %v1655 = vpop.f32.mrf.mxu0
  %v1656 = vadd.f32 0.0, %v1655
  %v1657 = vpop.f32.mrf.mxu0
  %v1658 = vadd.f32 0.0, %v1657
  %1659 = vmatmul.bf16.gmra.mxu0 %v1559
  %v1660 = vpop.f32.mrf.mxu0
  %v1661 = vadd.f32 0.0, %v1660
  %v1662 = vpop.f32.mrf.mxu0
  %v1663 = vadd.f32 0.0, %v1662
  %1664 = vdwg.mxu0
  %v1681 = vunpack.c.l.b16 %v1472
  %v1682 = vunpack.c.l.b16 %v1473
  %v1683 = vunpack.c.l.b16 %v1474
  %v1684 = vunpack.c.l.b16 %v1475
  %v1685 = vunpack.c.l.b16 %v1476
  %v1686 = vunpack.c.l.b16 %v1477
  %v1687 = vunpack.c.l.b16 %v1478
  %v1688 = vunpack.c.l.b16 %v1479
  %v1689 = vunpack.c.l.b16 %v1480
  %v1690 = vunpack.c.l.b16 %v1481
  %v1691 = vunpack.c.l.b16 %v1482
  %v1692 = vunpack.c.l.b16 %v1483
  %v1693 = vunpack.c.l.b16 %v1484
  %v1694 = vunpack.c.l.b16 %v1485
  %v1695 = vunpack.c.l.b16 %v1486
  %v1696 = vunpack.c.l.b16 %v1487
  %v1697 = vpack.c.b16 %v1682, %v1681
  %v1698 = vpack.c.b16 %v1684, %v1683
  %v1699 = vpack.c.b16 %v1686, %v1685
  %v1700 = vpack.c.b16 %v1688, %v1687
  %v1701 = vpack.c.b16 %v1690, %v1689
  %v1702 = vpack.c.b16 %v1692, %v1691
  %v1703 = vpack.c.b16 %v1694, %v1693
  %v1704 = vpack.c.b16 %v1696, %v1695
  %v1729 = vunpack.c.l.b16 %v1504
  %v1730 = vunpack.c.l.b16 %v1505
  %v1731 = vunpack.c.l.b16 %v1506
  %v1732 = vunpack.c.l.b16 %v1507
  %v1733 = vunpack.c.l.b16 %v1508
  %v1734 = vunpack.c.l.b16 %v1509
  %v1735 = vunpack.c.l.b16 %v1510
  %v1736 = vunpack.c.l.b16 %v1511
  %v1737 = vunpack.c.l.b16 %v1512
  %v1738 = vunpack.c.l.b16 %v1513
  %v1739 = vunpack.c.l.b16 %v1514
  %v1740 = vunpack.c.l.b16 %v1515
  %v1741 = vunpack.c.l.b16 %v1516
  %v1742 = vunpack.c.l.b16 %v1517
  %v1743 = vunpack.c.l.b16 %v1518
  %v1744 = vunpack.c.l.b16 %v1519
  %v1745 = vpack.c.b16 %v1730, %v1729
  %v1746 = vpack.c.b16 %v1732, %v1731
  %v1747 = vpack.c.b16 %v1734, %v1733
  %v1748 = vpack.c.b16 %v1736, %v1735
  %v1749 = vpack.c.b16 %v1738, %v1737
  %v1750 = vpack.c.b16 %v1740, %v1739
  %v1751 = vpack.c.b16 %v1742, %v1741
  %v1752 = vpack.c.b16 %v1744, %v1743
  %1761 = vmatpush.bf16.msra.mxu0 %v1752
  %1762 = vmatpush.bf16.msra.mxu0 %v1751
  %1763 = vmatpush.bf16.msra.mxu0 %v1750
  %1764 = vmatpush.bf16.msra.mxu0 %v1749
  %1765 = vmatpush.bf16.msra.mxu0 %v1748
  %1766 = vmatpush.bf16.msra.mxu0 %v1747
  %1767 = vmatpush.bf16.msra.mxu0 %v1746
  %1768 = vmatpush.bf16.msra.mxu0 %v1745
  %1769 = vmatmul.bf16.gmra.mxu0 %v1697
  %v1770 = vpop.f32.mrf.mxu0
  %v1771 = vadd.f32 0.0, %v1770
  %v1772 = vpop.f32.mrf.mxu0
  %v1773 = vadd.f32 0.0, %v1772
  %1774 = vmatmul.bf16.gmra.mxu0 %v1698
  %v1775 = vpop.f32.mrf.mxu0
  %v1776 = vadd.f32 0.0, %v1775
  %v1777 = vpop.f32.mrf.mxu0
  %v1778 = vadd.f32 0.0, %v1777
  %1779 = vmatmul.bf16.gmra.mxu0 %v1699
  %v1780 = vpop.f32.mrf.mxu0
  %v1781 = vadd.f32 0.0, %v1780
  %v1782 = vpop.f32.mrf.mxu0
  %v1783 = vadd.f32 0.0, %v1782
  %1784 = vmatmul.bf16.gmra.mxu0 %v1700
  %v1785 = vpop.f32.mrf.mxu0
  %v1786 = vadd.f32 0.0, %v1785
  %v1787 = vpop.f32.mrf.mxu0
  %v1788 = vadd.f32 0.0, %v1787
  %1789 = vmatmul.bf16.gmra.mxu0 %v1701
  %v1790 = vpop.f32.mrf.mxu0
  %v1791 = vadd.f32 0.0, %v1790
  %v1792 = vpop.f32.mrf.mxu0
  %v1793 = vadd.f32 0.0, %v1792
  %1794 = vmatmul.bf16.gmra.mxu0 %v1702
  %v1795 = vpop.f32.mrf.mxu0
  %v1796 = vadd.f32 0.0, %v1795
  %v1797 = vpop.f32.mrf.mxu0
  %v1798 = vadd.f32 0.0, %v1797
  %1799 = vmatmul.bf16.gmra.mxu0 %v1703
  %v1800 = vpop.f32.mrf.mxu0
  %v1801 = vadd.f32 0.0, %v1800
  %v1802 = vpop.f32.mrf.mxu0
  %v1803 = vadd.f32 0.0, %v1802
  %1804 = vmatmul.bf16.gmra.mxu0 %v1704
  %v1805 = vpop.f32.mrf.mxu0
  %v1806 = vadd.f32 0.0, %v1805
  %v1807 = vpop.f32.mrf.mxu0
  %v1808 = vadd.f32 0.0, %v1807
  %1809 = vdwg.mxu0
  %v1810 = vadd.f32 %v1424, %v1626
  %v1811 = vadd.f32 %v1425, %v1628
  %v1812 = vadd.f32 %v1426, %v1631
  %v1813 = vadd.f32 %v1427, %v1633
  %v1814 = vadd.f32 %v1428, %v1636
  %v1815 = vadd.f32 %v1429, %v1638
  %v1816 = vadd.f32 %v1430, %v1641
  %v1817 = vadd.f32 %v1431, %v1643
  %v1818 = vadd.f32 %v1432, %v1646
  %v1819 = vadd.f32 %v1433, %v1648
  %v1820 = vadd.f32 %v1434, %v1651
  %v1821 = vadd.f32 %v1435, %v1653
  %v1822 = vadd.f32 %v1436, %v1656
  %v1823 = vadd.f32 %v1437, %v1658
  %v1824 = vadd.f32 %v1438, %v1661
  %v1825 = vadd.f32 %v1439, %v1663
  %v1826 = vadd.f32 %v1440, %v1771
  %v1827 = vadd.f32 %v1441, %v1773
  %v1828 = vadd.f32 %v1442, %v1776
  %v1829 = vadd.f32 %v1443, %v1778
  %v1830 = vadd.f32 %v1444, %v1781
  %v1831 = vadd.f32 %v1445, %v1783
  %v1832 = vadd.f32 %v1446, %v1786
  %v1833 = vadd.f32 %v1447, %v1788
  %v1834 = vadd.f32 %v1448, %v1791
  %v1835 = vadd.f32 %v1449, %v1793
  %v1836 = vadd.f32 %v1450, %v1796
  %v1837 = vadd.f32 %v1451, %v1798
  %v1838 = vadd.f32 %v1452, %v1801
  %v1839 = vadd.f32 %v1453, %v1803
  %v1840 = vadd.f32 %v1454, %v1806
  %v1841 = vadd.f32 %v1455, %v1808
  %vm1842 = vcmask 64512
  %1843 = vst.msk [vmem:[#allocation4] sm:$0xff] %vm1842, %v1810
  %1844 = vst.msk [vmem:[#allocation4 + $0x8] sm:$0xff] %vm1842, %v1811
  %1845 = vst.msk [vmem:[#allocation4 + $0x10] sm:$0xff] %vm1842, %v1812
  %1846 = vst.msk [vmem:[#allocation4 + $0x18] sm:$0xff] %vm1842, %v1813
  %1847 = vst.msk [vmem:[#allocation4 + $0x20] sm:$0xff] %vm1842, %v1814
  %1848 = vst.msk [vmem:[#allocation4 + $0x28] sm:$0xff] %vm1842, %v1815
  %1849 = vst.msk [vmem:[#allocation4 + $0x30] sm:$0xff] %vm1842, %v1816
  %1850 = vst.msk [vmem:[#allocation4 + $0x38] sm:$0xff] %vm1842, %v1817
  %1851 = vst.msk [vmem:[#allocation4 + $0x40] sm:$0xff] %vm1842, %v1818
  %1852 = vst.msk [vmem:[#allocation4 + $0x48] sm:$0xff] %vm1842, %v1819
  %1853 = vst.msk [vmem:[#allocation4 + $0x50] sm:$0xff] %vm1842, %v1820
  %1854 = vst.msk [vmem:[#allocation4 + $0x58] sm:$0xff] %vm1842, %v1821
  %1855 = vst.msk [vmem:[#allocation4 + $0x60] sm:$0xff] %vm1842, %v1822
  %1856 = vst.msk [vmem:[#allocation4 + $0x68] sm:$0xff] %vm1842, %v1823
  %1857 = vst.msk [vmem:[#allocation4 + $0x70] sm:$0xff] %vm1842, %v1824
  %1858 = vst.msk [vmem:[#allocation4 + $0x78] sm:$0xff] %vm1842, %v1825
  %1859 = vst.msk [vmem:[#allocation4 + $0x80] sm:$0xff] %vm1842, %v1826
  %1860 = vst.msk [vmem:[#allocation4 + $0x88] sm:$0xff] %vm1842, %v1827
  %1861 = vst.msk [vmem:[#allocation4 + $0x90] sm:$0xff] %vm1842, %v1828
  %1862 = vst.msk [vmem:[#allocation4 + $0x98] sm:$0xff] %vm1842, %v1829
  %1863 = vst.msk [vmem:[#allocation4 + $0xa0] sm:$0xff] %vm1842, %v1830
  %1864 = vst.msk [vmem:[#allocation4 + $0xa8] sm:$0xff] %vm1842, %v1831
  %1865 = vst.msk [vmem:[#allocation4 + $0xb0] sm:$0xff] %vm1842, %v1832
  %1866 = vst.msk [vmem:[#allocation4 + $0xb8] sm:$0xff] %vm1842, %v1833
  %1867 = vst.msk [vmem:[#allocation4 + $0xc0] sm:$0xff] %vm1842, %v1834
  %1868 = vst.msk [vmem:[#allocation4 + $0xc8] sm:$0xff] %vm1842, %v1835
  %1869 = vst.msk [vmem:[#allocation4 + $0xd0] sm:$0xff] %vm1842, %v1836
  %1870 = vst.msk [vmem:[#allocation4 + $0xd8] sm:$0xff] %vm1842, %v1837
  %1871 = vst.msk [vmem:[#allocation4 + $0xe0] sm:$0xff] %vm1842, %v1838
  %1872 = vst.msk [vmem:[#allocation4 + $0xe8] sm:$0xff] %vm1842, %v1839
  %1873 = vst.msk [vmem:[#allocation4 + $0xf0] sm:$0xff] %vm1842, %v1840
  %1874 = vst.msk [vmem:[#allocation4 + $0xf8] sm:$0xff] %vm1842, %v1841
  %1875 = vst.msk [vmem:[#allocation2] sm:$0xff] %vm1199, %v655
  %1876 = vst.msk [vmem:[#allocation2 + $0x8] sm:$0xff] %vm1199, %v656
  %1877 = vst.msk [vmem:[#allocation2 + $0x10] sm:$0xff] %vm1199, %v657
  %1878 = vst.msk [vmem:[#allocation2 + $0x18] sm:$0xff] %vm1199, %v658
  %1879 = vst.msk [vmem:[#allocation2 + $0x20] sm:$0xff] %vm1199, %v659
  %1880 = vst.msk [vmem:[#allocation2 + $0x28] sm:$0xff] %vm1199, %v660
  %1881 = vst.msk [vmem:[#allocation2 + $0x30] sm:$0xff] %vm1199, %v661
  %1882 = vst.msk [vmem:[#allocation2 + $0x38] sm:$0xff] %vm1199, %v662
  %1883 = vst.msk [vmem:[#allocation2 + $0x40] sm:$0xff] %vm1199, %v663
  %1884 = vst.msk [vmem:[#allocation2 + $0x48] sm:$0xff] %vm1199, %v664
  %1885 = vst.msk [vmem:[#allocation2 + $0x50] sm:$0xff] %vm1199, %v665
  %1886 = vst.msk [vmem:[#allocation2 + $0x58] sm:$0xff] %vm1199, %v666
  %1887 = vst.msk [vmem:[#allocation2 + $0x60] sm:$0xff] %vm1199, %v667
  %1888 = vst.msk [vmem:[#allocation2 + $0x68] sm:$0xff] %vm1199, %v668
  %1889 = vst.msk [vmem:[#allocation2 + $0x70] sm:$0xff] %vm1199, %v669
  %1890 = vst.msk [vmem:[#allocation2 + $0x78] sm:$0xff] %vm1199, %v670
  %1891 = vst.msk [vmem:[#allocation2 + $0x80] sm:$0xff] %vm1199, %v671
  %1892 = vst.msk [vmem:[#allocation2 + $0x88] sm:$0xff] %vm1199, %v672
  %1893 = vst.msk [vmem:[#allocation2 + $0x90] sm:$0xff] %vm1199, %v673
  %1894 = vst.msk [vmem:[#allocation2 + $0x98] sm:$0xff] %vm1199, %v674
  %1895 = vst.msk [vmem:[#allocation2 + $0xa0] sm:$0xff] %vm1199, %v675
  %1896 = vst.msk [vmem:[#allocation2 + $0xa8] sm:$0xff] %vm1199, %v676
  %1897 = vst.msk [vmem:[#allocation2 + $0xb0] sm:$0xff] %vm1199, %v677
  %1898 = vst.msk [vmem:[#allocation2 + $0xb8] sm:$0xff] %vm1199, %v678
  %1899 = vst.msk [vmem:[#allocation2 + $0xc0] sm:$0xff] %vm1199, %v679
  %1900 = vst.msk [vmem:[#allocation2 + $0xc8] sm:$0xff] %vm1199, %v680
  %1901 = vst.msk [vmem:[#allocation2 + $0xd0] sm:$0xff] %vm1199, %v681
  %1902 = vst.msk [vmem:[#allocation2 + $0xd8] sm:$0xff] %vm1199, %v682
  %1903 = vst.msk [vmem:[#allocation2 + $0xe0] sm:$0xff] %vm1199, %v683
  %1904 = vst.msk [vmem:[#allocation2 + $0xe8] sm:$0xff] %vm1199, %v684
  %1905 = vst.msk [vmem:[#allocation2 + $0xf0] sm:$0xff] %vm1199, %v685
  %1906 = vst.msk [vmem:[#allocation2 + $0xf8] sm:$0xff] %vm1199, %v686
  // Predicated region
  $region22: #{model_forward.15} parent=0 // pred_check
    %p1907 = pneg %p17
  $region23: #{model_forward.15} parent=0 // pred_check_branch
    %1909 = sbr.rel (%p1907) target = $region25
  $region24: #{model_forward.15} parent=0 // pred_region
    %v1910 = vld [vmem:[#allocation4] sm:$0xff]
    %v1911 = vld [vmem:[#allocation4 + $0x8] sm:$0xff]
    %v1912 = vld [vmem:[#allocation4 + $0x10] sm:$0xff]
    %v1913 = vld [vmem:[#allocation4 + $0x18] sm:$0xff]
    %v1914 = vld [vmem:[#allocation4 + $0x20] sm:$0xff]
    %v1915 = vld [vmem:[#allocation4 + $0x28] sm:$0xff]
    %v1916 = vld [vmem:[#allocation4 + $0x30] sm:$0xff]
    %v1917 = vld [vmem:[#allocation4 + $0x38] sm:$0xff]
    %v1918 = vld [vmem:[#allocation4 + $0x40] sm:$0xff]
    %v1919 = vld [vmem:[#allocation4 + $0x48] sm:$0xff]
    %v1920 = vld [vmem:[#allocation4 + $0x50] sm:$0xff]
    %v1921 = vld [vmem:[#allocation4 + $0x58] sm:$0xff]
    %v1922 = vld [vmem:[#allocation4 + $0x60] sm:$0xff]
    %v1923 = vld [vmem:[#allocation4 + $0x68] sm:$0xff]
    %v1924 = vld [vmem:[#allocation4 + $0x70] sm:$0xff]
    %v1925 = vld [vmem:[#allocation4 + $0x78] sm:$0xff]
    %v1926 = vld [vmem:[#allocation4 + $0x80] sm:$0xff]
    %v1927 = vld [vmem:[#allocation4 + $0x88] sm:$0xff]
    %v1928 = vld [vmem:[#allocation4 + $0x90] sm:$0xff]
    %v1929 = vld [vmem:[#allocation4 + $0x98] sm:$0xff]
    %v1930 = vld [vmem:[#allocation4 + $0xa0] sm:$0xff]
    %v1931 = vld [vmem:[#allocation4 + $0xa8] sm:$0xff]
    %v1932 = vld [vmem:[#allocation4 + $0xb0] sm:$0xff]
    %v1933 = vld [vmem:[#allocation4 + $0xb8] sm:$0xff]
    %v1934 = vld [vmem:[#allocation4 + $0xc0] sm:$0xff]
    %v1935 = vld [vmem:[#allocation4 + $0xc8] sm:$0xff]
    %v1936 = vld [vmem:[#allocation4 + $0xd0] sm:$0xff]
    %v1937 = vld [vmem:[#allocation4 + $0xd8] sm:$0xff]
    %v1938 = vld [vmem:[#allocation4 + $0xe0] sm:$0xff]
    %v1939 = vld [vmem:[#allocation4 + $0xe8] sm:$0xff]
    %v1940 = vld [vmem:[#allocation4 + $0xf0] sm:$0xff]
    %v1941 = vld [vmem:[#allocation4 + $0xf8] sm:$0xff]
    %v1942 = vld [vmem:[#allocation3] sm:$0xff]
    %v1943 = vld [vmem:[#allocation3 + $0x8] sm:$0xff]
    %v1944 = vld [vmem:[#allocation3 + $0x10] sm:$0xff]
    %v1945 = vld [vmem:[#allocation3 + $0x18] sm:$0xff]
    %v1946 = vld [vmem:[#allocation3 + $0x20] sm:$0xff]
    %v1947 = vld [vmem:[#allocation3 + $0x28] sm:$0xff]
    %v1948 = vld [vmem:[#allocation3 + $0x30] sm:$0xff]
    %v1949 = vld [vmem:[#allocation3 + $0x38] sm:$0xff]
    %v1950 = vld [vmem:[#allocation3 + $0x40] sm:$0xff]
    %v1951 = vld [vmem:[#allocation3 + $0x48] sm:$0xff]
    %v1952 = vld [vmem:[#allocation3 + $0x50] sm:$0xff]
    %v1953 = vld [vmem:[#allocation3 + $0x58] sm:$0xff]
    %v1954 = vld [vmem:[#allocation3 + $0x60] sm:$0xff]
    %v1955 = vld [vmem:[#allocation3 + $0x68] sm:$0xff]
    %v1956 = vld [vmem:[#allocation3 + $0x70] sm:$0xff]
    %v1957 = vld [vmem:[#allocation3 + $0x78] sm:$0xff]
    %v1958 = vld [vmem:[#allocation3 + $0x80] sm:$0xff]
    %v1959 = vld [vmem:[#allocation3 + $0x88] sm:$0xff]
    %v1960 = vld [vmem:[#allocation3 + $0x90] sm:$0xff]
    %v1961 = vld [vmem:[#allocation3 + $0x98] sm:$0xff]
    %v1962 = vld [vmem:[#allocation3 + $0xa0] sm:$0xff]
    %v1963 = vld [vmem:[#allocation3 + $0xa8] sm:$0xff]
    %v1964 = vld [vmem:[#allocation3 + $0xb0] sm:$0xff]
    %v1965 = vld [vmem:[#allocation3 + $0xb8] sm:$0xff]
    %v1966 = vld [vmem:[#allocation3 + $0xc0] sm:$0xff]
    %v1967 = vld [vmem:[#allocation3 + $0xc8] sm:$0xff]
    %v1968 = vld [vmem:[#allocation3 + $0xd0] sm:$0xff]
    %v1969 = vld [vmem:[#allocation3 + $0xd8] sm:$0xff]
    %v1970 = vld [vmem:[#allocation3 + $0xe0] sm:$0xff]
    %v1971 = vld [vmem:[#allocation3 + $0xe8] sm:$0xff]
    %v1972 = vld [vmem:[#allocation3 + $0xf0] sm:$0xff]
    %v1973 = vld [vmem:[#allocation3 + $0xf8] sm:$0xff]
    %v1974 = vrcp.pop %v1942
    %v1975 = vrcp.pop %v1943
    %v1976 = vrcp.pop %v1944
    %v1977 = vrcp.pop %v1945
    %v1978 = vrcp.pop %v1946
    %v1979 = vrcp.pop %v1947
    %v1980 = vrcp.pop %v1948
    %v1981 = vrcp.pop %v1949
    %v1982 = vrcp.pop %v1950
    %v1983 = vrcp.pop %v1951
    %v1984 = vrcp.pop %v1952
    %v1985 = vrcp.pop %v1953
    %v1986 = vrcp.pop %v1954
    %v1987 = vrcp.pop %v1955
    %v1988 = vrcp.pop %v1956
    %v1989 = vrcp.pop %v1957
    %v1990 = vrcp.pop %v1958
    %v1991 = vrcp.pop %v1959
    %v1992 = vrcp.pop %v1960
    %v1993 = vrcp.pop %v1961
    %v1994 = vrcp.pop %v1962
    %v1995 = vrcp.pop %v1963
    %v1996 = vrcp.pop %v1964
    %v1997 = vrcp.pop %v1965
    %v1998 = vrcp.pop %v1966
    %v1999 = vrcp.pop %v1967
    %v2000 = vrcp.pop %v1968
    %v2001 = vrcp.pop %v1969
    %v2002 = vrcp.pop %v1970
    %v2003 = vrcp.pop %v1971
    %v2004 = vrcp.pop %v1972
    %v2005 = vrcp.pop %v1973
    %2007 = vset.pattern.permute.xlu0 0
    %2008 = vperm.xlu0 %2007, %v1974
    %v2009 = vpop.permute.xlu0 %2008
    %2012 = vset.pattern.permute.xlu0 0
    %2013 = vperm.xlu0 %2012, %v1975
    %v2014 = vpop.permute.xlu0 %2013
    %2017 = vset.pattern.permute.xlu0 0
    %2018 = vperm.xlu0 %2017, %v1976
    %v2019 = vpop.permute.xlu0 %2018
    %2022 = vset.pattern.permute.xlu0 0
    %2023 = vperm.xlu0 %2022, %v1977
    %v2024 = vpop.permute.xlu0 %2023
    %2027 = vset.pattern.permute.xlu0 0
    %2028 = vperm.xlu0 %2027, %v1978
    %v2029 = vpop.permute.xlu0 %2028
    %2032 = vset.pattern.permute.xlu0 0
    %2033 = vperm.xlu0 %2032, %v1979
    %v2034 = vpop.permute.xlu0 %2033
    %2037 = vset.pattern.permute.xlu0 0
    %2038 = vperm.xlu0 %2037, %v1980
    %v2039 = vpop.permute.xlu0 %2038
    %2042 = vset.pattern.permute.xlu0 0
    %2043 = vperm.xlu0 %2042, %v1981
    %v2044 = vpop.permute.xlu0 %2043
    %2047 = vset.pattern.permute.xlu0 0
    %2048 = vperm.xlu0 %2047, %v1982
    %v2049 = vpop.permute.xlu0 %2048
    %2052 = vset.pattern.permute.xlu0 0
    %2053 = vperm.xlu0 %2052, %v1983
    %v2054 = vpop.permute.xlu0 %2053
    %2057 = vset.pattern.permute.xlu0 0
    %2058 = vperm.xlu0 %2057, %v1984
    %v2059 = vpop.permute.xlu0 %2058
    %2062 = vset.pattern.permute.xlu0 0
    %2063 = vperm.xlu0 %2062, %v1985
    %v2064 = vpop.permute.xlu0 %2063
    %2067 = vset.pattern.permute.xlu0 0
    %2068 = vperm.xlu0 %2067, %v1986
    %v2069 = vpop.permute.xlu0 %2068
    %2072 = vset.pattern.permute.xlu0 0
    %2073 = vperm.xlu0 %2072, %v1987
    %v2074 = vpop.permute.xlu0 %2073
    %2077 = vset.pattern.permute.xlu0 0
    %2078 = vperm.xlu0 %2077, %v1988
    %v2079 = vpop.permute.xlu0 %2078
    %2082 = vset.pattern.permute.xlu0 0
    %2083 = vperm.xlu0 %2082, %v1989
    %v2084 = vpop.permute.xlu0 %2083
    %2087 = vset.pattern.permute.xlu0 0
    %2088 = vperm.xlu0 %2087, %v1990
    %v2089 = vpop.permute.xlu0 %2088
    %2092 = vset.pattern.permute.xlu0 0
    %2093 = vperm.xlu0 %2092, %v1991
    %v2094 = vpop.permute.xlu0 %2093
    %2097 = vset.pattern.permute.xlu0 0
    %2098 = vperm.xlu0 %2097, %v1992
    %v2099 = vpop.permute.xlu0 %2098
    %2102 = vset.pattern.permute.xlu0 0
    %2103 = vperm.xlu0 %2102, %v1993
    %v2104 = vpop.permute.xlu0 %2103
    %2107 = vset.pattern.permute.xlu0 0
    %2108 = vperm.xlu0 %2107, %v1994
    %v2109 = vpop.permute.xlu0 %2108
    %2112 = vset.pattern.permute.xlu0 0
    %2113 = vperm.xlu0 %2112, %v1995
    %v2114 = vpop.permute.xlu0 %2113
    %2117 = vset.pattern.permute.xlu0 0
    %2118 = vperm.xlu0 %2117, %v1996
    %v2119 = vpop.permute.xlu0 %2118
    %2122 = vset.pattern.permute.xlu0 0
    %2123 = vperm.xlu0 %2122, %v1997
    %v2124 = vpop.permute.xlu0 %2123
    %2127 = vset.pattern.permute.xlu0 0
    %2128 = vperm.xlu0 %2127, %v1998
    %v2129 = vpop.permute.xlu0 %2128
    %2132 = vset.pattern.permute.xlu0 0
    %2133 = vperm.xlu0 %2132, %v1999
    %v2134 = vpop.permute.xlu0 %2133
    %2137 = vset.pattern.permute.xlu0 0
    %2138 = vperm.xlu0 %2137, %v2000
    %v2139 = vpop.permute.xlu0 %2138
    %2142 = vset.pattern.permute.xlu0 0
    %2143 = vperm.xlu0 %2142, %v2001
    %v2144 = vpop.permute.xlu0 %2143
    %2147 = vset.pattern.permute.xlu0 0
    %2148 = vperm.xlu0 %2147, %v2002
    %v2149 = vpop.permute.xlu0 %2148
    %2152 = vset.pattern.permute.xlu0 0
    %2153 = vperm.xlu0 %2152, %v2003
    %v2154 = vpop.permute.xlu0 %2153
    %2157 = vset.pattern.permute.xlu0 0
    %2158 = vperm.xlu0 %2157, %v2004
    %v2159 = vpop.permute.xlu0 %2158
    %2162 = vset.pattern.permute.xlu0 0
    %2163 = vperm.xlu0 %2162, %v2005
    %v2164 = vpop.permute.xlu0 %2163
    %v2166 = vmul.f32 %v1910, %v2009
    %v2167 = vmul.f32 %v1911, %v2014
    %v2168 = vmul.f32 %v1912, %v2019
    %v2169 = vmul.f32 %v1913, %v2024
    %v2170 = vmul.f32 %v1914, %v2029
    %v2171 = vmul.f32 %v1915, %v2034
    %v2172 = vmul.f32 %v1916, %v2039
    %v2173 = vmul.f32 %v1917, %v2044
    %v2174 = vmul.f32 %v1918, %v2049
    %v2175 = vmul.f32 %v1919, %v2054
    %v2176 = vmul.f32 %v1920, %v2059
    %v2177 = vmul.f32 %v1921, %v2064
    %v2178 = vmul.f32 %v1922, %v2069
    %v2179 = vmul.f32 %v1923, %v2074
    %v2180 = vmul.f32 %v1924, %v2079
    %v2181 = vmul.f32 %v1925, %v2084
    %v2182 = vmul.f32 %v1926, %v2089
    %v2183 = vmul.f32 %v1927, %v2094
    %v2184 = vmul.f32 %v1928, %v2099
    %v2185 = vmul.f32 %v1929, %v2104
    %v2186 = vmul.f32 %v1930, %v2109
    %v2187 = vmul.f32 %v1931, %v2114
    %v2188 = vmul.f32 %v1932, %v2119
    %v2189 = vmul.f32 %v1933, %v2124
    %v2190 = vmul.f32 %v1934, %v2129
    %v2191 = vmul.f32 %v1935, %v2134
    %v2192 = vmul.f32 %v1936, %v2139
    %v2193 = vmul.f32 %v1937, %v2144
    %v2194 = vmul.f32 %v1938, %v2149
    %v2195 = vmul.f32 %v1939, %v2154
    %v2196 = vmul.f32 %v1940, %v2159
    %v2197 = vmul.f32 %v1941, %v2164
    %vm2198 = vcmp.gt.f32.partialorder %v2166, 0.0
    %vm2199 = vcmp.gt.f32.partialorder %v2167, 0.0
    %vm2200 = vcmp.gt.f32.partialorder %v2168, 0.0
    %vm2201 = vcmp.gt.f32.partialorder %v2169, 0.0
    %vm2202 = vcmp.gt.f32.partialorder %v2170, 0.0
    %vm2203 = vcmp.gt.f32.partialorder %v2171, 0.0
    %vm2204 = vcmp.gt.f32.partialorder %v2172, 0.0
    %vm2205 = vcmp.gt.f32.partialorder %v2173, 0.0
    %vm2206 = vcmp.gt.f32.partialorder %v2174, 0.0
    %vm2207 = vcmp.gt.f32.partialorder %v2175, 0.0
    %vm2208 = vcmp.gt.f32.partialorder %v2176, 0.0
    %vm2209 = vcmp.gt.f32.partialorder %v2177, 0.0
    %vm2210 = vcmp.gt.f32.partialorder %v2178, 0.0
    %vm2211 = vcmp.gt.f32.partialorder %v2179, 0.0
    %vm2212 = vcmp.gt.f32.partialorder %v2180, 0.0
    %vm2213 = vcmp.gt.f32.partialorder %v2181, 0.0
    %vm2214 = vcmp.gt.f32.partialorder %v2182, 0.0
    %vm2215 = vcmp.gt.f32.partialorder %v2183, 0.0
    %vm2216 = vcmp.gt.f32.partialorder %v2184, 0.0
    %vm2217 = vcmp.gt.f32.partialorder %v2185, 0.0
    %vm2218 = vcmp.gt.f32.partialorder %v2186, 0.0
    %vm2219 = vcmp.gt.f32.partialorder %v2187, 0.0
    %vm2220 = vcmp.gt.f32.partialorder %v2188, 0.0
    %vm2221 = vcmp.gt.f32.partialorder %v2189, 0.0
    %vm2222 = vcmp.gt.f32.partialorder %v2190, 0.0
    %vm2223 = vcmp.gt.f32.partialorder %v2191, 0.0
    %vm2224 = vcmp.gt.f32.partialorder %v2192, 0.0
    %vm2225 = vcmp.gt.f32.partialorder %v2193, 0.0
    %vm2226 = vcmp.gt.f32.partialorder %v2194, 0.0
    %vm2227 = vcmp.gt.f32.partialorder %v2195, 0.0
    %vm2228 = vcmp.gt.f32.partialorder %v2196, 0.0
    %vm2229 = vcmp.gt.f32.partialorder %v2197, 0.0
    %v2230 = vmin.f32 %v2166, 0.0
    %v2231 = vmin.f32 %v2167, 0.0
    %v2232 = vmin.f32 %v2168, 0.0
    %v2233 = vmin.f32 %v2169, 0.0
    %v2234 = vmin.f32 %v2170, 0.0
    %v2235 = vmin.f32 %v2171, 0.0
    %v2236 = vmin.f32 %v2172, 0.0
    %v2237 = vmin.f32 %v2173, 0.0
    %v2238 = vmin.f32 %v2174, 0.0
    %v2239 = vmin.f32 %v2175, 0.0
    %v2240 = vmin.f32 %v2176, 0.0
    %v2241 = vmin.f32 %v2177, 0.0
    %v2242 = vmin.f32 %v2178, 0.0
    %v2243 = vmin.f32 %v2179, 0.0
    %v2244 = vmin.f32 %v2180, 0.0
    %v2245 = vmin.f32 %v2181, 0.0
    %v2246 = vmin.f32 %v2182, 0.0
    %v2247 = vmin.f32 %v2183, 0.0
    %v2248 = vmin.f32 %v2184, 0.0
    %v2249 = vmin.f32 %v2185, 0.0
    %v2250 = vmin.f32 %v2186, 0.0
    %v2251 = vmin.f32 %v2187, 0.0
    %v2252 = vmin.f32 %v2188, 0.0
    %v2253 = vmin.f32 %v2189, 0.0
    %v2254 = vmin.f32 %v2190, 0.0
    %v2255 = vmin.f32 %v2191, 0.0
    %v2256 = vmin.f32 %v2192, 0.0
    %v2257 = vmin.f32 %v2193, 0.0
    %v2258 = vmin.f32 %v2194, 0.0
    %v2259 = vmin.f32 %v2195, 0.0
    %v2260 = vmin.f32 %v2196, 0.0
    %v2261 = vmin.f32 %v2197, 0.0
    %v2262 = vmul.f32 %v2230, 1.442695
    %v2263 = vpow.pop %v2262
    %v2264 = vmul.f32 %v2231, 1.442695
    %v2265 = vpow.pop %v2264
    %v2266 = vmul.f32 %v2232, 1.442695
    %v2267 = vpow.pop %v2266
    %v2268 = vmul.f32 %v2233, 1.442695
    %v2269 = vpow.pop %v2268
    %v2270 = vmul.f32 %v2234, 1.442695
    %v2271 = vpow.pop %v2270
    %v2272 = vmul.f32 %v2235, 1.442695
    %v2273 = vpow.pop %v2272
    %v2274 = vmul.f32 %v2236, 1.442695
    %v2275 = vpow.pop %v2274
    %v2276 = vmul.f32 %v2237, 1.442695
    %v2277 = vpow.pop %v2276
    %v2278 = vmul.f32 %v2238, 1.442695
    %v2279 = vpow.pop %v2278
    %v2280 = vmul.f32 %v2239, 1.442695
    %v2281 = vpow.pop %v2280
    %v2282 = vmul.f32 %v2240, 1.442695
    %v2283 = vpow.pop %v2282
    %v2284 = vmul.f32 %v2241, 1.442695
    %v2285 = vpow.pop %v2284
    %v2286 = vmul.f32 %v2242, 1.442695
    %v2287 = vpow.pop %v2286
    %v2288 = vmul.f32 %v2243, 1.442695
    %v2289 = vpow.pop %v2288
    %v2290 = vmul.f32 %v2244, 1.442695
    %v2291 = vpow.pop %v2290
    %v2292 = vmul.f32 %v2245, 1.442695
    %v2293 = vpow.pop %v2292
    %v2294 = vmul.f32 %v2246, 1.442695
    %v2295 = vpow.pop %v2294
    %v2296 = vmul.f32 %v2247, 1.442695
    %v2297 = vpow.pop %v2296
    %v2298 = vmul.f32 %v2248, 1.442695
    %v2299 = vpow.pop %v2298
    %v2300 = vmul.f32 %v2249, 1.442695
    %v2301 = vpow.pop %v2300
    %v2302 = vmul.f32 %v2250, 1.442695
    %v2303 = vpow.pop %v2302
    %v2304 = vmul.f32 %v2251, 1.442695
    %v2305 = vpow.pop %v2304
    %v2306 = vmul.f32 %v2252, 1.442695
    %v2307 = vpow.pop %v2306
    %v2308 = vmul.f32 %v2253, 1.442695
    %v2309 = vpow.pop %v2308
    %v2310 = vmul.f32 %v2254, 1.442695
    %v2311 = vpow.pop %v2310
    %v2312 = vmul.f32 %v2255, 1.442695
    %v2313 = vpow.pop %v2312
    %v2314 = vmul.f32 %v2256, 1.442695
    %v2315 = vpow.pop %v2314
    %v2316 = vmul.f32 %v2257, 1.442695
    %v2317 = vpow.pop %v2316
    %v2318 = vmul.f32 %v2258, 1.442695
    %v2319 = vpow.pop %v2318
    %v2320 = vmul.f32 %v2259, 1.442695
    %v2321 = vpow.pop %v2320
    %v2322 = vmul.f32 %v2260, 1.442695
    %v2323 = vpow.pop %v2322
    %v2324 = vmul.f32 %v2261, 1.442695
    %v2325 = vpow.pop %v2324
    %v2326 = vsub.f32 %v2263, 1.0
    %v2327 = vsub.f32 %v2265, 1.0
    %v2328 = vsub.f32 %v2267, 1.0
    %v2329 = vsub.f32 %v2269, 1.0
    %v2330 = vsub.f32 %v2271, 1.0
    %v2331 = vsub.f32 %v2273, 1.0
    %v2332 = vsub.f32 %v2275, 1.0
    %v2333 = vsub.f32 %v2277, 1.0
    %v2334 = vsub.f32 %v2279, 1.0
    %v2335 = vsub.f32 %v2281, 1.0
    %v2336 = vsub.f32 %v2283, 1.0
    %v2337 = vsub.f32 %v2285, 1.0
    %v2338 = vsub.f32 %v2287, 1.0
    %v2339 = vsub.f32 %v2289, 1.0
    %v2340 = vsub.f32 %v2291, 1.0
    %v2341 = vsub.f32 %v2293, 1.0
    %v2342 = vsub.f32 %v2295, 1.0
    %v2343 = vsub.f32 %v2297, 1.0
    %v2344 = vsub.f32 %v2299, 1.0
    %v2345 = vsub.f32 %v2301, 1.0
    %v2346 = vsub.f32 %v2303, 1.0
    %v2347 = vsub.f32 %v2305, 1.0
    %v2348 = vsub.f32 %v2307, 1.0
    %v2349 = vsub.f32 %v2309, 1.0
    %v2350 = vsub.f32 %v2311, 1.0
    %v2351 = vsub.f32 %v2313, 1.0
    %v2352 = vsub.f32 %v2315, 1.0
    %v2353 = vsub.f32 %v2317, 1.0
    %v2354 = vsub.f32 %v2319, 1.0
    %v2355 = vsub.f32 %v2321, 1.0
    %v2356 = vsub.f32 %v2323, 1.0
    %v2357 = vsub.f32 %v2325, 1.0
    %v2358 = vsel %vm2198, %v2166, %v2326
    %v2359 = vsel %vm2199, %v2167, %v2327
    %v2360 = vsel %vm2200, %v2168, %v2328
    %v2361 = vsel %vm2201, %v2169, %v2329
    %v2362 = vsel %vm2202, %v2170, %v2330
    %v2363 = vsel %vm2203, %v2171, %v2331
    %v2364 = vsel %vm2204, %v2172, %v2332
    %v2365 = vsel %vm2205, %v2173, %v2333
    %v2366 = vsel %vm2206, %v2174, %v2334
    %v2367 = vsel %vm2207, %v2175, %v2335
    %v2368 = vsel %vm2208, %v2176, %v2336
    %v2369 = vsel %vm2209, %v2177, %v2337
    %v2370 = vsel %vm2210, %v2178, %v2338
    %v2371 = vsel %vm2211, %v2179, %v2339
    %v2372 = vsel %vm2212, %v2180, %v2340
    %v2373 = vsel %vm2213, %v2181, %v2341
    %v2374 = vsel %vm2214, %v2182, %v2342
    %v2375 = vsel %vm2215, %v2183, %v2343
    %v2376 = vsel %vm2216, %v2184, %v2344
    %v2377 = vsel %vm2217, %v2185, %v2345
    %v2378 = vsel %vm2218, %v2186, %v2346
    %v2379 = vsel %vm2219, %v2187, %v2347
    %v2380 = vsel %vm2220, %v2188, %v2348
    %v2381 = vsel %vm2221, %v2189, %v2349
    %v2382 = vsel %vm2222, %v2190, %v2350
    %v2383 = vsel %vm2223, %v2191, %v2351
    %v2384 = vsel %vm2224, %v2192, %v2352
    %v2385 = vsel %vm2225, %v2193, %v2353
    %v2386 = vsel %vm2226, %v2194, %v2354
    %v2387 = vsel %vm2227, %v2195, %v2355
    %v2388 = vsel %vm2228, %v2196, %v2356
    %v2389 = vsel %vm2229, %v2197, %v2357
    %v2390 = vpack.c.bf16 %v2358, %v2358
    %v2391 = vpack.c.bf16 %v2359, %v2359
    %v2392 = vpack.c.bf16 %v2360, %v2360
    %v2393 = vpack.c.bf16 %v2361, %v2361
    %v2394 = vpack.c.bf16 %v2362, %v2362
    %v2395 = vpack.c.bf16 %v2363, %v2363
    %v2396 = vpack.c.bf16 %v2364, %v2364
    %v2397 = vpack.c.bf16 %v2365, %v2365
    %v2398 = vpack.c.bf16 %v2366, %v2366
    %v2399 = vpack.c.bf16 %v2367, %v2367
    %v2400 = vpack.c.bf16 %v2368, %v2368
    %v2401 = vpack.c.bf16 %v2369, %v2369
    %v2402 = vpack.c.bf16 %v2370, %v2370
    %v2403 = vpack.c.bf16 %v2371, %v2371
    %v2404 = vpack.c.bf16 %v2372, %v2372
    %v2405 = vpack.c.bf16 %v2373, %v2373
    %v2406 = vpack.c.bf16 %v2374, %v2374
    %v2407 = vpack.c.bf16 %v2375, %v2375
    %v2408 = vpack.c.bf16 %v2376, %v2376
    %v2409 = vpack.c.bf16 %v2377, %v2377
    %v2410 = vpack.c.bf16 %v2378, %v2378
    %v2411 = vpack.c.bf16 %v2379, %v2379
    %v2412 = vpack.c.bf16 %v2380, %v2380
    %v2413 = vpack.c.bf16 %v2381, %v2381
    %v2414 = vpack.c.bf16 %v2382, %v2382
    %v2415 = vpack.c.bf16 %v2383, %v2383
    %v2416 = vpack.c.bf16 %v2384, %v2384
    %v2417 = vpack.c.bf16 %v2385, %v2385
    %v2418 = vpack.c.bf16 %v2386, %v2386
    %v2419 = vpack.c.bf16 %v2387, %v2387
    %v2420 = vpack.c.bf16 %v2388, %v2388
    %v2421 = vpack.c.bf16 %v2389, %v2389
    %vm2422 = vcmask 60416
    %2423 = vst.msk [vmem:[%s4] sm:$0xf] %vm2422, %v2390
    %2424 = vst.msk [vmem:[%s4 + $0x4] sm:$0xf] %vm2422, %v2391
    %2425 = vst.msk [vmem:[%s4 + $0x8] sm:$0xf] %vm2422, %v2392
    %2426 = vst.msk [vmem:[%s4 + $0xc] sm:$0xf] %vm2422, %v2393
    %2427 = vst.msk [vmem:[%s4 + $0x10] sm:$0xf] %vm2422, %v2394
    %2428 = vst.msk [vmem:[%s4 + $0x14] sm:$0xf] %vm2422, %v2395
    %2429 = vst.msk [vmem:[%s4 + $0x18] sm:$0xf] %vm2422, %v2396
    %2430 = vst.msk [vmem:[%s4 + $0x1c] sm:$0xf] %vm2422, %v2397
    %2431 = vst.msk [vmem:[%s4 + $0x20] sm:$0xf] %vm2422, %v2398
    %2432 = vst.msk [vmem:[%s4 + $0x24] sm:$0xf] %vm2422, %v2399
    %2433 = vst.msk [vmem:[%s4 + $0x28] sm:$0xf] %vm2422, %v2400
    %2434 = vst.msk [vmem:[%s4 + $0x2c] sm:$0xf] %vm2422, %v2401
    %2435 = vst.msk [vmem:[%s4 + $0x30] sm:$0xf] %vm2422, %v2402
    %2436 = vst.msk [vmem:[%s4 + $0x34] sm:$0xf] %vm2422, %v2403
    %2437 = vst.msk [vmem:[%s4 + $0x38] sm:$0xf] %vm2422, %v2404
    %2438 = vst.msk [vmem:[%s4 + $0x3c] sm:$0xf] %vm2422, %v2405
    %2439 = vst.msk [vmem:[%s4 + $0x40] sm:$0xf] %vm2422, %v2406
    %2440 = vst.msk [vmem:[%s4 + $0x44] sm:$0xf] %vm2422, %v2407
    %2441 = vst.msk [vmem:[%s4 + $0x48] sm:$0xf] %vm2422, %v2408
    %2442 = vst.msk [vmem:[%s4 + $0x4c] sm:$0xf] %vm2422, %v2409
    %2443 = vst.msk [vmem:[%s4 + $0x50] sm:$0xf] %vm2422, %v2410
    %2444 = vst.msk [vmem:[%s4 + $0x54] sm:$0xf] %vm2422, %v2411
    %2445 = vst.msk [vmem:[%s4 + $0x58] sm:$0xf] %vm2422, %v2412
    %2446 = vst.msk [vmem:[%s4 + $0x5c] sm:$0xf] %vm2422, %v2413
    %2447 = vst.msk [vmem:[%s4 + $0x60] sm:$0xf] %vm2422, %v2414
    %2448 = vst.msk [vmem:[%s4 + $0x64] sm:$0xf] %vm2422, %v2415
    %2449 = vst.msk [vmem:[%s4 + $0x68] sm:$0xf] %vm2422, %v2416
    %2450 = vst.msk [vmem:[%s4 + $0x6c] sm:$0xf] %vm2422, %v2417
    %2451 = vst.msk [vmem:[%s4 + $0x70] sm:$0xf] %vm2422, %v2418
    %2452 = vst.msk [vmem:[%s4 + $0x74] sm:$0xf] %vm2422, %v2419
    %2453 = vst.msk [vmem:[%s4 + $0x78] sm:$0xf] %vm2422, %v2420
    %2454 = vst.msk [vmem:[%s4 + $0x7c] sm:$0xf] %vm2422, %v2421
  $region25: #{model_forward.15} parent=0 // pred_fallthru
    _
  // Predicated region
  $region26: #{model_forward.15} parent=0 // pred_check
    _
  $region27: #{model_forward.15} parent=0 // pred_check_branch
    %2456 = sbr.rel (0) target = $region29
  $region28: #{model_forward.15} parent=0 // pred_region
    _
  $region29: #{model_forward.15} parent=0 // pred_fallthru
    _
  // Predicated region
  $region30: #{model_forward.15} parent=0 // pred_check
    _
  $region31: #{model_forward.15} parent=0 // pred_check_branch
    %2458 = sbr.rel (0) target = $region33
  $region32: #{model_forward.15} parent=0 // pred_region
    _
  $region33: #{model_forward.15} parent=0 // pred_fallthru
    _

// kernel: model_forward.17
$region0: #{model_forward.17}
  #allocation0 [shape = 'u32[]', space=smem, size = 0x4, offset = 0x4, fixed_abs, tag = 'smem constant byte address 0x4 - core index']
  #allocation1 [shape = 'u32[72,128]{1,0:T(1,128)}', space=vmem, size = 0x9000, scoped, tag = 'internal scratch']
  #allocation2 [shape = 'f32[1,128,1]{2,1,0:T(8,128)}', space=vmem, size = 0x10000, scoped, tag = 'scratch operand']
  #allocation3 [shape = 'f32[1,128,1]{2,1,0:T(8,128)}', space=vmem, size = 0x10000, scoped, tag = 'scratch operand']
  #allocation4 [shape = 'f32[1,128,4]{2,1,0:T(8,128)}', space=vmem, size = 0x10000, scoped, tag = 'scratch operand']
  %s0 = inlined_call_operand.vmem [shape: f32[1,128,1], index: 0, kind: input, shape index: {}]
  %s1 = inlined_call_operand.vmem [shape: f32[1,1,128], index: 1, kind: input, shape index: {}]
  %s2 = inlined_call_operand.vmem [shape: bf16[128,128], index: 2, kind: input, shape index: {}]
  %s3 = inlined_call_operand.vmem [shape: bf16[1,128,4], index: 3, kind: input, shape index: {}]
  %s4 = inlined_call_operand.vmem [shape: f32[1,128,4], index: 4, kind: output, shape index: {}]
  %s5 = sld [smem:[#allocation0]]
  $region34: #{model_forward.17} parent=0
    _
  %s7 = ssub.s32 1, %s5
  %s8 = scalar_select 0, %s7, %s5
  // Predicated region
  $region2: #{model_forward.17} parent=0 // pred_check
    _
  $region3: #{model_forward.17} parent=0 // pred_check_branch
    %10 = sbr.rel (0) target = $region5
  $region4: #{model_forward.17} parent=0 // pred_region
    _
  $region5: #{model_forward.17} parent=0 // pred_fallthru
    _
  // Predicated region
  $region6: #{model_forward.17} parent=0 // pred_check
    _
  $region7: #{model_forward.17} parent=0 // pred_check_branch
    %12 = sbr.rel (0) target = $region9
  $region8: #{model_forward.17} parent=0 // pred_region
    _
  $region9: #{model_forward.17} parent=0 // pred_fallthru
    _
  // Predicated region
  $region10: #{model_forward.17} parent=0 // pred_check
    _
  $region11: #{model_forward.17} parent=0 // pred_check_branch
    %14 = sbr.rel (0) target = $region13
  $region12: #{model_forward.17} parent=0 // pred_region
    _
  $region13: #{model_forward.17} parent=0 // pred_fallthru
    _
  // Predicated region
  $region14: #{model_forward.17} parent=0 // pred_check
    _
  $region15: #{model_forward.17} parent=0 // pred_check_branch
    %16 = sbr.rel (0) target = $region17
  $region16: #{model_forward.17} parent=0 // pred_region
    _
  $region17: #{model_forward.17} parent=0 // pred_fallthru
    _
  %p17 = scmp.eq.s32.totalorder 0, 0
  // Predicated region
  $region18: #{model_forward.17} parent=0 // pred_check
    %p18 = pneg %p17
  $region19: #{model_forward.17} parent=0 // pred_check_branch
    %20 = sbr.rel (%p18) target = $region21
  $region20: #{model_forward.17} parent=0 // pred_region
    %vm21 = vcmask 7168
    %22 = vst.msk [vmem:[#allocation2] sm:$0xff] %vm21, -inf
    %23 = vst.msk [vmem:[#allocation2 + $0x8] sm:$0xff] %vm21, -inf
    %24 = vst.msk [vmem:[#allocation2 + $0x10] sm:$0xff] %vm21, -inf
    %25 = vst.msk [vmem:[#allocation2 + $0x18] sm:$0xff] %vm21, -inf
    %26 = vst.msk [vmem:[#allocation2 + $0x20] sm:$0xff] %vm21, -inf
    %27 = vst.msk [vmem:[#allocation2 + $0x28] sm:$0xff] %vm21, -inf
    %28 = vst.msk [vmem:[#allocation2 + $0x30] sm:$0xff] %vm21, -inf
    %29 = vst.msk [vmem:[#allocation2 + $0x38] sm:$0xff] %vm21, -inf
    %30 = vst.msk [vmem:[#allocation2 + $0x40] sm:$0xff] %vm21, -inf
    %31 = vst.msk [vmem:[#allocation2 + $0x48] sm:$0xff] %vm21, -inf
    %32 = vst.msk [vmem:[#allocation2 + $0x50] sm:$0xff] %vm21, -inf
    %33 = vst.msk [vmem:[#allocation2 + $0x58] sm:$0xff] %vm21, -inf
    %34 = vst.msk [vmem:[#allocation2 + $0x60] sm:$0xff] %vm21, -inf
    %35 = vst.msk [vmem:[#allocation2 + $0x68] sm:$0xff] %vm21, -inf
    %36 = vst.msk [vmem:[#allocation2 + $0x70] sm:$0xff] %vm21, -inf
    %37 = vst.msk [vmem:[#allocation2 + $0x78] sm:$0xff] %vm21, -inf
    %38 = vst.msk [vmem:[#allocation3] sm:$0xff] %vm21, 0.0
    %39 = vst.msk [vmem:[#allocation3 + $0x8] sm:$0xff] %vm21, 0.0
    %40 = vst.msk [vmem:[#allocation3 + $0x10] sm:$0xff] %vm21, 0.0
    %41 = vst.msk [vmem:[#allocation3 + $0x18] sm:$0xff] %vm21, 0.0
    %42 = vst.msk [vmem:[#allocation3 + $0x20] sm:$0xff] %vm21, 0.0
    %43 = vst.msk [vmem:[#allocation3 + $0x28] sm:$0xff] %vm21, 0.0
    %44 = vst.msk [vmem:[#allocation3 + $0x30] sm:$0xff] %vm21, 0.0
    %45 = vst.msk [vmem:[#allocation3 + $0x38] sm:$0xff] %vm21, 0.0
    %46 = vst.msk [vmem:[#allocation3 + $0x40] sm:$0xff] %vm21, 0.0
    %47 = vst.msk [vmem:[#allocation3 + $0x48] sm:$0xff] %vm21, 0.0
    %48 = vst.msk [vmem:[#allocation3 + $0x50] sm:$0xff] %vm21, 0.0
    %49 = vst.msk [vmem:[#allocation3 + $0x58] sm:$0xff] %vm21, 0.0
    %50 = vst.msk [vmem:[#allocation3 + $0x60] sm:$0xff] %vm21, 0.0
    %51 = vst.msk [vmem:[#allocation3 + $0x68] sm:$0xff] %vm21, 0.0
    %52 = vst.msk [vmem:[#allocation3 + $0x70] sm:$0xff] %vm21, 0.0
    %53 = vst.msk [vmem:[#allocation3 + $0x78] sm:$0xff] %vm21, 0.0
    %vm54 = vcmask 31744
    %55 = vst.msk [vmem:[#allocation4] sm:$0xff] %vm54, 0.0
    %56 = vst.msk [vmem:[#allocation4 + $0x8] sm:$0xff] %vm54, 0.0
    %57 = vst.msk [vmem:[#allocation4 + $0x10] sm:$0xff] %vm54, 0.0
    %58 = vst.msk [vmem:[#allocation4 + $0x18] sm:$0xff] %vm54, 0.0
    %59 = vst.msk [vmem:[#allocation4 + $0x20] sm:$0xff] %vm54, 0.0
    %60 = vst.msk [vmem:[#allocation4 + $0x28] sm:$0xff] %vm54, 0.0
    %61 = vst.msk [vmem:[#allocation4 + $0x30] sm:$0xff] %vm54, 0.0
    %62 = vst.msk [vmem:[#allocation4 + $0x38] sm:$0xff] %vm54, 0.0
    %63 = vst.msk [vmem:[#allocation4 + $0x40] sm:$0xff] %vm54, 0.0
    %64 = vst.msk [vmem:[#allocation4 + $0x48] sm:$0xff] %vm54, 0.0
    %65 = vst.msk [vmem:[#allocation4 + $0x50] sm:$0xff] %vm54, 0.0
    %66 = vst.msk [vmem:[#allocation4 + $0x58] sm:$0xff] %vm54, 0.0
    %67 = vst.msk [vmem:[#allocation4 + $0x60] sm:$0xff] %vm54, 0.0
    %68 = vst.msk [vmem:[#allocation4 + $0x68] sm:$0xff] %vm54, 0.0
    %69 = vst.msk [vmem:[#allocation4 + $0x70] sm:$0xff] %vm54, 0.0
    %70 = vst.msk [vmem:[#allocation4 + $0x78] sm:$0xff] %vm54, 0.0
  $region21: #{model_forward.17} parent=0 // pred_fallthru
    _
  %v71 = vld [vmem:[%s0] sm:$0xff]
  %v72 = vld [vmem:[%s0 + $0x8] sm:$0xff]
  %v73 = vld [vmem:[%s0 + $0x10] sm:$0xff]
  %v74 = vld [vmem:[%s0 + $0x18] sm:$0xff]
  %v75 = vld [vmem:[%s0 + $0x20] sm:$0xff]
  %v76 = vld [vmem:[%s0 + $0x28] sm:$0xff]
  %v77 = vld [vmem:[%s0 + $0x30] sm:$0xff]
  %v78 = vld [vmem:[%s0 + $0x38] sm:$0xff]
  %v79 = vld [vmem:[%s0 + $0x40] sm:$0xff]
  %v80 = vld [vmem:[%s0 + $0x48] sm:$0xff]
  %v81 = vld [vmem:[%s0 + $0x50] sm:$0xff]
  %v82 = vld [vmem:[%s0 + $0x58] sm:$0xff]
  %v83 = vld [vmem:[%s0 + $0x60] sm:$0xff]
  %v84 = vld [vmem:[%s0 + $0x68] sm:$0xff]
  %v85 = vld [vmem:[%s0 + $0x70] sm:$0xff]
  %v86 = vld [vmem:[%s0 + $0x78] sm:$0xff]
  %v87 = vld [vmem:[%s1] sm:$0x1]
  %89 = vset.pattern.permute.xlu0 0
  %90 = vperm.xlu0 %89, %v71
  %v91 = vpop.permute.xlu0 %90
  %94 = vset.pattern.permute.xlu0 0
  %95 = vperm.xlu0 %94, %v72
  %v96 = vpop.permute.xlu0 %95
  %99 = vset.pattern.permute.xlu0 0
  %100 = vperm.xlu0 %99, %v73
  %v101 = vpop.permute.xlu0 %100
  %104 = vset.pattern.permute.xlu0 0
  %105 = vperm.xlu0 %104, %v74
  %v106 = vpop.permute.xlu0 %105
  %109 = vset.pattern.permute.xlu0 0
  %110 = vperm.xlu0 %109, %v75
  %v111 = vpop.permute.xlu0 %110
  %114 = vset.pattern.permute.xlu0 0
  %115 = vperm.xlu0 %114, %v76
  %v116 = vpop.permute.xlu0 %115
  %119 = vset.pattern.permute.xlu0 0
  %120 = vperm.xlu0 %119, %v77
  %v121 = vpop.permute.xlu0 %120
  %124 = vset.pattern.permute.xlu0 0
  %125 = vperm.xlu0 %124, %v78
  %v126 = vpop.permute.xlu0 %125
  %129 = vset.pattern.permute.xlu0 0
  %130 = vperm.xlu0 %129, %v79
  %v131 = vpop.permute.xlu0 %130
  %134 = vset.pattern.permute.xlu0 0
  %135 = vperm.xlu0 %134, %v80
  %v136 = vpop.permute.xlu0 %135
  %139 = vset.pattern.permute.xlu0 0
  %140 = vperm.xlu0 %139, %v81
  %v141 = vpop.permute.xlu0 %140
  %144 = vset.pattern.permute.xlu0 0
  %145 = vperm.xlu0 %144, %v82
  %v146 = vpop.permute.xlu0 %145
  %149 = vset.pattern.permute.xlu0 0
  %150 = vperm.xlu0 %149, %v83
  %v151 = vpop.permute.xlu0 %150
  %154 = vset.pattern.permute.xlu0 0
  %155 = vperm.xlu0 %154, %v84
  %v156 = vpop.permute.xlu0 %155
  %159 = vset.pattern.permute.xlu0 0
  %160 = vperm.xlu0 %159, %v85
  %v161 = vpop.permute.xlu0 %160
  %164 = vset.pattern.permute.xlu0 0
  %165 = vperm.xlu0 %164, %v86
  %v166 = vpop.permute.xlu0 %165
  %v169 = vperm.slane %v87, 0
  %v171 = vadd.f32 %v91, %v169
  %v172 = vadd.f32 %v96, %v169
  %v173 = vadd.f32 %v101, %v169
  %v174 = vadd.f32 %v106, %v169
  %v175 = vadd.f32 %v111, %v169
  %v176 = vadd.f32 %v116, %v169
  %v177 = vadd.f32 %v121, %v169
  %v178 = vadd.f32 %v126, %v169
  %v179 = vadd.f32 %v131, %v169
  %v180 = vadd.f32 %v136, %v169
  %v181 = vadd.f32 %v141, %v169
  %v182 = vadd.f32 %v146, %v169
  %v183 = vadd.f32 %v151, %v169
  %v184 = vadd.f32 %v156, %v169
  %v185 = vadd.f32 %v161, %v169
  %v186 = vadd.f32 %v166, %v169
  %vm187 = vcmp.gt.f32.partialorder %v171, 0.0
  %vm188 = vcmp.gt.f32.partialorder %v172, 0.0
  %vm189 = vcmp.gt.f32.partialorder %v173, 0.0
  %vm190 = vcmp.gt.f32.partialorder %v174, 0.0
  %vm191 = vcmp.gt.f32.partialorder %v175, 0.0
  %vm192 = vcmp.gt.f32.partialorder %v176, 0.0
  %vm193 = vcmp.gt.f32.partialorder %v177, 0.0
  %vm194 = vcmp.gt.f32.partialorder %v178, 0.0
  %vm195 = vcmp.gt.f32.partialorder %v179, 0.0
  %vm196 = vcmp.gt.f32.partialorder %v180, 0.0
  %vm197 = vcmp.gt.f32.partialorder %v181, 0.0
  %vm198 = vcmp.gt.f32.partialorder %v182, 0.0
  %vm199 = vcmp.gt.f32.partialorder %v183, 0.0
  %vm200 = vcmp.gt.f32.partialorder %v184, 0.0
  %vm201 = vcmp.gt.f32.partialorder %v185, 0.0
  %vm202 = vcmp.gt.f32.partialorder %v186, 0.0
  %v203 = vmul.f32 %v171, 0.2
  %v204 = vmul.f32 %v172, 0.2
  %v205 = vmul.f32 %v173, 0.2
  %v206 = vmul.f32 %v174, 0.2
  %v207 = vmul.f32 %v175, 0.2
  %v208 = vmul.f32 %v176, 0.2
  %v209 = vmul.f32 %v177, 0.2
  %v210 = vmul.f32 %v178, 0.2
  %v211 = vmul.f32 %v179, 0.2
  %v212 = vmul.f32 %v180, 0.2
  %v213 = vmul.f32 %v181, 0.2
  %v214 = vmul.f32 %v182, 0.2
  %v215 = vmul.f32 %v183, 0.2
  %v216 = vmul.f32 %v184, 0.2
  %v217 = vmul.f32 %v185, 0.2
  %v218 = vmul.f32 %v186, 0.2
  %v219 = vsel %vm187, %v171, %v203
  %v220 = vsel %vm188, %v172, %v204
  %v221 = vsel %vm189, %v173, %v205
  %v222 = vsel %vm190, %v174, %v206
  %v223 = vsel %vm191, %v175, %v207
  %v224 = vsel %vm192, %v176, %v208
  %v225 = vsel %vm193, %v177, %v209
  %v226 = vsel %vm194, %v178, %v210
  %v227 = vsel %vm195, %v179, %v211
  %v228 = vsel %vm196, %v180, %v212
  %v229 = vsel %vm197, %v181, %v213
  %v230 = vsel %vm198, %v182, %v214
  %v231 = vsel %vm199, %v183, %v215
  %v232 = vsel %vm200, %v184, %v216
  %v233 = vsel %vm201, %v185, %v217
  %v234 = vsel %vm202, %v186, %v218
  %v235 = vld [vmem:[%s2] sm:$0xf]
  %v236 = vld [vmem:[%s2 + $0x4] sm:$0xf]
  %v237 = vld [vmem:[%s2 + $0x8] sm:$0xf]
  %v238 = vld [vmem:[%s2 + $0xc] sm:$0xf]
  %v239 = vld [vmem:[%s2 + $0x10] sm:$0xf]
  %v240 = vld [vmem:[%s2 + $0x14] sm:$0xf]
  %v241 = vld [vmem:[%s2 + $0x18] sm:$0xf]
  %v242 = vld [vmem:[%s2 + $0x1c] sm:$0xf]
  %v243 = vld [vmem:[%s2 + $0x20] sm:$0xf]
  %v244 = vld [vmem:[%s2 + $0x24] sm:$0xf]
  %v245 = vld [vmem:[%s2 + $0x28] sm:$0xf]
  %v246 = vld [vmem:[%s2 + $0x2c] sm:$0xf]
  %v247 = vld [vmem:[%s2 + $0x30] sm:$0xf]
  %v248 = vld [vmem:[%s2 + $0x34] sm:$0xf]
  %v249 = vld [vmem:[%s2 + $0x38] sm:$0xf]
  %v250 = vld [vmem:[%s2 + $0x3c] sm:$0xf]
  %v251 = vunpack.c.l.bf16 %v235
  %v252 = vunpack.c.l.bf16 %v236
  %v253 = vunpack.c.l.bf16 %v237
  %v254 = vunpack.c.l.bf16 %v238
  %v255 = vunpack.c.l.bf16 %v239
  %v256 = vunpack.c.l.bf16 %v240
  %v257 = vunpack.c.l.bf16 %v241
  %v258 = vunpack.c.l.bf16 %v242
  %v259 = vunpack.c.l.bf16 %v243
  %v260 = vunpack.c.l.bf16 %v244
  %v261 = vunpack.c.l.bf16 %v245
  %v262 = vunpack.c.l.bf16 %v246
  %v263 = vunpack.c.l.bf16 %v247
  %v264 = vunpack.c.l.bf16 %v248
  %v265 = vunpack.c.l.bf16 %v249
  %v266 = vunpack.c.l.bf16 %v250
  %vm267 = vcmp.gt.f32.partialorder %v251, 0.0
  %vm268 = vcmp.gt.f32.partialorder %v252, 0.0
  %vm269 = vcmp.gt.f32.partialorder %v253, 0.0
  %vm270 = vcmp.gt.f32.partialorder %v254, 0.0
  %vm271 = vcmp.gt.f32.partialorder %v255, 0.0
  %vm272 = vcmp.gt.f32.partialorder %v256, 0.0
  %vm273 = vcmp.gt.f32.partialorder %v257, 0.0
  %vm274 = vcmp.gt.f32.partialorder %v258, 0.0
  %vm275 = vcmp.gt.f32.partialorder %v259, 0.0
  %vm276 = vcmp.gt.f32.partialorder %v260, 0.0
  %vm277 = vcmp.gt.f32.partialorder %v261, 0.0
  %vm278 = vcmp.gt.f32.partialorder %v262, 0.0
  %vm279 = vcmp.gt.f32.partialorder %v263, 0.0
  %vm280 = vcmp.gt.f32.partialorder %v264, 0.0
  %vm281 = vcmp.gt.f32.partialorder %v265, 0.0
  %vm282 = vcmp.gt.f32.partialorder %v266, 0.0
  %v283 = vsel %vm267, %v219, -9e+15
  %v284 = vsel %vm268, %v220, -9e+15
  %v285 = vsel %vm269, %v221, -9e+15
  %v286 = vsel %vm270, %v222, -9e+15
  %v287 = vsel %vm271, %v223, -9e+15
  %v288 = vsel %vm272, %v224, -9e+15
  %v289 = vsel %vm273, %v225, -9e+15
  %v290 = vsel %vm274, %v226, -9e+15
  %v291 = vsel %vm275, %v227, -9e+15
  %v292 = vsel %vm276, %v228, -9e+15
  %v293 = vsel %vm277, %v229, -9e+15
  %v294 = vsel %vm278, %v230, -9e+15
  %v295 = vsel %vm279, %v231, -9e+15
  %v296 = vsel %vm280, %v232, -9e+15
  %v297 = vsel %vm281, %v233, -9e+15
  %v298 = vsel %vm282, %v234, -9e+15
  %v299 = vld [vmem:[#allocation2] sm:$0xff]
  %v300 = vld [vmem:[#allocation2 + $0x8] sm:$0xff]
  %v301 = vld [vmem:[#allocation2 + $0x10] sm:$0xff]
  %v302 = vld [vmem:[#allocation2 + $0x18] sm:$0xff]
  %v303 = vld [vmem:[#allocation2 + $0x20] sm:$0xff]
  %v304 = vld [vmem:[#allocation2 + $0x28] sm:$0xff]
  %v305 = vld [vmem:[#allocation2 + $0x30] sm:$0xff]
  %v306 = vld [vmem:[#allocation2 + $0x38] sm:$0xff]
  %v307 = vld [vmem:[#allocation2 + $0x40] sm:$0xff]
  %v308 = vld [vmem:[#allocation2 + $0x48] sm:$0xff]
  %v309 = vld [vmem:[#allocation2 + $0x50] sm:$0xff]
  %v310 = vld [vmem:[#allocation2 + $0x58] sm:$0xff]
  %v311 = vld [vmem:[#allocation2 + $0x60] sm:$0xff]
  %v312 = vld [vmem:[#allocation2 + $0x68] sm:$0xff]
  %v313 = vld [vmem:[#allocation2 + $0x70] sm:$0xff]
  %v314 = vld [vmem:[#allocation2 + $0x78] sm:$0xff]
  %315 = vmax.xlane.f32.xlu0 %v283
  %v316 = vpop.xlane.xlu0 %315
  %317 = vmax.xlane.f32.xlu0 %v284
  %v318 = vpop.xlane.xlu0 %317
  %319 = vmax.xlane.f32.xlu0 %v285
  %v320 = vpop.xlane.xlu0 %319
  %321 = vmax.xlane.f32.xlu0 %v286
  %v322 = vpop.xlane.xlu0 %321
  %323 = vmax.xlane.f32.xlu0 %v287
  %v324 = vpop.xlane.xlu0 %323
  %325 = vmax.xlane.f32.xlu0 %v288
  %v326 = vpop.xlane.xlu0 %325
  %327 = vmax.xlane.f32.xlu0 %v289
  %v328 = vpop.xlane.xlu0 %327
  %329 = vmax.xlane.f32.xlu0 %v290
  %v330 = vpop.xlane.xlu0 %329
  %331 = vmax.xlane.f32.xlu0 %v291
  %v332 = vpop.xlane.xlu0 %331
  %333 = vmax.xlane.f32.xlu0 %v292
  %v334 = vpop.xlane.xlu0 %333
  %335 = vmax.xlane.f32.xlu0 %v293
  %v336 = vpop.xlane.xlu0 %335
  %337 = vmax.xlane.f32.xlu0 %v294
  %v338 = vpop.xlane.xlu0 %337
  %339 = vmax.xlane.f32.xlu0 %v295
  %v340 = vpop.xlane.xlu0 %339
  %341 = vmax.xlane.f32.xlu0 %v296
  %v342 = vpop.xlane.xlu0 %341
  %343 = vmax.xlane.f32.xlu0 %v297
  %v344 = vpop.xlane.xlu0 %343
  %345 = vmax.xlane.f32.xlu0 %v298
  %v346 = vpop.xlane.xlu0 %345
  %v347 = vmax.f32 %v299, %v316
  %v348 = vmax.f32 %v300, %v318
  %v349 = vmax.f32 %v301, %v320
  %v350 = vmax.f32 %v302, %v322
  %v351 = vmax.f32 %v303, %v324
  %v352 = vmax.f32 %v304, %v326
  %v353 = vmax.f32 %v305, %v328
  %v354 = vmax.f32 %v306, %v330
  %v355 = vmax.f32 %v307, %v332
  %v356 = vmax.f32 %v308, %v334
  %v357 = vmax.f32 %v309, %v336
  %v358 = vmax.f32 %v310, %v338
  %v359 = vmax.f32 %v311, %v340
  %v360 = vmax.f32 %v312, %v342
  %v361 = vmax.f32 %v313, %v344
  %v362 = vmax.f32 %v314, %v346
  %v363 = vsub.f32 %v299, %v347
  %v364 = vsub.f32 %v300, %v348
  %v365 = vsub.f32 %v301, %v349
  %v366 = vsub.f32 %v302, %v350
  %v367 = vsub.f32 %v303, %v351
  %v368 = vsub.f32 %v304, %v352
  %v369 = vsub.f32 %v305, %v353
  %v370 = vsub.f32 %v306, %v354
  %v371 = vsub.f32 %v307, %v355
  %v372 = vsub.f32 %v308, %v356
  %v373 = vsub.f32 %v309, %v357
  %v374 = vsub.f32 %v310, %v358
  %v375 = vsub.f32 %v311, %v359
  %v376 = vsub.f32 %v312, %v360
  %v377 = vsub.f32 %v313, %v361
  %v378 = vsub.f32 %v314, %v362
  %v379 = vmul.f32 %v363, 1.442695
  %v380 = vpow.pop %v379
  %v381 = vmul.f32 %v364, 1.442695
  %v382 = vpow.pop %v381
  %v383 = vmul.f32 %v365, 1.442695
  %v384 = vpow.pop %v383
  %v385 = vmul.f32 %v366, 1.442695
  %v386 = vpow.pop %v385
  %v387 = vmul.f32 %v367, 1.442695
  %v388 = vpow.pop %v387
  %v389 = vmul.f32 %v368, 1.442695
  %v390 = vpow.pop %v389
  %v391 = vmul.f32 %v369, 1.442695
  %v392 = vpow.pop %v391
  %v393 = vmul.f32 %v370, 1.442695
  %v394 = vpow.pop %v393
  %v395 = vmul.f32 %v371, 1.442695
  %v396 = vpow.pop %v395
  %v397 = vmul.f32 %v372, 1.442695
  %v398 = vpow.pop %v397
  %v399 = vmul.f32 %v373, 1.442695
  %v400 = vpow.pop %v399
  %v401 = vmul.f32 %v374, 1.442695
  %v402 = vpow.pop %v401
  %v403 = vmul.f32 %v375, 1.442695
  %v404 = vpow.pop %v403
  %v405 = vmul.f32 %v376, 1.442695
  %v406 = vpow.pop %v405
  %v407 = vmul.f32 %v377, 1.442695
  %v408 = vpow.pop %v407
  %v409 = vmul.f32 %v378, 1.442695
  %v410 = vpow.pop %v409
  %412 = vset.pattern.permute.xlu0 0
  %413 = vperm.xlu0 %412, %v347
  %v414 = vpop.permute.xlu0 %413
  %417 = vset.pattern.permute.xlu0 0
  %418 = vperm.xlu0 %417, %v348
  %v419 = vpop.permute.xlu0 %418
  %422 = vset.pattern.permute.xlu0 0
  %423 = vperm.xlu0 %422, %v349
  %v424 = vpop.permute.xlu0 %423
  %427 = vset.pattern.permute.xlu0 0
  %428 = vperm.xlu0 %427, %v350
  %v429 = vpop.permute.xlu0 %428
  %432 = vset.pattern.permute.xlu0 0
  %433 = vperm.xlu0 %432, %v351
  %v434 = vpop.permute.xlu0 %433
  %437 = vset.pattern.permute.xlu0 0
  %438 = vperm.xlu0 %437, %v352
  %v439 = vpop.permute.xlu0 %438
  %442 = vset.pattern.permute.xlu0 0
  %443 = vperm.xlu0 %442, %v353
  %v444 = vpop.permute.xlu0 %443
  %447 = vset.pattern.permute.xlu0 0
  %448 = vperm.xlu0 %447, %v354
  %v449 = vpop.permute.xlu0 %448
  %452 = vset.pattern.permute.xlu0 0
  %453 = vperm.xlu0 %452, %v355
  %v454 = vpop.permute.xlu0 %453
  %457 = vset.pattern.permute.xlu0 0
  %458 = vperm.xlu0 %457, %v356
  %v459 = vpop.permute.xlu0 %458
  %462 = vset.pattern.permute.xlu0 0
  %463 = vperm.xlu0 %462, %v357
  %v464 = vpop.permute.xlu0 %463
  %467 = vset.pattern.permute.xlu0 0
  %468 = vperm.xlu0 %467, %v358
  %v469 = vpop.permute.xlu0 %468
  %472 = vset.pattern.permute.xlu0 0
  %473 = vperm.xlu0 %472, %v359
  %v474 = vpop.permute.xlu0 %473
  %477 = vset.pattern.permute.xlu0 0
  %478 = vperm.xlu0 %477, %v360
  %v479 = vpop.permute.xlu0 %478
  %482 = vset.pattern.permute.xlu0 0
  %483 = vperm.xlu0 %482, %v361
  %v484 = vpop.permute.xlu0 %483
  %487 = vset.pattern.permute.xlu0 0
  %488 = vperm.xlu0 %487, %v362
  %v489 = vpop.permute.xlu0 %488
  %v491 = vsub.f32 %v283, %v414
  %v492 = vsub.f32 %v284, %v419
  %v493 = vsub.f32 %v285, %v424
  %v494 = vsub.f32 %v286, %v429
  %v495 = vsub.f32 %v287, %v434
  %v496 = vsub.f32 %v288, %v439
  %v497 = vsub.f32 %v289, %v444
  %v498 = vsub.f32 %v290, %v449
  %v499 = vsub.f32 %v291, %v454
  %v500 = vsub.f32 %v292, %v459
  %v501 = vsub.f32 %v293, %v464
  %v502 = vsub.f32 %v294, %v469
  %v503 = vsub.f32 %v295, %v474
  %v504 = vsub.f32 %v296, %v479
  %v505 = vsub.f32 %v297, %v484
  %v506 = vsub.f32 %v298, %v489
  %v507 = vmul.f32 %v491, 1.442695
  %v508 = vpow.pop %v507
  %v509 = vmul.f32 %v492, 1.442695
  %v510 = vpow.pop %v509
  %v511 = vmul.f32 %v493, 1.442695
  %v512 = vpow.pop %v511
  %v513 = vmul.f32 %v494, 1.442695
  %v514 = vpow.pop %v513
  %v515 = vmul.f32 %v495, 1.442695
  %v516 = vpow.pop %v515
  %v517 = vmul.f32 %v496, 1.442695
  %v518 = vpow.pop %v517
  %v519 = vmul.f32 %v497, 1.442695
  %v520 = vpow.pop %v519
  %v521 = vmul.f32 %v498, 1.442695
  %v522 = vpow.pop %v521
  %v523 = vmul.f32 %v499, 1.442695
  %v524 = vpow.pop %v523
  %v525 = vmul.f32 %v500, 1.442695
  %v526 = vpow.pop %v525
  %v527 = vmul.f32 %v501, 1.442695
  %v528 = vpow.pop %v527
  %v529 = vmul.f32 %v502, 1.442695
  %v530 = vpow.pop %v529
  %v531 = vmul.f32 %v503, 1.442695
  %v532 = vpow.pop %v531
  %v533 = vmul.f32 %v504, 1.442695
  %v534 = vpow.pop %v533
  %v535 = vmul.f32 %v505, 1.442695
  %v536 = vpow.pop %v535
  %v537 = vmul.f32 %v506, 1.442695
  %v538 = vpow.pop %v537
  %v539 = vld [vmem:[#allocation3] sm:$0xff]
  %v540 = vld [vmem:[#allocation3 + $0x8] sm:$0xff]
  %v541 = vld [vmem:[#allocation3 + $0x10] sm:$0xff]
  %v542 = vld [vmem:[#allocation3 + $0x18] sm:$0xff]
  %v543 = vld [vmem:[#allocation3 + $0x20] sm:$0xff]
  %v544 = vld [vmem:[#allocation3 + $0x28] sm:$0xff]
  %v545 = vld [vmem:[#allocation3 + $0x30] sm:$0xff]
  %v546 = vld [vmem:[#allocation3 + $0x38] sm:$0xff]
  %v547 = vld [vmem:[#allocation3 + $0x40] sm:$0xff]
  %v548 = vld [vmem:[#allocation3 + $0x48] sm:$0xff]
  %v549 = vld [vmem:[#allocation3 + $0x50] sm:$0xff]
  %v550 = vld [vmem:[#allocation3 + $0x58] sm:$0xff]
  %v551 = vld [vmem:[#allocation3 + $0x60] sm:$0xff]
  %v552 = vld [vmem:[#allocation3 + $0x68] sm:$0xff]
  %v553 = vld [vmem:[#allocation3 + $0x70] sm:$0xff]
  %v554 = vld [vmem:[#allocation3 + $0x78] sm:$0xff]
  %v555 = vmul.f32 %v380, %v539
  %v556 = vmul.f32 %v382, %v540
  %v557 = vmul.f32 %v384, %v541
  %v558 = vmul.f32 %v386, %v542
  %v559 = vmul.f32 %v388, %v543
  %v560 = vmul.f32 %v390, %v544
  %v561 = vmul.f32 %v392, %v545
  %v562 = vmul.f32 %v394, %v546
  %v563 = vmul.f32 %v396, %v547
  %v564 = vmul.f32 %v398, %v548
  %v565 = vmul.f32 %v400, %v549
  %v566 = vmul.f32 %v402, %v550
  %v567 = vmul.f32 %v404, %v551
  %v568 = vmul.f32 %v406, %v552
  %v569 = vmul.f32 %v408, %v553
  %v570 = vmul.f32 %v410, %v554
  %571 = vadd.xlane.f32.xlu0 %v508
  %v572 = vpop.xlane.xlu0 %571
  %573 = vadd.xlane.f32.xlu0 %v510
  %v574 = vpop.xlane.xlu0 %573
  %575 = vadd.xlane.f32.xlu0 %v512
  %v576 = vpop.xlane.xlu0 %575
  %577 = vadd.xlane.f32.xlu0 %v514
  %v578 = vpop.xlane.xlu0 %577
  %579 = vadd.xlane.f32.xlu0 %v516
  %v580 = vpop.xlane.xlu0 %579
  %581 = vadd.xlane.f32.xlu0 %v518
  %v582 = vpop.xlane.xlu0 %581
  %583 = vadd.xlane.f32.xlu0 %v520
  %v584 = vpop.xlane.xlu0 %583
  %585 = vadd.xlane.f32.xlu0 %v522
  %v586 = vpop.xlane.xlu0 %585
  %587 = vadd.xlane.f32.xlu0 %v524
  %v588 = vpop.xlane.xlu0 %587
  %589 = vadd.xlane.f32.xlu0 %v526
  %v590 = vpop.xlane.xlu0 %589
  %591 = vadd.xlane.f32.xlu0 %v528
  %v592 = vpop.xlane.xlu0 %591
  %593 = vadd.xlane.f32.xlu0 %v530
  %v594 = vpop.xlane.xlu0 %593
  %595 = vadd.xlane.f32.xlu0 %v532
  %v596 = vpop.xlane.xlu0 %595
  %597 = vadd.xlane.f32.xlu0 %v534
  %v598 = vpop.xlane.xlu0 %597
  %599 = vadd.xlane.f32.xlu0 %v536
  %v600 = vpop.xlane.xlu0 %599
  %601 = vadd.xlane.f32.xlu0 %v538
  %v602 = vpop.xlane.xlu0 %601
  %v603 = vadd.f32 %v555, %v572
  %v604 = vadd.f32 %v556, %v574
  %v605 = vadd.f32 %v557, %v576
  %v606 = vadd.f32 %v558, %v578
  %v607 = vadd.f32 %v559, %v580
  %v608 = vadd.f32 %v560, %v582
  %v609 = vadd.f32 %v561, %v584
  %v610 = vadd.f32 %v562, %v586
  %v611 = vadd.f32 %v563, %v588
  %v612 = vadd.f32 %v564, %v590
  %v613 = vadd.f32 %v565, %v592
  %v614 = vadd.f32 %v566, %v594
  %v615 = vadd.f32 %v567, %v596
  %v616 = vadd.f32 %v568, %v598
  %v617 = vadd.f32 %v569, %v600
  %v618 = vadd.f32 %v570, %v602
  %vm619 = vcmask 7168
  %620 = vst.msk [vmem:[#allocation3] sm:$0xff] %vm619, %v603
  %621 = vst.msk [vmem:[#allocation3 + $0x8] sm:$0xff] %vm619, %v604
  %622 = vst.msk [vmem:[#allocation3 + $0x10] sm:$0xff] %vm619, %v605
  %623 = vst.msk [vmem:[#allocation3 + $0x18] sm:$0xff] %vm619, %v606
  %624 = vst.msk [vmem:[#allocation3 + $0x20] sm:$0xff] %vm619, %v607
  %625 = vst.msk [vmem:[#allocation3 + $0x28] sm:$0xff] %vm619, %v608
  %626 = vst.msk [vmem:[#allocation3 + $0x30] sm:$0xff] %vm619, %v609
  %627 = vst.msk [vmem:[#allocation3 + $0x38] sm:$0xff] %vm619, %v610
  %628 = vst.msk [vmem:[#allocation3 + $0x40] sm:$0xff] %vm619, %v611
  %629 = vst.msk [vmem:[#allocation3 + $0x48] sm:$0xff] %vm619, %v612
  %630 = vst.msk [vmem:[#allocation3 + $0x50] sm:$0xff] %vm619, %v613
  %631 = vst.msk [vmem:[#allocation3 + $0x58] sm:$0xff] %vm619, %v614
  %632 = vst.msk [vmem:[#allocation3 + $0x60] sm:$0xff] %vm619, %v615
  %633 = vst.msk [vmem:[#allocation3 + $0x68] sm:$0xff] %vm619, %v616
  %634 = vst.msk [vmem:[#allocation3 + $0x70] sm:$0xff] %vm619, %v617
  %635 = vst.msk [vmem:[#allocation3 + $0x78] sm:$0xff] %vm619, %v618
  %v636 = vld [vmem:[#allocation4] sm:$0xff]
  %v637 = vld [vmem:[#allocation4 + $0x8] sm:$0xff]
  %v638 = vld [vmem:[#allocation4 + $0x10] sm:$0xff]
  %v639 = vld [vmem:[#allocation4 + $0x18] sm:$0xff]
  %v640 = vld [vmem:[#allocation4 + $0x20] sm:$0xff]
  %v641 = vld [vmem:[#allocation4 + $0x28] sm:$0xff]
  %v642 = vld [vmem:[#allocation4 + $0x30] sm:$0xff]
  %v643 = vld [vmem:[#allocation4 + $0x38] sm:$0xff]
  %v644 = vld [vmem:[#allocation4 + $0x40] sm:$0xff]
  %v645 = vld [vmem:[#allocation4 + $0x48] sm:$0xff]
  %v646 = vld [vmem:[#allocation4 + $0x50] sm:$0xff]
  %v647 = vld [vmem:[#allocation4 + $0x58] sm:$0xff]
  %v648 = vld [vmem:[#allocation4 + $0x60] sm:$0xff]
  %v649 = vld [vmem:[#allocation4 + $0x68] sm:$0xff]
  %v650 = vld [vmem:[#allocation4 + $0x70] sm:$0xff]
  %v651 = vld [vmem:[#allocation4 + $0x78] sm:$0xff]
  %653 = vset.pattern.permute.xlu0 0
  %654 = vperm.xlu0 %653, %v380
  %v655 = vpop.permute.xlu0 %654
  %658 = vset.pattern.permute.xlu0 0
  %659 = vperm.xlu0 %658, %v382
  %v660 = vpop.permute.xlu0 %659
  %663 = vset.pattern.permute.xlu0 0
  %664 = vperm.xlu0 %663, %v384
  %v665 = vpop.permute.xlu0 %664
  %668 = vset.pattern.permute.xlu0 0
  %669 = vperm.xlu0 %668, %v386
  %v670 = vpop.permute.xlu0 %669
  %673 = vset.pattern.permute.xlu0 0
  %674 = vperm.xlu0 %673, %v388
  %v675 = vpop.permute.xlu0 %674
  %678 = vset.pattern.permute.xlu0 0
  %679 = vperm.xlu0 %678, %v390
  %v680 = vpop.permute.xlu0 %679
  %683 = vset.pattern.permute.xlu0 0
  %684 = vperm.xlu0 %683, %v392
  %v685 = vpop.permute.xlu0 %684
  %688 = vset.pattern.permute.xlu0 0
  %689 = vperm.xlu0 %688, %v394
  %v690 = vpop.permute.xlu0 %689
  %693 = vset.pattern.permute.xlu0 0
  %694 = vperm.xlu0 %693, %v396
  %v695 = vpop.permute.xlu0 %694
  %698 = vset.pattern.permute.xlu0 0
  %699 = vperm.xlu0 %698, %v398
  %v700 = vpop.permute.xlu0 %699
  %703 = vset.pattern.permute.xlu0 0
  %704 = vperm.xlu0 %703, %v400
  %v705 = vpop.permute.xlu0 %704
  %708 = vset.pattern.permute.xlu0 0
  %709 = vperm.xlu0 %708, %v402
  %v710 = vpop.permute.xlu0 %709
  %713 = vset.pattern.permute.xlu0 0
  %714 = vperm.xlu0 %713, %v404
  %v715 = vpop.permute.xlu0 %714
  %718 = vset.pattern.permute.xlu0 0
  %719 = vperm.xlu0 %718, %v406
  %v720 = vpop.permute.xlu0 %719
  %723 = vset.pattern.permute.xlu0 0
  %724 = vperm.xlu0 %723, %v408
  %v725 = vpop.permute.xlu0 %724
  %728 = vset.pattern.permute.xlu0 0
  %729 = vperm.xlu0 %728, %v410
  %v730 = vpop.permute.xlu0 %729
  %v732 = vmul.f32 %v655, %v636
  %v733 = vmul.f32 %v660, %v637
  %v734 = vmul.f32 %v665, %v638
  %v735 = vmul.f32 %v670, %v639
  %v736 = vmul.f32 %v675, %v640
  %v737 = vmul.f32 %v680, %v641
  %v738 = vmul.f32 %v685, %v642
  %v739 = vmul.f32 %v690, %v643
  %v740 = vmul.f32 %v695, %v644
  %v741 = vmul.f32 %v700, %v645
  %v742 = vmul.f32 %v705, %v646
  %v743 = vmul.f32 %v710, %v647
  %v744 = vmul.f32 %v715, %v648
  %v745 = vmul.f32 %v720, %v649
  %v746 = vmul.f32 %v725, %v650
  %v747 = vmul.f32 %v730, %v651
  %v748 = vpack.c.bf16 %v508, %v508
  %v749 = vpack.c.bf16 %v510, %v510
  %v750 = vpack.c.bf16 %v512, %v512
  %v751 = vpack.c.bf16 %v514, %v514
  %v752 = vpack.c.bf16 %v516, %v516
  %v753 = vpack.c.bf16 %v518, %v518
  %v754 = vpack.c.bf16 %v520, %v520
  %v755 = vpack.c.bf16 %v522, %v522
  %v756 = vpack.c.bf16 %v524, %v524
  %v757 = vpack.c.bf16 %v526, %v526
  %v758 = vpack.c.bf16 %v528, %v528
  %v759 = vpack.c.bf16 %v530, %v530
  %v760 = vpack.c.bf16 %v532, %v532
  %v761 = vpack.c.bf16 %v534, %v534
  %v762 = vpack.c.bf16 %v536, %v536
  %v763 = vpack.c.bf16 %v538, %v538
  %v764 = vld [vmem:[%s3] sm:$0xf]
  %v765 = vld [vmem:[%s3 + $0x4] sm:$0xf]
  %v766 = vld [vmem:[%s3 + $0x8] sm:$0xf]
  %v767 = vld [vmem:[%s3 + $0xc] sm:$0xf]
  %v768 = vld [vmem:[%s3 + $0x10] sm:$0xf]
  %v769 = vld [vmem:[%s3 + $0x14] sm:$0xf]
  %v770 = vld [vmem:[%s3 + $0x18] sm:$0xf]
  %v771 = vld [vmem:[%s3 + $0x1c] sm:$0xf]
  %v772 = vld [vmem:[%s3 + $0x20] sm:$0xf]
  %v773 = vld [vmem:[%s3 + $0x24] sm:$0xf]
  %v774 = vld [vmem:[%s3 + $0x28] sm:$0xf]
  %v775 = vld [vmem:[%s3 + $0x2c] sm:$0xf]
  %v776 = vld [vmem:[%s3 + $0x30] sm:$0xf]
  %v777 = vld [vmem:[%s3 + $0x34] sm:$0xf]
  %v778 = vld [vmem:[%s3 + $0x38] sm:$0xf]
  %v779 = vld [vmem:[%s3 + $0x3c] sm:$0xf]
  %v796 = vunpack.c.l.b16 %v748
  %v797 = vunpack.c.l.b16 %v749
  %v798 = vunpack.c.l.b16 %v750
  %v799 = vunpack.c.l.b16 %v751
  %v800 = vunpack.c.l.b16 %v752
  %v801 = vunpack.c.l.b16 %v753
  %v802 = vunpack.c.l.b16 %v754
  %v803 = vunpack.c.l.b16 %v755
  %v804 = vunpack.c.l.b16 %v756
  %v805 = vunpack.c.l.b16 %v757
  %v806 = vunpack.c.l.b16 %v758
  %v807 = vunpack.c.l.b16 %v759
  %v808 = vunpack.c.l.b16 %v760
  %v809 = vunpack.c.l.b16 %v761
  %v810 = vunpack.c.l.b16 %v762
  %v811 = vunpack.c.l.b16 %v763
  %v812 = vpack.c.b16 %v797, %v796
  %v813 = vpack.c.b16 %v799, %v798
  %v814 = vpack.c.b16 %v801, %v800
  %v815 = vpack.c.b16 %v803, %v802
  %v816 = vpack.c.b16 %v805, %v804
  %v817 = vpack.c.b16 %v807, %v806
  %v818 = vpack.c.b16 %v809, %v808
  %v819 = vpack.c.b16 %v811, %v810
  %v844 = vunpack.c.l.b16 %v764
  %v845 = vunpack.c.l.b16 %v765
  %v846 = vunpack.c.l.b16 %v766
  %v847 = vunpack.c.l.b16 %v767
  %v848 = vunpack.c.l.b16 %v768
  %v849 = vunpack.c.l.b16 %v769
  %v850 = vunpack.c.l.b16 %v770
  %v851 = vunpack.c.l.b16 %v771
  %v852 = vunpack.c.l.b16 %v772
  %v853 = vunpack.c.l.b16 %v773
  %v854 = vunpack.c.l.b16 %v774
  %v855 = vunpack.c.l.b16 %v775
  %v856 = vunpack.c.l.b16 %v776
  %v857 = vunpack.c.l.b16 %v777
  %v858 = vunpack.c.l.b16 %v778
  %v859 = vunpack.c.l.b16 %v779
  %v860 = vpack.c.b16 %v845, %v844
  %v861 = vpack.c.b16 %v847, %v846
  %v862 = vpack.c.b16 %v849, %v848
  %v863 = vpack.c.b16 %v851, %v850
  %v864 = vpack.c.b16 %v853, %v852
  %v865 = vpack.c.b16 %v855, %v854
  %v866 = vpack.c.b16 %v857, %v856
  %v867 = vpack.c.b16 %v859, %v858
  %876 = vmatpush.bf16.msra.mxu0 %v867
  %877 = vmatpush.bf16.msra.mxu0 %v866
  %878 = vmatpush.bf16.msra.mxu0 %v865
  %879 = vmatpush.bf16.msra.mxu0 %v864
  %880 = vmatpush.bf16.msra.mxu0 %v863
  %881 = vmatpush.bf16.msra.mxu0 %v862
  %882 = vmatpush.bf16.msra.mxu0 %v861
  %883 = vmatpush.bf16.msra.mxu0 %v860
  %884 = vmatmul.bf16.gmra.mxu0 %v812
  %v885 = vpop.f32.mrf.mxu0
  %v886 = vadd.f32 0.0, %v885
  %v887 = vpop.f32.mrf.mxu0
  %v888 = vadd.f32 0.0, %v887
  %889 = vmatmul.bf16.gmra.mxu0 %v813
  %v890 = vpop.f32.mrf.mxu0
  %v891 = vadd.f32 0.0, %v890
  %v892 = vpop.f32.mrf.mxu0
  %v893 = vadd.f32 0.0, %v892
  %894 = vmatmul.bf16.gmra.mxu0 %v814
  %v895 = vpop.f32.mrf.mxu0
  %v896 = vadd.f32 0.0, %v895
  %v897 = vpop.f32.mrf.mxu0
  %v898 = vadd.f32 0.0, %v897
  %899 = vmatmul.bf16.gmra.mxu0 %v815
  %v900 = vpop.f32.mrf.mxu0
  %v901 = vadd.f32 0.0, %v900
  %v902 = vpop.f32.mrf.mxu0
  %v903 = vadd.f32 0.0, %v902
  %904 = vmatmul.bf16.gmra.mxu0 %v816
  %v905 = vpop.f32.mrf.mxu0
  %v906 = vadd.f32 0.0, %v905
  %v907 = vpop.f32.mrf.mxu0
  %v908 = vadd.f32 0.0, %v907
  %909 = vmatmul.bf16.gmra.mxu0 %v817
  %v910 = vpop.f32.mrf.mxu0
  %v911 = vadd.f32 0.0, %v910
  %v912 = vpop.f32.mrf.mxu0
  %v913 = vadd.f32 0.0, %v912
  %914 = vmatmul.bf16.gmra.mxu0 %v818
  %v915 = vpop.f32.mrf.mxu0
  %v916 = vadd.f32 0.0, %v915
  %v917 = vpop.f32.mrf.mxu0
  %v918 = vadd.f32 0.0, %v917
  %919 = vmatmul.bf16.gmra.mxu0 %v819
  %v920 = vpop.f32.mrf.mxu0
  %v921 = vadd.f32 0.0, %v920
  %v922 = vpop.f32.mrf.mxu0
  %v923 = vadd.f32 0.0, %v922
  %924 = vdwg.mxu0
  %v925 = vadd.f32 %v732, %v886
  %v926 = vadd.f32 %v733, %v888
  %v927 = vadd.f32 %v734, %v891
  %v928 = vadd.f32 %v735, %v893
  %v929 = vadd.f32 %v736, %v896
  %v930 = vadd.f32 %v737, %v898
  %v931 = vadd.f32 %v738, %v901
  %v932 = vadd.f32 %v739, %v903
  %v933 = vadd.f32 %v740, %v906
  %v934 = vadd.f32 %v741, %v908
  %v935 = vadd.f32 %v742, %v911
  %v936 = vadd.f32 %v743, %v913
  %v937 = vadd.f32 %v744, %v916
  %v938 = vadd.f32 %v745, %v918
  %v939 = vadd.f32 %v746, %v921
  %v940 = vadd.f32 %v747, %v923
  %vm941 = vcmask 31744
  %942 = vst.msk [vmem:[#allocation4] sm:$0xff] %vm941, %v925
  %943 = vst.msk [vmem:[#allocation4 + $0x8] sm:$0xff] %vm941, %v926
  %944 = vst.msk [vmem:[#allocation4 + $0x10] sm:$0xff] %vm941, %v927
  %945 = vst.msk [vmem:[#allocation4 + $0x18] sm:$0xff] %vm941, %v928
  %946 = vst.msk [vmem:[#allocation4 + $0x20] sm:$0xff] %vm941, %v929
  %947 = vst.msk [vmem:[#allocation4 + $0x28] sm:$0xff] %vm941, %v930
  %948 = vst.msk [vmem:[#allocation4 + $0x30] sm:$0xff] %vm941, %v931
  %949 = vst.msk [vmem:[#allocation4 + $0x38] sm:$0xff] %vm941, %v932
  %950 = vst.msk [vmem:[#allocation4 + $0x40] sm:$0xff] %vm941, %v933
  %951 = vst.msk [vmem:[#allocation4 + $0x48] sm:$0xff] %vm941, %v934
  %952 = vst.msk [vmem:[#allocation4 + $0x50] sm:$0xff] %vm941, %v935
  %953 = vst.msk [vmem:[#allocation4 + $0x58] sm:$0xff] %vm941, %v936
  %954 = vst.msk [vmem:[#allocation4 + $0x60] sm:$0xff] %vm941, %v937
  %955 = vst.msk [vmem:[#allocation4 + $0x68] sm:$0xff] %vm941, %v938
  %956 = vst.msk [vmem:[#allocation4 + $0x70] sm:$0xff] %vm941, %v939
  %957 = vst.msk [vmem:[#allocation4 + $0x78] sm:$0xff] %vm941, %v940
  %958 = vst.msk [vmem:[#allocation2] sm:$0xff] %vm619, %v347
  %959 = vst.msk [vmem:[#allocation2 + $0x8] sm:$0xff] %vm619, %v348
  %960 = vst.msk [vmem:[#allocation2 + $0x10] sm:$0xff] %vm619, %v349
  %961 = vst.msk [vmem:[#allocation2 + $0x18] sm:$0xff] %vm619, %v350
  %962 = vst.msk [vmem:[#allocation2 + $0x20] sm:$0xff] %vm619, %v351
  %963 = vst.msk [vmem:[#allocation2 + $0x28] sm:$0xff] %vm619, %v352
  %964 = vst.msk [vmem:[#allocation2 + $0x30] sm:$0xff] %vm619, %v353
  %965 = vst.msk [vmem:[#allocation2 + $0x38] sm:$0xff] %vm619, %v354
  %966 = vst.msk [vmem:[#allocation2 + $0x40] sm:$0xff] %vm619, %v355
  %967 = vst.msk [vmem:[#allocation2 + $0x48] sm:$0xff] %vm619, %v356
  %968 = vst.msk [vmem:[#allocation2 + $0x50] sm:$0xff] %vm619, %v357
  %969 = vst.msk [vmem:[#allocation2 + $0x58] sm:$0xff] %vm619, %v358
  %970 = vst.msk [vmem:[#allocation2 + $0x60] sm:$0xff] %vm619, %v359
  %971 = vst.msk [vmem:[#allocation2 + $0x68] sm:$0xff] %vm619, %v360
  %972 = vst.msk [vmem:[#allocation2 + $0x70] sm:$0xff] %vm619, %v361
  %973 = vst.msk [vmem:[#allocation2 + $0x78] sm:$0xff] %vm619, %v362
  // Predicated region
  $region22: #{model_forward.17} parent=0 // pred_check
    %p974 = pneg %p17
  $region23: #{model_forward.17} parent=0 // pred_check_branch
    %976 = sbr.rel (%p974) target = $region25
  $region24: #{model_forward.17} parent=0 // pred_region
    %v977 = vld [vmem:[#allocation4] sm:$0xff]
    %v978 = vld [vmem:[#allocation4 + $0x8] sm:$0xff]
    %v979 = vld [vmem:[#allocation4 + $0x10] sm:$0xff]
    %v980 = vld [vmem:[#allocation4 + $0x18] sm:$0xff]
    %v981 = vld [vmem:[#allocation4 + $0x20] sm:$0xff]
    %v982 = vld [vmem:[#allocation4 + $0x28] sm:$0xff]
    %v983 = vld [vmem:[#allocation4 + $0x30] sm:$0xff]
    %v984 = vld [vmem:[#allocation4 + $0x38] sm:$0xff]
    %v985 = vld [vmem:[#allocation4 + $0x40] sm:$0xff]
    %v986 = vld [vmem:[#allocation4 + $0x48] sm:$0xff]
    %v987 = vld [vmem:[#allocation4 + $0x50] sm:$0xff]
    %v988 = vld [vmem:[#allocation4 + $0x58] sm:$0xff]
    %v989 = vld [vmem:[#allocation4 + $0x60] sm:$0xff]
    %v990 = vld [vmem:[#allocation4 + $0x68] sm:$0xff]
    %v991 = vld [vmem:[#allocation4 + $0x70] sm:$0xff]
    %v992 = vld [vmem:[#allocation4 + $0x78] sm:$0xff]
    %v993 = vld [vmem:[#allocation3] sm:$0xff]
    %v994 = vld [vmem:[#allocation3 + $0x8] sm:$0xff]
    %v995 = vld [vmem:[#allocation3 + $0x10] sm:$0xff]
    %v996 = vld [vmem:[#allocation3 + $0x18] sm:$0xff]
    %v997 = vld [vmem:[#allocation3 + $0x20] sm:$0xff]
    %v998 = vld [vmem:[#allocation3 + $0x28] sm:$0xff]
    %v999 = vld [vmem:[#allocation3 + $0x30] sm:$0xff]
    %v1000 = vld [vmem:[#allocation3 + $0x38] sm:$0xff]
    %v1001 = vld [vmem:[#allocation3 + $0x40] sm:$0xff]
    %v1002 = vld [vmem:[#allocation3 + $0x48] sm:$0xff]
    %v1003 = vld [vmem:[#allocation3 + $0x50] sm:$0xff]
    %v1004 = vld [vmem:[#allocation3 + $0x58] sm:$0xff]
    %v1005 = vld [vmem:[#allocation3 + $0x60] sm:$0xff]
    %v1006 = vld [vmem:[#allocation3 + $0x68] sm:$0xff]
    %v1007 = vld [vmem:[#allocation3 + $0x70] sm:$0xff]
    %v1008 = vld [vmem:[#allocation3 + $0x78] sm:$0xff]
    %v1009 = vrcp.pop %v993
    %v1010 = vrcp.pop %v994
    %v1011 = vrcp.pop %v995
    %v1012 = vrcp.pop %v996
    %v1013 = vrcp.pop %v997
    %v1014 = vrcp.pop %v998
    %v1015 = vrcp.pop %v999
    %v1016 = vrcp.pop %v1000
    %v1017 = vrcp.pop %v1001
    %v1018 = vrcp.pop %v1002
    %v1019 = vrcp.pop %v1003
    %v1020 = vrcp.pop %v1004
    %v1021 = vrcp.pop %v1005
    %v1022 = vrcp.pop %v1006
    %v1023 = vrcp.pop %v1007
    %v1024 = vrcp.pop %v1008
    %1026 = vset.pattern.permute.xlu0 0
    %1027 = vperm.xlu0 %1026, %v1009
    %v1028 = vpop.permute.xlu0 %1027
    %1031 = vset.pattern.permute.xlu0 0
    %1032 = vperm.xlu0 %1031, %v1010
    %v1033 = vpop.permute.xlu0 %1032
    %1036 = vset.pattern.permute.xlu0 0
    %1037 = vperm.xlu0 %1036, %v1011
    %v1038 = vpop.permute.xlu0 %1037
    %1041 = vset.pattern.permute.xlu0 0
    %1042 = vperm.xlu0 %1041, %v1012
    %v1043 = vpop.permute.xlu0 %1042
    %1046 = vset.pattern.permute.xlu0 0
    %1047 = vperm.xlu0 %1046, %v1013
    %v1048 = vpop.permute.xlu0 %1047
    %1051 = vset.pattern.permute.xlu0 0
    %1052 = vperm.xlu0 %1051, %v1014
    %v1053 = vpop.permute.xlu0 %1052
    %1056 = vset.pattern.permute.xlu0 0
    %1057 = vperm.xlu0 %1056, %v1015
    %v1058 = vpop.permute.xlu0 %1057
    %1061 = vset.pattern.permute.xlu0 0
    %1062 = vperm.xlu0 %1061, %v1016
    %v1063 = vpop.permute.xlu0 %1062
    %1066 = vset.pattern.permute.xlu0 0
    %1067 = vperm.xlu0 %1066, %v1017
    %v1068 = vpop.permute.xlu0 %1067
    %1071 = vset.pattern.permute.xlu0 0
    %1072 = vperm.xlu0 %1071, %v1018
    %v1073 = vpop.permute.xlu0 %1072
    %1076 = vset.pattern.permute.xlu0 0
    %1077 = vperm.xlu0 %1076, %v1019
    %v1078 = vpop.permute.xlu0 %1077
    %1081 = vset.pattern.permute.xlu0 0
    %1082 = vperm.xlu0 %1081, %v1020
    %v1083 = vpop.permute.xlu0 %1082
    %1086 = vset.pattern.permute.xlu0 0
    %1087 = vperm.xlu0 %1086, %v1021
    %v1088 = vpop.permute.xlu0 %1087
    %1091 = vset.pattern.permute.xlu0 0
    %1092 = vperm.xlu0 %1091, %v1022
    %v1093 = vpop.permute.xlu0 %1092
    %1096 = vset.pattern.permute.xlu0 0
    %1097 = vperm.xlu0 %1096, %v1023
    %v1098 = vpop.permute.xlu0 %1097
    %1101 = vset.pattern.permute.xlu0 0
    %1102 = vperm.xlu0 %1101, %v1024
    %v1103 = vpop.permute.xlu0 %1102
    %v1105 = vmul.f32 %v977, %v1028
    %v1106 = vmul.f32 %v978, %v1033
    %v1107 = vmul.f32 %v979, %v1038
    %v1108 = vmul.f32 %v980, %v1043
    %v1109 = vmul.f32 %v981, %v1048
    %v1110 = vmul.f32 %v982, %v1053
    %v1111 = vmul.f32 %v983, %v1058
    %v1112 = vmul.f32 %v984, %v1063
    %v1113 = vmul.f32 %v985, %v1068
    %v1114 = vmul.f32 %v986, %v1073
    %v1115 = vmul.f32 %v987, %v1078
    %v1116 = vmul.f32 %v988, %v1083
    %v1117 = vmul.f32 %v989, %v1088
    %v1118 = vmul.f32 %v990, %v1093
    %v1119 = vmul.f32 %v991, %v1098
    %v1120 = vmul.f32 %v992, %v1103
    %1121 = vst.msk [vmem:[%s4] sm:$0xff] %vm941, %v1105
    %1122 = vst.msk [vmem:[%s4 + $0x8] sm:$0xff] %vm941, %v1106
    %1123 = vst.msk [vmem:[%s4 + $0x10] sm:$0xff] %vm941, %v1107
    %1124 = vst.msk [vmem:[%s4 + $0x18] sm:$0xff] %vm941, %v1108
    %1125 = vst.msk [vmem:[%s4 + $0x20] sm:$0xff] %vm941, %v1109
    %1126 = vst.msk [vmem:[%s4 + $0x28] sm:$0xff] %vm941, %v1110
    %1127 = vst.msk [vmem:[%s4 + $0x30] sm:$0xff] %vm941, %v1111
    %1128 = vst.msk [vmem:[%s4 + $0x38] sm:$0xff] %vm941, %v1112
    %1129 = vst.msk [vmem:[%s4 + $0x40] sm:$0xff] %vm941, %v1113
    %1130 = vst.msk [vmem:[%s4 + $0x48] sm:$0xff] %vm941, %v1114
    %1131 = vst.msk [vmem:[%s4 + $0x50] sm:$0xff] %vm941, %v1115
    %1132 = vst.msk [vmem:[%s4 + $0x58] sm:$0xff] %vm941, %v1116
    %1133 = vst.msk [vmem:[%s4 + $0x60] sm:$0xff] %vm941, %v1117
    %1134 = vst.msk [vmem:[%s4 + $0x68] sm:$0xff] %vm941, %v1118
    %1135 = vst.msk [vmem:[%s4 + $0x70] sm:$0xff] %vm941, %v1119
    %1136 = vst.msk [vmem:[%s4 + $0x78] sm:$0xff] %vm941, %v1120
  $region25: #{model_forward.17} parent=0 // pred_fallthru
    _
  // Predicated region
  $region26: #{model_forward.17} parent=0 // pred_check
    _
  $region27: #{model_forward.17} parent=0 // pred_check_branch
    %1138 = sbr.rel (0) target = $region29
  $region28: #{model_forward.17} parent=0 // pred_region
    _
  $region29: #{model_forward.17} parent=0 // pred_fallthru
    _
  // Predicated region
  $region30: #{model_forward.17} parent=0 // pred_check
    _
  $region31: #{model_forward.17} parent=0 // pred_check_branch
    %1140 = sbr.rel (0) target = $region33
  $region32: #{model_forward.17} parent=0 // pred_region
    _
  $region33: #{model_forward.17} parent=0 // pred_fallthru
    _

</llo_original>
